<compile_context>
chip_gen: v5e
topology: v5e:2x2
jax: 0.10.0
libtpu: 0.0.40
codegen_flags: <defaults>
</compile_context>

<pallas_src>
import functools
import math

import jax
import jax.numpy as jnp
from jax.experimental import pallas as pl
from jax.experimental.pallas import tpu as pltpu


def _enc_lstm_kernel(x_ref, *rest, num_layers, seq_len, batch, hidden):
    """Full bidirectional LSTM stack; everything stays resident in VMEM."""
    H, T, B = hidden, seq_len, batch
    n_w = 3 * num_layers
    w_refs = rest[:n_w]
    out_ref, hn_ref, cn_ref = rest[n_w:n_w + 3]
    gx_ref, hseq_ref = rest[n_w + 3:]

    # Static lane mask, hoisted once (JAX does not CSE broadcast_in_dim in
    # loops).  Stacked gate column layout (width 8H):
    #   [i_f, i_b, f_f, f_b, g_f, g_b, o_f, o_b], each block of width H.
    lane = jax.lax.broadcasted_iota(jnp.int32, (1, 8 * H), 1)
    bwd_mask = (lane % (2 * H)) >= H              # reverse-direction lanes

    for layer in range(num_layers):
        wih = w_refs[3 * layer + 0][...]          # (D_in, 8H) bf16
        whh = w_refs[3 * layer + 1][...]          # (2H, 8H)  f32, block-diag
        bias = w_refs[3 * layer + 2][...]         # (1, 8H)   f32

        # Layer input: bf16 x for layer 0, bf16 merged hidden scratch after.
        cur = x_ref[...] if layer == 0 else hseq_ref[...]

        # Hoisted input projection for the whole sequence, both directions
        # stacked; bias folded in once.  M = T*B, N = 8H.
        gx_ref[...] = jnp.dot(cur, wih,
                              preferred_element_type=jnp.float32) + bias

        # The recurrence reads only gx_ref, so overwriting hseq_ref (middle
        # layers) or writing out_ref (last layer) below is hazard-free.
        last = layer == num_layers - 1
        dst_ref = out_ref if last else hseq_ref

        def step(t, carry):
            h_prev, c_prev = carry                # (B, 2H) f32, [fwd | bwd]
            # Forward direction consumes x[t], backward consumes x[T-1-t].
            gx_f = gx_ref[pl.ds(t * B, B), :]
            gx_b = gx_ref[pl.ds((T - 1 - t) * B, B), :]
            # f32 hidden matmul: K = 2H is tiny, avoids compounding bf16
            # rounding of the carried state.
            hid = jnp.dot(h_prev, whh, preferred_element_type=jnp.float32)
            gates = jnp.where(bwd_mask, gx_b, gx_f) + hid     # (B, 8H)
            # Sliced activations: sigmoid on i/f and o lanes, tanh on g lanes.
            if_act = jax.nn.sigmoid(gates[:, 0:4 * H])        # [i_f,i_b,f_f,f_b]
            g_act = jnp.tanh(gates[:, 4 * H:6 * H])           # [g_f,g_b]
            o_act = jax.nn.sigmoid(gates[:, 6 * H:8 * H])     # [o_f,o_b]
            i_g = if_act[:, 0:2 * H]
            f_g = if_act[:, 2 * H:4 * H]
            c_new = f_g * c_prev + i_g * g_act    # both directions at once
            h_new = o_act * jnp.tanh(c_new)
            # Time-ordered writes: fwd h(t) -> row block t, cols 0:H;
            # bwd h for input time T-1-t -> row block T-1-t, cols H:2H.
            dst_ref[pl.ds(t * B, B), 0:H] = (
                h_new[:, 0:H].astype(dst_ref.dtype))
            dst_ref[pl.ds((T - 1 - t) * B, B), H:2 * H] = (
                h_new[:, H:2 * H].astype(dst_ref.dtype))
            return h_new, c_new

        zeros = jnp.zeros((B, 2 * H), jnp.float32)
        h_fin, c_fin = jax.lax.fori_loop(0, T, step, (zeros, zeros),
                                         unroll=min(T, 8))

        # Final states, PyTorch ordering: index = layer*2 + direction.
        hn_ref[2 * layer] = h_fin[:, 0:H]
        hn_ref[2 * layer + 1] = h_fin[:, H:2 * H]
        cn_ref[2 * layer] = c_fin[:, 0:H]
        cn_ref[2 * layer + 1] = c_fin[:, H:2 * H]


def _stack_dir_weights(p_fwd, p_bwd, hidden):
    """Stack both directions' weights into MXU-friendly fused operands.

    Column layout (width 8H): [i_f, i_b, f_f, f_b, g_f, g_b, o_f, o_b].
    W_hh is block-diagonal so one (B,2H)@(2H,8H) matmul serves both dirs.
    """
    H = hidden
    wih_f = jnp.asarray(p_fwd["w_ih"], jnp.float32).T     # (D_in, 4H)
    wih_b = jnp.asarray(p_bwd["w_ih"], jnp.float32).T
    whh_f = jnp.asarray(p_fwd["w_hh"], jnp.float32).T     # (H, 4H)
    whh_b = jnp.asarray(p_bwd["w_hh"], jnp.float32).T
    b_f = (p_fwd["b_ih"] + p_fwd["b_hh"]).astype(jnp.float32)
    b_b = (p_bwd["b_ih"] + p_bwd["b_hh"]).astype(jnp.float32)

    zero = jnp.zeros((H, H), jnp.float32)
    wih_cols, whh_cols, b_cols = [], [], []
    for g in range(4):                                     # i, f, g, o
        sl = slice(g * H, (g + 1) * H)
        wih_cols += [wih_f[:, sl], wih_b[:, sl]]
        blk = jnp.concatenate(
            [jnp.concatenate([whh_f[:, sl], zero], axis=1),
             jnp.concatenate([zero, whh_b[:, sl]], axis=1)], axis=0)  # (2H,2H)
        whh_cols.append(blk)
        b_cols += [b_f[sl], b_b[sl]]
    wih_s = jnp.concatenate(wih_cols, axis=1).astype(jnp.bfloat16)   # (Din,8H)
    whh_s = jnp.concatenate(whh_cols, axis=1).astype(jnp.float32)    # (2H, 8H)
    bias_s = jnp.concatenate(b_cols).reshape(1, 8 * H).astype(jnp.float32)
    return wih_s, whh_s, bias_s


def _vmem_estimate_bytes(T, B, D, H, L):
    """Rough resident-VMEM estimate for the fused kernel (with headroom)."""
    io = T * B * D * 2                       # x (bf16)
    io += T * B * 2 * H * 4                  # output (f32)
    io += 2 * (2 * L * B * H * 4)            # h_n, c_n (f32)
    w = 0
    for layer in range(L):
        d_in = D if layer == 0 else 2 * H
        w += d_in * 8 * H * 2 + 2 * H * 8 * H * 4 + 8 * H * 4
    scratch = T * B * 8 * H * 4 + T * B * 2 * H * 2
    return 2 * io + w + scratch              # x2: pipeline double-buffering


@functools.partial(jax.jit, static_argnums=(2, 3))
def enc_lstm_forward(inputs, params, en_hidden, enc_layers):
    """inputs: (B, T, en_dims) batch_first, mirrors EncLSTM.forward.

    Returns (outputs, (h_n, c_n)):
      outputs: (B, T, 2*en_hidden)
      h_n, c_n: (enc_layers*2, B, en_hidden)  -- layer-major, dir-minor order.
    """
    B, T, D = inputs.shape
    H = en_hidden
    # Time-major, flattened to 2-D so all in-kernel buffers stay 2-D.
    x2d = (jnp.transpose(inputs, (1, 0, 2))
           .reshape(T * B, D).astype(jnp.bfloat16))

    flat_w = []
    in_specs = [pl.BlockSpec((T * B, D), lambda i: (0, 0))]
    for layer in range(enc_layers):
        d_in = D if layer == 0 else 2 * H
        wih_s, whh_s, bias_s = _stack_dir_weights(
            params[(layer, 0)], params[(layer, 1)], H)
        flat_w += [wih_s, whh_s, bias_s]
        in_specs += [
            pl.BlockSpec((d_in, 8 * H), lambda i: (0, 0)),
            pl.BlockSpec((2 * H, 8 * H), lambda i: (0, 0)),
            pl.BlockSpec((1, 8 * H), lambda i: (0, 0)),
        ]

    vmem_limit = min(128 * 1024 * 1024,
                     _vmem_estimate_bytes(T, B, D, H, enc_layers)
                     + (16 << 20))

    kernel = functools.partial(_enc_lstm_kernel, num_layers=enc_layers,
                               seq_len=T, batch=B, hidden=H)
    out2d, h_n, c_n = pl.pallas_call(
        kernel,
        out_shape=(
            jax.ShapeDtypeStruct((T * B, 2 * H), jnp.float32),
            jax.ShapeDtypeStruct((2 * enc_layers, B, H), jnp.float32),
            jax.ShapeDtypeStruct((2 * enc_layers, B, H), jnp.float32),
        ),
        grid=(1,),
        in_specs=in_specs,
        out_specs=(
            pl.BlockSpec((T * B, 2 * H), lambda i: (0, 0)),
            pl.BlockSpec((2 * enc_layers, B, H), lambda i: (0, 0, 0)),
            pl.BlockSpec((2 * enc_layers, B, H), lambda i: (0, 0, 0)),
        ),
        scratch_shapes=[
            pltpu.VMEM((T * B, 8 * H), jnp.float32),    # hoisted x-projection
            pltpu.VMEM((T * B, 2 * H), jnp.bfloat16),   # merged hidden seq
        ],
        compiler_params=pltpu.CompilerParams(
            dimension_semantics=("arbitrary",),
            vmem_limit_bytes=int(vmem_limit)),
    )(x2d, *flat_w)

    outputs = jnp.transpose(out2d.reshape(T, B, 2 * H), (1, 0, 2))
    return outputs, (h_n, c_n)


def init_enc_lstm_params(key, en_dims, en_hidden, enc_layers):
    """Deterministic PyTorch-style U(-1/sqrt(H), 1/sqrt(H)) init."""
    k = 1.0 / math.sqrt(en_hidden)
    params = {}
    for layer in range(enc_layers):
        in_dim = en_dims if layer == 0 else 2 * en_hidden
        for direction in range(2):
            key, k1, k2, k3, k4 = jax.random.split(key, 5)
            params[(layer, direction)] = dict(
                w_ih=jax.random.uniform(k1, (4 * en_hidden, in_dim),
                                        jnp.float32, -k, k),
                w_hh=jax.random.uniform(k2, (4 * en_hidden, en_hidden),
                                        jnp.float32, -k, k),
                b_ih=jax.random.uniform(k3, (4 * en_hidden,),
                                        jnp.float32, -k, k),
                b_hh=jax.random.uniform(k4, (4 * en_hidden,),
                                        jnp.float32, -k, k),
            )
    return params


def _reference_forward(inputs, params, en_hidden, enc_layers):
    """Pure-JAX f32 reference (mirrors eval-mode torch.nn.LSTM)."""
    H = en_hidden
    x = jnp.transpose(inputs, (1, 0, 2)).astype(jnp.float32)   # (T, B, D)
    layer_in = x
    hs, cs = [], []
    for layer in range(enc_layers):
        outs = []
        for direction in range(2):
            p = params[(layer, direction)]
            wih = p["w_ih"].astype(jnp.float32)
            whh = p["w_hh"].astype(jnp.float32)
            b = (p["b_ih"] + p["b_hh"]).astype(jnp.float32)
            seq = layer_in if direction == 0 else layer_in[::-1]
            T_, B_, _ = seq.shape
            h = jnp.zeros((B_, H), jnp.float32)
            c = jnp.zeros((B_, H), jnp.float32)
            ys = []
            for t in range(T_):
                g = seq[t] @ wih.T + h @ whh.T + b
                i_g = jax.nn.sigmoid(g[:, 0:H])
                f_g = jax.nn.sigmoid(g[:, H:2 * H])
                g_g = jnp.tanh(g[:, 2 * H:3 * H])
                o_g = jax.nn.sigmoid(g[:, 3 * H:4 * H])
                c = f_g * c + i_g * g_g
                h = o_g * jnp.tanh(c)
                ys.append(h)
            y = jnp.stack(ys)
            if direction == 1:
                y = y[::-1]
            outs.append(y)
            hs.append(h)
            cs.append(c)
        layer_in = jnp.concatenate(outs, axis=-1)
    return (jnp.transpose(layer_in, (1, 0, 2)),
            (jnp.stack(hs), jnp.stack(cs)))


if __name__ == "__main__":
    # Module hyper-params (small, TPU-friendly: 8*en_hidden = 256 lanes).
    dropout_p = 0.1          # ignored at inference (see TODO above)
    en_hidden = 32
    en_dims = 16
    enc_layers = 2

    batch = 2
    seq = 8

    key = jax.random.PRNGKey(0)
    key, xkey, pkey = jax.random.split(key, 3)
    x = jax.random.normal(xkey, (batch, seq, en_dims), jnp.float32)
    params = init_enc_lstm_params(pkey, en_dims, en_hidden, enc_layers)

    outputs, (h_n, c_n) = enc_lstm_forward(x, params, en_hidden, enc_layers)
    jax.block_until_ready((outputs, h_n, c_n))

    assert outputs.shape == (batch, seq, 2 * en_hidden)
    assert h_n.shape == (enc_layers * 2, batch, en_hidden)
    assert c_n.shape == (enc_layers * 2, batch, en_hidden)
    assert bool(jnp.all(jnp.isfinite(outputs)))

    # Numerical sanity check vs. a pure-JAX f32 reference (loose tolerance:
    # the input projection feeds bf16 operands to the MXU; the recurrent
    # hidden matmul and all gate/cell math stay in f32).
    ref_out, (ref_h, ref_c) = _reference_forward(x, params, en_hidden,
                                                 enc_layers)
    assert bool(jnp.allclose(outputs, ref_out, rtol=5e-2, atol=1e-1))
    assert bool(jnp.allclose(h_n, ref_h, rtol=5e-2, atol=1e-1))
    assert bool(jnp.allclose(c_n, ref_c, rtol=5e-2, atol=1e-1))

    print("KERNEL_OK")
</pallas_src>

<mosaic_0001>
module attributes {stable_mosaic.version = 11 : i64} {
  func.func @_enc_lstm_kernel(%arg0: i32, %arg1: memref<16x16xbf16, #tpu.memory_space<vmem>>, %arg2: memref<16x256xbf16, #tpu.memory_space<vmem>>, %arg3: memref<64x256xf32, #tpu.memory_space<vmem>>, %arg4: memref<1x256xf32, #tpu.memory_space<vmem>>, %arg5: memref<64x256xbf16, #tpu.memory_space<vmem>>, %arg6: memref<64x256xf32, #tpu.memory_space<vmem>>, %arg7: memref<1x256xf32, #tpu.memory_space<vmem>>, %arg8: memref<16x64xf32, #tpu.memory_space<vmem>>, %arg9: memref<4x2x32xf32, #tpu.memory_space<vmem>>, %arg10: memref<4x2x32xf32, #tpu.memory_space<vmem>>, %arg11: memref<16x256xf32, #tpu.memory_space<vmem>>, %arg12: memref<16x64xbf16, #tpu.memory_space<vmem>>) attributes {dimension_semantics = [#tpu.dimension_semantics<arbitrary>], iteration_bounds = array<i64: 1>, scalar_prefetch = 0 : i64, scratch_operands = 2 : i64, tpu.core_type = #tpu.core_type<tc>, window_params = [{pipeline_mode = #tpu.pipeline_mode<synchronous>, transform_indices = @transform_0, window_bounds = array<i64: 16, 16>}, {pipeline_mode = #tpu.pipeline_mode<synchronous>, transform_indices = @transform_1, window_bounds = array<i64: 16, 256>}, {pipeline_mode = #tpu.pipeline_mode<synchronous>, transform_indices = @transform_2, window_bounds = array<i64: 64, 256>}, {pipeline_mode = #tpu.pipeline_mode<synchronous>, transform_indices = @transform_3, window_bounds = array<i64: 1, 256>}, {pipeline_mode = #tpu.pipeline_mode<synchronous>, transform_indices = @transform_4, window_bounds = array<i64: 64, 256>}, {pipeline_mode = #tpu.pipeline_mode<synchronous>, transform_indices = @transform_5, window_bounds = array<i64: 64, 256>}, {pipeline_mode = #tpu.pipeline_mode<synchronous>, transform_indices = @transform_6, window_bounds = array<i64: 1, 256>}, {pipeline_mode = #tpu.pipeline_mode<synchronous>, transform_indices = @transform_7, window_bounds = array<i64: 16, 64>}, {pipeline_mode = #tpu.pipeline_mode<synchronous>, transform_indices = @transform_8, window_bounds = array<i64: 4, 2, 32>}, {pipeline_mode = #tpu.pipeline_mode<synchronous>, transform_indices = @transform_9, window_bounds = array<i64: 4, 2, 32>}]} {
    %0 = tpu.iota {dimensions = array<i32: 1>} : vector<1x256xi32>
    %c64_i32 = arith.constant 64 : i32
    %c0_i32 = arith.constant 0 : i32
    %1 = arith.cmpi eq, %c64_i32, %c0_i32 : i32
    %c1_i32 = arith.constant 1 : i32
    %2 = arith.select %1, %c1_i32, %c64_i32 : i32
    %3 = vector.broadcast %2 : i32 to vector<1x256xi32>
    %4 = arith.remsi %0, %3 : vector<1x256xi32>
    %c0_i32_0 = arith.constant 0 : i32
    %5 = vector.broadcast %c0_i32_0 : i32 to vector<1x256xi32>
    %6 = arith.cmpi ne, %4, %5 : vector<1x256xi32>
    %c0_i32_1 = arith.constant 0 : i32
    %7 = vector.broadcast %c0_i32_1 : i32 to vector<1x256xi32>
    %8 = arith.cmpi slt, %4, %7 : vector<1x256xi32>
    %c0_i32_2 = arith.constant 0 : i32
    %9 = arith.cmpi slt, %2, %c0_i32_2 : i32
    %10 = vector.broadcast %9 : i1 to vector<1x256xi1>
    %11 = vector.broadcast %10 : vector<1x256xi1> to vector<1x256xi1>
    %12 = arith.xori %8, %11 : vector<1x256xi1>
    %13 = arith.andi %12, %6 : vector<1x256xi1>
    %14 = vector.broadcast %2 : i32 to vector<1x256xi32>
    %15 = arith.addi %4, %14 : vector<1x256xi32>
    %16 = arith.select %13, %15, %4 : vector<1x256xi1>, vector<1x256xi32>
    %c32_i32 = arith.constant 32 : i32
    %17 = vector.broadcast %c32_i32 : i32 to vector<1x256xi32>
    %18 = arith.cmpi sge, %16, %17 : vector<1x256xi32>
    %c0 = arith.constant 0 : index
    %c0_3 = arith.constant 0 : index
    %19 = vector.load %arg2[%c0, %c0_3] : memref<16x256xbf16, #tpu.memory_space<vmem>>, vector<16x256xbf16>
    %c0_4 = arith.constant 0 : index
    %c0_5 = arith.constant 0 : index
    %20 = vector.load %arg3[%c0_4, %c0_5] : memref<64x256xf32, #tpu.memory_space<vmem>>, vector<64x256xf32>
    %c0_6 = arith.constant 0 : index
    %c0_7 = arith.constant 0 : index
    %21 = vector.load %arg4[%c0_6, %c0_7] : memref<1x256xf32, #tpu.memory_space<vmem>>, vector<1x256xf32>
    %c0_8 = arith.constant 0 : index
    %c0_9 = arith.constant 0 : index
    %22 = vector.load %arg1[%c0_8, %c0_9] : memref<16x16xbf16, #tpu.memory_space<vmem>>, vector<16x16xbf16>
    %cst = arith.constant dense<0.000000e+00> : vector<16x256xf32>
    %23 = tpu.matmul %22, %19, %cst {dimension_numbers = #tpu.dot_dimension_numbers<[1], [0], [0], [1], [0, 0, 1, 1], [], []>} : vector<16x16xbf16>, vector<16x256xbf16>, vector<16x256xf32> -> vector<16x256xf32>
    %24 = vector.broadcast %21 : vector<1x256xf32> to vector<16x256xf32>
    %25 = arith.addf %23, %24 : vector<16x256xf32>
    %c0_10 = arith.constant 0 : index
    %c0_11 = arith.constant 0 : index
    %26 = vector.load %arg11[%c0_10, %c0_11] : memref<16x256xf32, #tpu.memory_space<vmem>>, vector<16x256xf32>
    tpu.vector_store %arg11[%c0_10, %c0_11], %25 {strides = array<i32>} : memref<16x256xf32, #tpu.memory_space<vmem>>, vector<16x256xf32>,
    %cst_12 = arith.constant 0.000000e+00 : f32
    %27 = vector.broadcast %cst_12 : f32 to vector<2x64xf32>
    %c0_i32_13 = arith.constant 0 : i32
    %c2_i32 = arith.constant 2 : i32
    %28 = arith.muli %c0_i32_13, %c2_i32 : i32
    %29 = arith.index_cast %28 : i32 to index
    %c0_14 = arith.constant 0 : index
    %30 = vector.load %arg11[%29, %c0_14] : memref<16x256xf32, #tpu.memory_space<vmem>>, vector<2x256xf32>
    %c7_i32 = arith.constant 7 : i32
    %31 = arith.subi %c7_i32, %c0_i32_13 : i32
    %c2_i32_15 = arith.constant 2 : i32
    %32 = arith.muli %31, %c2_i32_15 : i32
    %33 = arith.index_cast %32 : i32 to index
    %c0_16 = arith.constant 0 : index
    %34 = vector.load %arg11[%33, %c0_16] : memref<16x256xf32, #tpu.memory_space<vmem>>, vector<2x256xf32>
    %cst_17 = arith.constant dense<0.000000e+00> : vector<2x256xf32>
    %35 = tpu.matmul %27, %20, %cst_17 {dimension_numbers = #tpu.dot_dimension_numbers<[1], [0], [0], [1], [0, 0, 1, 1], [], []>} : vector<2x64xf32>, vector<64x256xf32>, vector<2x256xf32> -> vector<2x256xf32>
    %36 = vector.shape_cast %18 : vector<1x256xi1> to vector<1x256xi1>
    %37 = vector.broadcast %36 : vector<1x256xi1> to vector<2x256xi1>
    %38 = arith.select %37, %34, %30 : vector<2x256xi1>, vector<2x256xf32>
    %39 = arith.addf %38, %35 : vector<2x256xf32>
    %40 = vector.extract_strided_slice %39 {offsets = [0, 0], sizes = [2, 128], strides = [1, 1]} : vector<2x256xf32> to vector<2x128xf32>
    %41 = arith.negf %40 : vector<2x128xf32>
    %42 = math.exp %41 : vector<2x128xf32>
    %cst_18 = arith.constant 1.000000e+00 : f32
    %43 = vector.broadcast %cst_18 : f32 to vector<2x128xf32>
    %44 = arith.addf %43, %42 : vector<2x128xf32>
    %45 = arith.divf %43, %44 : vector<2x128xf32>
    %46 = vector.extract_strided_slice %39 {offsets = [0, 128], sizes = [2, 64], strides = [1, 1]} : vector<2x256xf32> to vector<2x64xf32>
    %47 = math.tanh %46 : vector<2x64xf32>
    %48 = vector.extract_strided_slice %39 {offsets = [0, 192], sizes = [2, 64], strides = [1, 1]} : vector<2x256xf32> to vector<2x64xf32>
    %49 = arith.negf %48 : vector<2x64xf32>
    %50 = math.exp %49 : vector<2x64xf32>
    %cst_19 = arith.constant 1.000000e+00 : f32
    %51 = vector.broadcast %cst_19 : f32 to vector<2x64xf32>
    %52 = arith.addf %51, %50 : vector<2x64xf32>
    %53 = arith.divf %51, %52 : vector<2x64xf32>
    %54 = vector.extract_strided_slice %45 {offsets = [0, 0], sizes = [2, 64], strides = [1, 1]} : vector<2x128xf32> to vector<2x64xf32>
    %55 = vector.extract_strided_slice %45 {offsets = [0, 64], sizes = [2, 64], strides = [1, 1]} : vector<2x128xf32> to vector<2x64xf32>
    %56 = arith.mulf %55, %27 : vector<2x64xf32>
    %57 = arith.mulf %54, %47 : vector<2x64xf32>
    %58 = arith.addf %56, %57 : vector<2x64xf32>
    %59 = math.tanh %58 : vector<2x64xf32>
    %60 = arith.mulf %53, %59 : vector<2x64xf32>
    %61 = vector.extract_strided_slice %60 {offsets = [0, 0], sizes = [2, 32], strides = [1, 1]} : vector<2x64xf32> to vector<2x32xf32>
    %62 = arith.truncf %61 : vector<2x32xf32> to vector<2x32xbf16>
    %c2_i32_20 = arith.constant 2 : i32
    %63 = arith.muli %c0_i32_13, %c2_i32_20 : i32
    %64 = arith.index_cast %63 : i32 to index
    %c0_21 = arith.constant 0 : index
    %65 = vector.load %arg12[%64, %c0_21] : memref<16x64xbf16, #tpu.memory_space<vmem>>, vector<2x32xbf16>
    tpu.vector_store %arg12[%64, %c0_21], %62 {strides = array<i32>} : memref<16x64xbf16, #tpu.memory_space<vmem>>, vector<2x32xbf16>,
    %66 = vector.extract_strided_slice %60 {offsets = [0, 32], sizes = [2, 32], strides = [1, 1]} : vector<2x64xf32> to vector<2x32xf32>
    %67 = arith.truncf %66 : vector<2x32xf32> to vector<2x32xbf16>
    %c7_i32_22 = arith.constant 7 : i32
    %68 = arith.subi %c7_i32_22, %c0_i32_13 : i32
    %c2_i32_23 = arith.constant 2 : i32
    %69 = arith.muli %68, %c2_i32_23 : i32
    %70 = arith.index_cast %69 : i32 to index
    %c32 = arith.constant 32 : index
    %71 = vector.load %arg12[%70, %c32] : memref<16x64xbf16, #tpu.memory_space<vmem>>, vector<2x32xbf16>
    tpu.vector_store %arg12[%70, %c32], %67 {strides = array<i32>} : memref<16x64xbf16, #tpu.memory_space<vmem>>, vector<2x32xbf16>,
    %c1_i32_24 = arith.constant 1 : i32
    %c2_i32_25 = arith.constant 2 : i32
    %72 = arith.muli %c1_i32_24, %c2_i32_25 : i32
    %73 = arith.index_cast %72 : i32 to index
    %c0_26 = arith.constant 0 : index
    %74 = vector.load %arg11[%73, %c0_26] : memref<16x256xf32, #tpu.memory_space<vmem>>, vector<2x256xf32>
    %c7_i32_27 = arith.constant 7 : i32
    %75 = arith.subi %c7_i32_27, %c1_i32_24 : i32
    %c2_i32_28 = arith.constant 2 : i32
    %76 = arith.muli %75, %c2_i32_28 : i32
    %77 = arith.index_cast %76 : i32 to index
    %c0_29 = arith.constant 0 : index
    %78 = vector.load %arg11[%77, %c0_29] : memref<16x256xf32, #tpu.memory_space<vmem>>, vector<2x256xf32>
    %cst_30 = arith.constant dense<0.000000e+00> : vector<2x256xf32>
    %79 = tpu.matmul %60, %20, %cst_30 {dimension_numbers = #tpu.dot_dimension_numbers<[1], [0], [0], [1], [0, 0, 1, 1], [], []>} : vector<2x64xf32>, vector<64x256xf32>, vector<2x256xf32> -> vector<2x256xf32>
    %80 = vector.shape_cast %18 : vector<1x256xi1> to vector<1x256xi1>
    %81 = vector.broadcast %80 : vector<1x256xi1> to vector<2x256xi1>
    %82 = arith.select %81, %78, %74 : vector<2x256xi1>, vector<2x256xf32>
    %83 = arith.addf %82, %79 : vector<2x256xf32>
    %84 = vector.extract_strided_slice %83 {offsets = [0, 0], sizes = [2, 128], strides = [1, 1]} : vector<2x256xf32> to vector<2x128xf32>
    %85 = arith.negf %84 : vector<2x128xf32>
    %86 = math.exp %85 : vector<2x128xf32>
    %cst_31 = arith.constant 1.000000e+00 : f32
    %87 = vector.broadcast %cst_31 : f32 to vector<2x128xf32>
    %88 = arith.addf %87, %86 : vector<2x128xf32>
    %89 = arith.divf %87, %88 : vector<2x128xf32>
    %90 = vector.extract_strided_slice %83 {offsets = [0, 128], sizes = [2, 64], strides = [1, 1]} : vector<2x256xf32> to vector<2x64xf32>
    %91 = math.tanh %90 : vector<2x64xf32>
    %92 = vector.extract_strided_slice %83 {offsets = [0, 192], sizes = [2, 64], strides = [1, 1]} : vector<2x256xf32> to vector<2x64xf32>
    %93 = arith.negf %92 : vector<2x64xf32>
    %94 = math.exp %93 : vector<2x64xf32>
    %cst_32 = arith.constant 1.000000e+00 : f32
    %95 = vector.broadcast %cst_32 : f32 to vector<2x64xf32>
    %96 = arith.addf %95, %94 : vector<2x64xf32>
    %97 = arith.divf %95, %96 : vector<2x64xf32>
    %98 = vector.extract_strided_slice %89 {offsets = [0, 0], sizes = [2, 64], strides = [1, 1]} : vector<2x128xf32> to vector<2x64xf32>
    %99 = vector.extract_strided_slice %89 {offsets = [0, 64], sizes = [2, 64], strides = [1, 1]} : vector<2x128xf32> to vector<2x64xf32>
    %100 = arith.mulf %99, %58 : vector<2x64xf32>
    %101 = arith.mulf %98, %91 : vector<2x64xf32>
    %102 = arith.addf %100, %101 : vector<2x64xf32>
    %103 = math.tanh %102 : vector<2x64xf32>
    %104 = arith.mulf %97, %103 : vector<2x64xf32>
    %105 = vector.extract_strided_slice %104 {offsets = [0, 0], sizes = [2, 32], strides = [1, 1]} : vector<2x64xf32> to vector<2x32xf32>
    %106 = arith.truncf %105 : vector<2x32xf32> to vector<2x32xbf16>
    %c2_i32_33 = arith.constant 2 : i32
    %107 = arith.muli %c1_i32_24, %c2_i32_33 : i32
    %108 = arith.index_cast %107 : i32 to index
    %c0_34 = arith.constant 0 : index
    %109 = vector.load %arg12[%108, %c0_34] : memref<16x64xbf16, #tpu.memory_space<vmem>>, vector<2x32xbf16>
    tpu.vector_store %arg12[%108, %c0_34], %106 {strides = array<i32>} : memref<16x64xbf16, #tpu.memory_space<vmem>>, vector<2x32xbf16>,
    %110 = vector.extract_strided_slice %104 {offsets = [0, 32], sizes = [2, 32], strides = [1, 1]} : vector<2x64xf32> to vector<2x32xf32>
    %111 = arith.truncf %110 : vector<2x32xf32> to vector<2x32xbf16>
    %c7_i32_35 = arith.constant 7 : i32
    %112 = arith.subi %c7_i32_35, %c1_i32_24 : i32
    %c2_i32_36 = arith.constant 2 : i32
    %113 = arith.muli %112, %c2_i32_36 : i32
    %114 = arith.index_cast %113 : i32 to index
    %c32_37 = arith.constant 32 : index
    %115 = vector.load %arg12[%114, %c32_37] : memref<16x64xbf16, #tpu.memory_space<vmem>>, vector<2x32xbf16>
    tpu.vector_store %arg12[%114, %c32_37], %111 {strides = array<i32>} : memref<16x64xbf16, #tpu.memory_space<vmem>>, vector<2x32xbf16>,
    %c2_i32_38 = arith.constant 2 : i32
    %c2_i32_39 = arith.constant 2 : i32
    %116 = arith.muli %c2_i32_38, %c2_i32_39 : i32
    %117 = arith.index_cast %116 : i32 to index
    %c0_40 = arith.constant 0 : index
    %118 = vector.load %arg11[%117, %c0_40] : memref<16x256xf32, #tpu.memory_space<vmem>>, vector<2x256xf32>
    %c7_i32_41 = arith.constant 7 : i32
    %119 = arith.subi %c7_i32_41, %c2_i32_38 : i32
    %c2_i32_42 = arith.constant 2 : i32
    %120 = arith.muli %119, %c2_i32_42 : i32
    %121 = arith.index_cast %120 : i32 to index
    %c0_43 = arith.constant 0 : index
    %122 = vector.load %arg11[%121, %c0_43] : memref<16x256xf32, #tpu.memory_space<vmem>>, vector<2x256xf32>
    %cst_44 = arith.constant dense<0.000000e+00> : vector<2x256xf32>
    %123 = tpu.matmul %104, %20, %cst_44 {dimension_numbers = #tpu.dot_dimension_numbers<[1], [0], [0], [1], [0, 0, 1, 1], [], []>} : vector<2x64xf32>, vector<64x256xf32>, vector<2x256xf32> -> vector<2x256xf32>
    %124 = vector.shape_cast %18 : vector<1x256xi1> to vector<1x256xi1>
    %125 = vector.broadcast %124 : vector<1x256xi1> to vector<2x256xi1>
    %126 = arith.select %125, %122, %118 : vector<2x256xi1>, vector<2x256xf32>
    %127 = arith.addf %126, %123 : vector<2x256xf32>
    %128 = vector.extract_strided_slice %127 {offsets = [0, 0], sizes = [2, 128], strides = [1, 1]} : vector<2x256xf32> to vector<2x128xf32>
    %129 = arith.negf %128 : vector<2x128xf32>
    %130 = math.exp %129 : vector<2x128xf32>
    %cst_45 = arith.constant 1.000000e+00 : f32
    %131 = vector.broadcast %cst_45 : f32 to vector<2x128xf32>
    %132 = arith.addf %131, %130 : vector<2x128xf32>
    %133 = arith.divf %131, %132 : vector<2x128xf32>
    %134 = vector.extract_strided_slice %127 {offsets = [0, 128], sizes = [2, 64], strides = [1, 1]} : vector<2x256xf32> to vector<2x64xf32>
    %135 = math.tanh %134 : vector<2x64xf32>
    %136 = vector.extract_strided_slice %127 {offsets = [0, 192], sizes = [2, 64], strides = [1, 1]} : vector<2x256xf32> to vector<2x64xf32>
    %137 = arith.negf %136 : vector<2x64xf32>
    %138 = math.exp %137 : vector<2x64xf32>
    %cst_46 = arith.constant 1.000000e+00 : f32
    %139 = vector.broadcast %cst_46 : f32 to vector<2x64xf32>
    %140 = arith.addf %139, %138 : vector<2x64xf32>
    %141 = arith.divf %139, %140 : vector<2x64xf32>
    %142 = vector.extract_strided_slice %133 {offsets = [0, 0], sizes = [2, 64], strides = [1, 1]} : vector<2x128xf32> to vector<2x64xf32>
    %143 = vector.extract_strided_slice %133 {offsets = [0, 64], sizes = [2, 64], strides = [1, 1]} : vector<2x128xf32> to vector<2x64xf32>
    %144 = arith.mulf %143, %102 : vector<2x64xf32>
    %145 = arith.mulf %142, %135 : vector<2x64xf32>
    %146 = arith.addf %144, %145 : vector<2x64xf32>
    %147 = math.tanh %146 : vector<2x64xf32>
    %148 = arith.mulf %141, %147 : vector<2x64xf32>
    %149 = vector.extract_strided_slice %148 {offsets = [0, 0], sizes = [2, 32], strides = [1, 1]} : vector<2x64xf32> to vector<2x32xf32>
    %150 = arith.truncf %149 : vector<2x32xf32> to vector<2x32xbf16>
    %c2_i32_47 = arith.constant 2 : i32
    %151 = arith.muli %c2_i32_38, %c2_i32_47 : i32
    %152 = arith.index_cast %151 : i32 to index
    %c0_48 = arith.constant 0 : index
    %153 = vector.load %arg12[%152, %c0_48] : memref<16x64xbf16, #tpu.memory_space<vmem>>, vector<2x32xbf16>
    tpu.vector_store %arg12[%152, %c0_48], %150 {strides = array<i32>} : memref<16x64xbf16, #tpu.memory_space<vmem>>, vector<2x32xbf16>,
    %154 = vector.extract_strided_slice %148 {offsets = [0, 32], sizes = [2, 32], strides = [1, 1]} : vector<2x64xf32> to vector<2x32xf32>
    %155 = arith.truncf %154 : vector<2x32xf32> to vector<2x32xbf16>
    %c7_i32_49 = arith.constant 7 : i32
    %156 = arith.subi %c7_i32_49, %c2_i32_38 : i32
    %c2_i32_50 = arith.constant 2 : i32
    %157 = arith.muli %156, %c2_i32_50 : i32
    %158 = arith.index_cast %157 : i32 to index
    %c32_51 = arith.constant 32 : index
    %159 = vector.load %arg12[%158, %c32_51] : memref<16x64xbf16, #tpu.memory_space<vmem>>, vector<2x32xbf16>
    tpu.vector_store %arg12[%158, %c32_51], %155 {strides = array<i32>} : memref<16x64xbf16, #tpu.memory_space<vmem>>, vector<2x32xbf16>,
    %c3_i32 = arith.constant 3 : i32
    %c2_i32_52 = arith.constant 2 : i32
    %160 = arith.muli %c3_i32, %c2_i32_52 : i32
    %161 = arith.index_cast %160 : i32 to index
    %c0_53 = arith.constant 0 : index
    %162 = vector.load %arg11[%161, %c0_53] : memref<16x256xf32, #tpu.memory_space<vmem>>, vector<2x256xf32>
    %c7_i32_54 = arith.constant 7 : i32
    %163 = arith.subi %c7_i32_54, %c3_i32 : i32
    %c2_i32_55 = arith.constant 2 : i32
    %164 = arith.muli %163, %c2_i32_55 : i32
    %165 = arith.index_cast %164 : i32 to index
    %c0_56 = arith.constant 0 : index
    %166 = vector.load %arg11[%165, %c0_56] : memref<16x256xf32, #tpu.memory_space<vmem>>, vector<2x256xf32>
    %cst_57 = arith.constant dense<0.000000e+00> : vector<2x256xf32>
    %167 = tpu.matmul %148, %20, %cst_57 {dimension_numbers = #tpu.dot_dimension_numbers<[1], [0], [0], [1], [0, 0, 1, 1], [], []>} : vector<2x64xf32>, vector<64x256xf32>, vector<2x256xf32> -> vector<2x256xf32>
    %168 = vector.shape_cast %18 : vector<1x256xi1> to vector<1x256xi1>
    %169 = vector.broadcast %168 : vector<1x256xi1> to vector<2x256xi1>
    %170 = arith.select %169, %166, %162 : vector<2x256xi1>, vector<2x256xf32>
    %171 = arith.addf %170, %167 : vector<2x256xf32>
    %172 = vector.extract_strided_slice %171 {offsets = [0, 0], sizes = [2, 128], strides = [1, 1]} : vector<2x256xf32> to vector<2x128xf32>
    %173 = arith.negf %172 : vector<2x128xf32>
    %174 = math.exp %173 : vector<2x128xf32>
    %cst_58 = arith.constant 1.000000e+00 : f32
    %175 = vector.broadcast %cst_58 : f32 to vector<2x128xf32>
    %176 = arith.addf %175, %174 : vector<2x128xf32>
    %177 = arith.divf %175, %176 : vector<2x128xf32>
    %178 = vector.extract_strided_slice %171 {offsets = [0, 128], sizes = [2, 64], strides = [1, 1]} : vector<2x256xf32> to vector<2x64xf32>
    %179 = math.tanh %178 : vector<2x64xf32>
    %180 = vector.extract_strided_slice %171 {offsets = [0, 192], sizes = [2, 64], strides = [1, 1]} : vector<2x256xf32> to vector<2x64xf32>
    %181 = arith.negf %180 : vector<2x64xf32>
    %182 = math.exp %181 : vector<2x64xf32>
    %cst_59 = arith.constant 1.000000e+00 : f32
    %183 = vector.broadcast %cst_59 : f32 to vector<2x64xf32>
    %184 = arith.addf %183, %182 : vector<2x64xf32>
    %185 = arith.divf %183, %184 : vector<2x64xf32>
    %186 = vector.extract_strided_slice %177 {offsets = [0, 0], sizes = [2, 64], strides = [1, 1]} : vector<2x128xf32> to vector<2x64xf32>
    %187 = vector.extract_strided_slice %177 {offsets = [0, 64], sizes = [2, 64], strides = [1, 1]} : vector<2x128xf32> to vector<2x64xf32>
    %188 = arith.mulf %187, %146 : vector<2x64xf32>
    %189 = arith.mulf %186, %179 : vector<2x64xf32>
    %190 = arith.addf %188, %189 : vector<2x64xf32>
    %191 = math.tanh %190 : vector<2x64xf32>
    %192 = arith.mulf %185, %191 : vector<2x64xf32>
    %193 = vector.extract_strided_slice %192 {offsets = [0, 0], sizes = [2, 32], strides = [1, 1]} : vector<2x64xf32> to vector<2x32xf32>
    %194 = arith.truncf %193 : vector<2x32xf32> to vector<2x32xbf16>
    %c2_i32_60 = arith.constant 2 : i32
    %195 = arith.muli %c3_i32, %c2_i32_60 : i32
    %196 = arith.index_cast %195 : i32 to index
    %c0_61 = arith.constant 0 : index
    %197 = vector.load %arg12[%196, %c0_61] : memref<16x64xbf16, #tpu.memory_space<vmem>>, vector<2x32xbf16>
    tpu.vector_store %arg12[%196, %c0_61], %194 {strides = array<i32>} : memref<16x64xbf16, #tpu.memory_space<vmem>>, vector<2x32xbf16>,
    %198 = vector.extract_strided_slice %192 {offsets = [0, 32], sizes = [2, 32], strides = [1, 1]} : vector<2x64xf32> to vector<2x32xf32>
    %199 = arith.truncf %198 : vector<2x32xf32> to vector<2x32xbf16>
    %c7_i32_62 = arith.constant 7 : i32
    %200 = arith.subi %c7_i32_62, %c3_i32 : i32
    %c2_i32_63 = arith.constant 2 : i32
    %201 = arith.muli %200, %c2_i32_63 : i32
    %202 = arith.index_cast %201 : i32 to index
    %c32_64 = arith.constant 32 : index
    %203 = vector.load %arg12[%202, %c32_64] : memref<16x64xbf16, #tpu.memory_space<vmem>>, vector<2x32xbf16>
    tpu.vector_store %arg12[%202, %c32_64], %199 {strides = array<i32>} : memref<16x64xbf16, #tpu.memory_space<vmem>>, vector<2x32xbf16>,
    %c4_i32 = arith.constant 4 : i32
    %c2_i32_65 = arith.constant 2 : i32
    %204 = arith.muli %c4_i32, %c2_i32_65 : i32
    %205 = arith.index_cast %204 : i32 to index
    %c0_66 = arith.constant 0 : index
    %206 = vector.load %arg11[%205, %c0_66] : memref<16x256xf32, #tpu.memory_space<vmem>>, vector<2x256xf32>
    %c7_i32_67 = arith.constant 7 : i32
    %207 = arith.subi %c7_i32_67, %c4_i32 : i32
    %c2_i32_68 = arith.constant 2 : i32
    %208 = arith.muli %207, %c2_i32_68 : i32
    %209 = arith.index_cast %208 : i32 to index
    %c0_69 = arith.constant 0 : index
    %210 = vector.load %arg11[%209, %c0_69] : memref<16x256xf32, #tpu.memory_space<vmem>>, vector<2x256xf32>
    %cst_70 = arith.constant dense<0.000000e+00> : vector<2x256xf32>
    %211 = tpu.matmul %192, %20, %cst_70 {dimension_numbers = #tpu.dot_dimension_numbers<[1], [0], [0], [1], [0, 0, 1, 1], [], []>} : vector<2x64xf32>, vector<64x256xf32>, vector<2x256xf32> -> vector<2x256xf32>
    %212 = vector.shape_cast %18 : vector<1x256xi1> to vector<1x256xi1>
    %213 = vector.broadcast %212 : vector<1x256xi1> to vector<2x256xi1>
    %214 = arith.select %213, %210, %206 : vector<2x256xi1>, vector<2x256xf32>
    %215 = arith.addf %214, %211 : vector<2x256xf32>
    %216 = vector.extract_strided_slice %215 {offsets = [0, 0], sizes = [2, 128], strides = [1, 1]} : vector<2x256xf32> to vector<2x128xf32>
    %217 = arith.negf %216 : vector<2x128xf32>
    %218 = math.exp %217 : vector<2x128xf32>
    %cst_71 = arith.constant 1.000000e+00 : f32
    %219 = vector.broadcast %cst_71 : f32 to vector<2x128xf32>
    %220 = arith.addf %219, %218 : vector<2x128xf32>
    %221 = arith.divf %219, %220 : vector<2x128xf32>
    %222 = vector.extract_strided_slice %215 {offsets = [0, 128], sizes = [2, 64], strides = [1, 1]} : vector<2x256xf32> to vector<2x64xf32>
    %223 = math.tanh %222 : vector<2x64xf32>
    %224 = vector.extract_strided_slice %215 {offsets = [0, 192], sizes = [2, 64], strides = [1, 1]} : vector<2x256xf32> to vector<2x64xf32>
    %225 = arith.negf %224 : vector<2x64xf32>
    %226 = math.exp %225 : vector<2x64xf32>
    %cst_72 = arith.constant 1.000000e+00 : f32
    %227 = vector.broadcast %cst_72 : f32 to vector<2x64xf32>
    %228 = arith.addf %227, %226 : vector<2x64xf32>
    %229 = arith.divf %227, %228 : vector<2x64xf32>
    %230 = vector.extract_strided_slice %221 {offsets = [0, 0], sizes = [2, 64], strides = [1, 1]} : vector<2x128xf32> to vector<2x64xf32>
    %231 = vector.extract_strided_slice %221 {offsets = [0, 64], sizes = [2, 64], strides = [1, 1]} : vector<2x128xf32> to vector<2x64xf32>
    %232 = arith.mulf %231, %190 : vector<2x64xf32>
    %233 = arith.mulf %230, %223 : vector<2x64xf32>
    %234 = arith.addf %232, %233 : vector<2x64xf32>
    %235 = math.tanh %234 : vector<2x64xf32>
    %236 = arith.mulf %229, %235 : vector<2x64xf32>
    %237 = vector.extract_strided_slice %236 {offsets = [0, 0], sizes = [2, 32], strides = [1, 1]} : vector<2x64xf32> to vector<2x32xf32>
    %238 = arith.truncf %237 : vector<2x32xf32> to vector<2x32xbf16>
    %c2_i32_73 = arith.constant 2 : i32
    %239 = arith.muli %c4_i32, %c2_i32_73 : i32
    %240 = arith.index_cast %239 : i32 to index
    %c0_74 = arith.constant 0 : index
    %241 = vector.load %arg12[%240, %c0_74] : memref<16x64xbf16, #tpu.memory_space<vmem>>, vector<2x32xbf16>
    tpu.vector_store %arg12[%240, %c0_74], %238 {strides = array<i32>} : memref<16x64xbf16, #tpu.memory_space<vmem>>, vector<2x32xbf16>,
    %242 = vector.extract_strided_slice %236 {offsets = [0, 32], sizes = [2, 32], strides = [1, 1]} : vector<2x64xf32> to vector<2x32xf32>
    %243 = arith.truncf %242 : vector<2x32xf32> to vector<2x32xbf16>
    %c7_i32_75 = arith.constant 7 : i32
    %244 = arith.subi %c7_i32_75, %c4_i32 : i32
    %c2_i32_76 = arith.constant 2 : i32
    %245 = arith.muli %244, %c2_i32_76 : i32
    %246 = arith.index_cast %245 : i32 to index
    %c32_77 = arith.constant 32 : index
    %247 = vector.load %arg12[%246, %c32_77] : memref<16x64xbf16, #tpu.memory_space<vmem>>, vector<2x32xbf16>
    tpu.vector_store %arg12[%246, %c32_77], %243 {strides = array<i32>} : memref<16x64xbf16, #tpu.memory_space<vmem>>, vector<2x32xbf16>,
    %c5_i32 = arith.constant 5 : i32
    %c2_i32_78 = arith.constant 2 : i32
    %248 = arith.muli %c5_i32, %c2_i32_78 : i32
    %249 = arith.index_cast %248 : i32 to index
    %c0_79 = arith.constant 0 : index
    %250 = vector.load %arg11[%249, %c0_79] : memref<16x256xf32, #tpu.memory_space<vmem>>, vector<2x256xf32>
    %c7_i32_80 = arith.constant 7 : i32
    %251 = arith.subi %c7_i32_80, %c5_i32 : i32
    %c2_i32_81 = arith.constant 2 : i32
    %252 = arith.muli %251, %c2_i32_81 : i32
    %253 = arith.index_cast %252 : i32 to index
    %c0_82 = arith.constant 0 : index
    %254 = vector.load %arg11[%253, %c0_82] : memref<16x256xf32, #tpu.memory_space<vmem>>, vector<2x256xf32>
    %cst_83 = arith.constant dense<0.000000e+00> : vector<2x256xf32>
    %255 = tpu.matmul %236, %20, %cst_83 {dimension_numbers = #tpu.dot_dimension_numbers<[1], [0], [0], [1], [0, 0, 1, 1], [], []>} : vector<2x64xf32>, vector<64x256xf32>, vector<2x256xf32> -> vector<2x256xf32>
    %256 = vector.shape_cast %18 : vector<1x256xi1> to vector<1x256xi1>
    %257 = vector.broadcast %256 : vector<1x256xi1> to vector<2x256xi1>
    %258 = arith.select %257, %254, %250 : vector<2x256xi1>, vector<2x256xf32>
    %259 = arith.addf %258, %255 : vector<2x256xf32>
    %260 = vector.extract_strided_slice %259 {offsets = [0, 0], sizes = [2, 128], strides = [1, 1]} : vector<2x256xf32> to vector<2x128xf32>
    %261 = arith.negf %260 : vector<2x128xf32>
    %262 = math.exp %261 : vector<2x128xf32>
    %cst_84 = arith.constant 1.000000e+00 : f32
    %263 = vector.broadcast %cst_84 : f32 to vector<2x128xf32>
    %264 = arith.addf %263, %262 : vector<2x128xf32>
    %265 = arith.divf %263, %264 : vector<2x128xf32>
    %266 = vector.extract_strided_slice %259 {offsets = [0, 128], sizes = [2, 64], strides = [1, 1]} : vector<2x256xf32> to vector<2x64xf32>
    %267 = math.tanh %266 : vector<2x64xf32>
    %268 = vector.extract_strided_slice %259 {offsets = [0, 192], sizes = [2, 64], strides = [1, 1]} : vector<2x256xf32> to vector<2x64xf32>
    %269 = arith.negf %268 : vector<2x64xf32>
    %270 = math.exp %269 : vector<2x64xf32>
    %cst_85 = arith.constant 1.000000e+00 : f32
    %271 = vector.broadcast %cst_85 : f32 to vector<2x64xf32>
    %272 = arith.addf %271, %270 : vector<2x64xf32>
    %273 = arith.divf %271, %272 : vector<2x64xf32>
    %274 = vector.extract_strided_slice %265 {offsets = [0, 0], sizes = [2, 64], strides = [1, 1]} : vector<2x128xf32> to vector<2x64xf32>
    %275 = vector.extract_strided_slice %265 {offsets = [0, 64], sizes = [2, 64], strides = [1, 1]} : vector<2x128xf32> to vector<2x64xf32>
    %276 = arith.mulf %275, %234 : vector<2x64xf32>
    %277 = arith.mulf %274, %267 : vector<2x64xf32>
    %278 = arith.addf %276, %277 : vector<2x64xf32>
    %279 = math.tanh %278 : vector<2x64xf32>
    %280 = arith.mulf %273, %279 : vector<2x64xf32>
    %281 = vector.extract_strided_slice %280 {offsets = [0, 0], sizes = [2, 32], strides = [1, 1]} : vector<2x64xf32> to vector<2x32xf32>
    %282 = arith.truncf %281 : vector<2x32xf32> to vector<2x32xbf16>
    %c2_i32_86 = arith.constant 2 : i32
    %283 = arith.muli %c5_i32, %c2_i32_86 : i32
    %284 = arith.index_cast %283 : i32 to index
    %c0_87 = arith.constant 0 : index
    %285 = vector.load %arg12[%284, %c0_87] : memref<16x64xbf16, #tpu.memory_space<vmem>>, vector<2x32xbf16>
    tpu.vector_store %arg12[%284, %c0_87], %282 {strides = array<i32>} : memref<16x64xbf16, #tpu.memory_space<vmem>>, vector<2x32xbf16>,
    %286 = vector.extract_strided_slice %280 {offsets = [0, 32], sizes = [2, 32], strides = [1, 1]} : vector<2x64xf32> to vector<2x32xf32>
    %287 = arith.truncf %286 : vector<2x32xf32> to vector<2x32xbf16>
    %c7_i32_88 = arith.constant 7 : i32
    %288 = arith.subi %c7_i32_88, %c5_i32 : i32
    %c2_i32_89 = arith.constant 2 : i32
    %289 = arith.muli %288, %c2_i32_89 : i32
    %290 = arith.index_cast %289 : i32 to index
    %c32_90 = arith.constant 32 : index
    %291 = vector.load %arg12[%290, %c32_90] : memref<16x64xbf16, #tpu.memory_space<vmem>>, vector<2x32xbf16>
    tpu.vector_store %arg12[%290, %c32_90], %287 {strides = array<i32>} : memref<16x64xbf16, #tpu.memory_space<vmem>>, vector<2x32xbf16>,
    %c6_i32 = arith.constant 6 : i32
    %c2_i32_91 = arith.constant 2 : i32
    %292 = arith.muli %c6_i32, %c2_i32_91 : i32
    %293 = arith.index_cast %292 : i32 to index
    %c0_92 = arith.constant 0 : index
    %294 = vector.load %arg11[%293, %c0_92] : memref<16x256xf32, #tpu.memory_space<vmem>>, vector<2x256xf32>
    %c7_i32_93 = arith.constant 7 : i32
    %295 = arith.subi %c7_i32_93, %c6_i32 : i32
    %c2_i32_94 = arith.constant 2 : i32
    %296 = arith.muli %295, %c2_i32_94 : i32
    %297 = arith.index_cast %296 : i32 to index
    %c0_95 = arith.constant 0 : index
    %298 = vector.load %arg11[%297, %c0_95] : memref<16x256xf32, #tpu.memory_space<vmem>>, vector<2x256xf32>
    %cst_96 = arith.constant dense<0.000000e+00> : vector<2x256xf32>
    %299 = tpu.matmul %280, %20, %cst_96 {dimension_numbers = #tpu.dot_dimension_numbers<[1], [0], [0], [1], [0, 0, 1, 1], [], []>} : vector<2x64xf32>, vector<64x256xf32>, vector<2x256xf32> -> vector<2x256xf32>
    %300 = vector.shape_cast %18 : vector<1x256xi1> to vector<1x256xi1>
    %301 = vector.broadcast %300 : vector<1x256xi1> to vector<2x256xi1>
    %302 = arith.select %301, %298, %294 : vector<2x256xi1>, vector<2x256xf32>
    %303 = arith.addf %302, %299 : vector<2x256xf32>
    %304 = vector.extract_strided_slice %303 {offsets = [0, 0], sizes = [2, 128], strides = [1, 1]} : vector<2x256xf32> to vector<2x128xf32>
    %305 = arith.negf %304 : vector<2x128xf32>
    %306 = math.exp %305 : vector<2x128xf32>
    %cst_97 = arith.constant 1.000000e+00 : f32
    %307 = vector.broadcast %cst_97 : f32 to vector<2x128xf32>
    %308 = arith.addf %307, %306 : vector<2x128xf32>
    %309 = arith.divf %307, %308 : vector<2x128xf32>
    %310 = vector.extract_strided_slice %303 {offsets = [0, 128], sizes = [2, 64], strides = [1, 1]} : vector<2x256xf32> to vector<2x64xf32>
    %311 = math.tanh %310 : vector<2x64xf32>
    %312 = vector.extract_strided_slice %303 {offsets = [0, 192], sizes = [2, 64], strides = [1, 1]} : vector<2x256xf32> to vector<2x64xf32>
    %313 = arith.negf %312 : vector<2x64xf32>
    %314 = math.exp %313 : vector<2x64xf32>
    %cst_98 = arith.constant 1.000000e+00 : f32
    %315 = vector.broadcast %cst_98 : f32 to vector<2x64xf32>
    %316 = arith.addf %315, %314 : vector<2x64xf32>
    %317 = arith.divf %315, %316 : vector<2x64xf32>
    %318 = vector.extract_strided_slice %309 {offsets = [0, 0], sizes = [2, 64], strides = [1, 1]} : vector<2x128xf32> to vector<2x64xf32>
    %319 = vector.extract_strided_slice %309 {offsets = [0, 64], sizes = [2, 64], strides = [1, 1]} : vector<2x128xf32> to vector<2x64xf32>
    %320 = arith.mulf %319, %278 : vector<2x64xf32>
    %321 = arith.mulf %318, %311 : vector<2x64xf32>
    %322 = arith.addf %320, %321 : vector<2x64xf32>
    %323 = math.tanh %322 : vector<2x64xf32>
    %324 = arith.mulf %317, %323 : vector<2x64xf32>
    %325 = vector.extract_strided_slice %324 {offsets = [0, 0], sizes = [2, 32], strides = [1, 1]} : vector<2x64xf32> to vector<2x32xf32>
    %326 = arith.truncf %325 : vector<2x32xf32> to vector<2x32xbf16>
    %c2_i32_99 = arith.constant 2 : i32
    %327 = arith.muli %c6_i32, %c2_i32_99 : i32
    %328 = arith.index_cast %327 : i32 to index
    %c0_100 = arith.constant 0 : index
    %329 = vector.load %arg12[%328, %c0_100] : memref<16x64xbf16, #tpu.memory_space<vmem>>, vector<2x32xbf16>
    tpu.vector_store %arg12[%328, %c0_100], %326 {strides = array<i32>} : memref<16x64xbf16, #tpu.memory_space<vmem>>, vector<2x32xbf16>,
    %330 = vector.extract_strided_slice %324 {offsets = [0, 32], sizes = [2, 32], strides = [1, 1]} : vector<2x64xf32> to vector<2x32xf32>
    %331 = arith.truncf %330 : vector<2x32xf32> to vector<2x32xbf16>
    %c7_i32_101 = arith.constant 7 : i32
    %332 = arith.subi %c7_i32_101, %c6_i32 : i32
    %c2_i32_102 = arith.constant 2 : i32
    %333 = arith.muli %332, %c2_i32_102 : i32
    %334 = arith.index_cast %333 : i32 to index
    %c32_103 = arith.constant 32 : index
    %335 = vector.load %arg12[%334, %c32_103] : memref<16x64xbf16, #tpu.memory_space<vmem>>, vector<2x32xbf16>
    tpu.vector_store %arg12[%334, %c32_103], %331 {strides = array<i32>} : memref<16x64xbf16, #tpu.memory_space<vmem>>, vector<2x32xbf16>,
    %c7_i32_104 = arith.constant 7 : i32
    %c2_i32_105 = arith.constant 2 : i32
    %336 = arith.muli %c7_i32_104, %c2_i32_105 : i32
    %337 = arith.index_cast %336 : i32 to index
    %c0_106 = arith.constant 0 : index
    %338 = vector.load %arg11[%337, %c0_106] : memref<16x256xf32, #tpu.memory_space<vmem>>, vector<2x256xf32>
    %c7_i32_107 = arith.constant 7 : i32
    %339 = arith.subi %c7_i32_107, %c7_i32_104 : i32
    %c2_i32_108 = arith.constant 2 : i32
    %340 = arith.muli %339, %c2_i32_108 : i32
    %341 = arith.index_cast %340 : i32 to index
    %c0_109 = arith.constant 0 : index
    %342 = vector.load %arg11[%341, %c0_109] : memref<16x256xf32, #tpu.memory_space<vmem>>, vector<2x256xf32>
    %cst_110 = arith.constant dense<0.000000e+00> : vector<2x256xf32>
    %343 = tpu.matmul %324, %20, %cst_110 {dimension_numbers = #tpu.dot_dimension_numbers<[1], [0], [0], [1], [0, 0, 1, 1], [], []>} : vector<2x64xf32>, vector<64x256xf32>, vector<2x256xf32> -> vector<2x256xf32>
    %344 = vector.shape_cast %18 : vector<1x256xi1> to vector<1x256xi1>
    %345 = vector.broadcast %344 : vector<1x256xi1> to vector<2x256xi1>
    %346 = arith.select %345, %342, %338 : vector<2x256xi1>, vector<2x256xf32>
    %347 = arith.addf %346, %343 : vector<2x256xf32>
    %348 = vector.extract_strided_slice %347 {offsets = [0, 0], sizes = [2, 128], strides = [1, 1]} : vector<2x256xf32> to vector<2x128xf32>
    %349 = arith.negf %348 : vector<2x128xf32>
    %350 = math.exp %349 : vector<2x128xf32>
    %cst_111 = arith.constant 1.000000e+00 : f32
    %351 = vector.broadcast %cst_111 : f32 to vector<2x128xf32>
    %352 = arith.addf %351, %350 : vector<2x128xf32>
    %353 = arith.divf %351, %352 : vector<2x128xf32>
    %354 = vector.extract_strided_slice %347 {offsets = [0, 128], sizes = [2, 64], strides = [1, 1]} : vector<2x256xf32> to vector<2x64xf32>
    %355 = math.tanh %354 : vector<2x64xf32>
    %356 = vector.extract_strided_slice %347 {offsets = [0, 192], sizes = [2, 64], strides = [1, 1]} : vector<2x256xf32> to vector<2x64xf32>
    %357 = arith.negf %356 : vector<2x64xf32>
    %358 = math.exp %357 : vector<2x64xf32>
    %cst_112 = arith.constant 1.000000e+00 : f32
    %359 = vector.broadcast %cst_112 : f32 to vector<2x64xf32>
    %360 = arith.addf %359, %358 : vector<2x64xf32>
    %361 = arith.divf %359, %360 : vector<2x64xf32>
    %362 = vector.extract_strided_slice %353 {offsets = [0, 0], sizes = [2, 64], strides = [1, 1]} : vector<2x128xf32> to vector<2x64xf32>
    %363 = vector.extract_strided_slice %353 {offsets = [0, 64], sizes = [2, 64], strides = [1, 1]} : vector<2x128xf32> to vector<2x64xf32>
    %364 = arith.mulf %363, %322 : vector<2x64xf32>
    %365 = arith.mulf %362, %355 : vector<2x64xf32>
    %366 = arith.addf %364, %365 : vector<2x64xf32>
    %367 = math.tanh %366 : vector<2x64xf32>
    %368 = arith.mulf %361, %367 : vector<2x64xf32>
    %369 = vector.extract_strided_slice %368 {offsets = [0, 0], sizes = [2, 32], strides = [1, 1]} : vector<2x64xf32> to vector<2x32xf32>
    %370 = arith.truncf %369 : vector<2x32xf32> to vector<2x32xbf16>
    %c2_i32_113 = arith.constant 2 : i32
    %371 = arith.muli %c7_i32_104, %c2_i32_113 : i32
    %372 = arith.index_cast %371 : i32 to index
    %c0_114 = arith.constant 0 : index
    %373 = vector.load %arg12[%372, %c0_114] : memref<16x64xbf16, #tpu.memory_space<vmem>>, vector<2x32xbf16>
    tpu.vector_store %arg12[%372, %c0_114], %370 {strides = array<i32>} : memref<16x64xbf16, #tpu.memory_space<vmem>>, vector<2x32xbf16>,
    %374 = vector.extract_strided_slice %368 {offsets = [0, 32], sizes = [2, 32], strides = [1, 1]} : vector<2x64xf32> to vector<2x32xf32>
    %375 = arith.truncf %374 : vector<2x32xf32> to vector<2x32xbf16>
    %c7_i32_115 = arith.constant 7 : i32
    %376 = arith.subi %c7_i32_115, %c7_i32_104 : i32
    %c2_i32_116 = arith.constant 2 : i32
    %377 = arith.muli %376, %c2_i32_116 : i32
    %378 = arith.index_cast %377 : i32 to index
    %c32_117 = arith.constant 32 : index
    %379 = vector.load %arg12[%378, %c32_117] : memref<16x64xbf16, #tpu.memory_space<vmem>>, vector<2x32xbf16>
    tpu.vector_store %arg12[%378, %c32_117], %375 {strides = array<i32>} : memref<16x64xbf16, #tpu.memory_space<vmem>>, vector<2x32xbf16>,
    %c8_i32 = arith.constant 8 : i32
    %380 = vector.extract_strided_slice %368 {offsets = [0, 0], sizes = [2, 32], strides = [1, 1]} : vector<2x64xf32> to vector<2x32xf32>
    %c0_118 = arith.constant 0 : index
    %c0_119 = arith.constant 0 : index
    %c0_120 = arith.constant 0 : index
    %381 = vector.load %arg9[%c0_118, %c0_119, %c0_120] : memref<4x2x32xf32, #tpu.memory_space<vmem>>, vector<1x2x32xf32>
    %382 = vector.shape_cast %381 : vector<1x2x32xf32> to vector<2x32xf32>
    %383 = vector.shape_cast %380 : vector<2x32xf32> to vector<1x2x32xf32>
    tpu.vector_store %arg9[%c0_118, %c0_119, %c0_120], %383 {strides = array<i32>} : memref<4x2x32xf32, #tpu.memory_space<vmem>>, vector<1x2x32xf32>,
    %384 = vector.extract_strided_slice %368 {offsets = [0, 32], sizes = [2, 32], strides = [1, 1]} : vector<2x64xf32> to vector<2x32xf32>
    %c1 = arith.constant 1 : index
    %c0_121 = arith.constant 0 : index
    %c0_122 = arith.constant 0 : index
    %385 = vector.load %arg9[%c1, %c0_121, %c0_122] : memref<4x2x32xf32, #tpu.memory_space<vmem>>, vector<1x2x32xf32>
    %386 = vector.shape_cast %385 : vector<1x2x32xf32> to vector<2x32xf32>
    %387 = vector.shape_cast %384 : vector<2x32xf32> to vector<1x2x32xf32>
    tpu.vector_store %arg9[%c1, %c0_121, %c0_122], %387 {strides = array<i32>} : memref<4x2x32xf32, #tpu.memory_space<vmem>>, vector<1x2x32xf32>,
    %388 = vector.extract_strided_slice %366 {offsets = [0, 0], sizes = [2, 32], strides = [1, 1]} : vector<2x64xf32> to vector<2x32xf32>
    %c0_123 = arith.constant 0 : index
    %c0_124 = arith.constant 0 : index
    %c0_125 = arith.constant 0 : index
    %389 = vector.load %arg10[%c0_123, %c0_124, %c0_125] : memref<4x2x32xf32, #tpu.memory_space<vmem>>, vector<1x2x32xf32>
    %390 = vector.shape_cast %389 : vector<1x2x32xf32> to vector<2x32xf32>
    %391 = vector.shape_cast %388 : vector<2x32xf32> to vector<1x2x32xf32>
    tpu.vector_store %arg10[%c0_123, %c0_124, %c0_125], %391 {strides = array<i32>} : memref<4x2x32xf32, #tpu.memory_space<vmem>>, vector<1x2x32xf32>,
    %392 = vector.extract_strided_slice %366 {offsets = [0, 32], sizes = [2, 32], strides = [1, 1]} : vector<2x64xf32> to vector<2x32xf32>
    %c1_126 = arith.constant 1 : index
    %c0_127 = arith.constant 0 : index
    %c0_128 = arith.constant 0 : index
    %393 = vector.load %arg10[%c1_126, %c0_127, %c0_128] : memref<4x2x32xf32, #tpu.memory_space<vmem>>, vector<1x2x32xf32>
    %394 = vector.shape_cast %393 : vector<1x2x32xf32> to vector<2x32xf32>
    %395 = vector.shape_cast %392 : vector<2x32xf32> to vector<1x2x32xf32>
    tpu.vector_store %arg10[%c1_126, %c0_127, %c0_128], %395 {strides = array<i32>} : memref<4x2x32xf32, #tpu.memory_space<vmem>>, vector<1x2x32xf32>,
    %c0_129 = arith.constant 0 : index
    %c0_130 = arith.constant 0 : index
    %396 = vector.load %arg5[%c0_129, %c0_130] : memref<64x256xbf16, #tpu.memory_space<vmem>>, vector<64x256xbf16>
    %c0_131 = arith.constant 0 : index
    %c0_132 = arith.constant 0 : index
    %397 = vector.load %arg6[%c0_131, %c0_132] : memref<64x256xf32, #tpu.memory_space<vmem>>, vector<64x256xf32>
    %c0_133 = arith.constant 0 : index
    %c0_134 = arith.constant 0 : index
    %398 = vector.load %arg7[%c0_133, %c0_134] : memref<1x256xf32, #tpu.memory_space<vmem>>, vector<1x256xf32>
    %c0_135 = arith.constant 0 : index
    %c0_136 = arith.constant 0 : index
    %399 = vector.load %arg12[%c0_135, %c0_136] : memref<16x64xbf16, #tpu.memory_space<vmem>>, vector<16x64xbf16>
    %cst_137 = arith.constant dense<0.000000e+00> : vector<16x256xf32>
    %400 = tpu.matmul %399, %396, %cst_137 {dimension_numbers = #tpu.dot_dimension_numbers<[1], [0], [0], [1], [0, 0, 1, 1], [], []>} : vector<16x64xbf16>, vector<64x256xbf16>, vector<16x256xf32> -> vector<16x256xf32>
    %401 = vector.broadcast %398 : vector<1x256xf32> to vector<16x256xf32>
    %402 = arith.addf %400, %401 : vector<16x256xf32>
    %c0_138 = arith.constant 0 : index
    %c0_139 = arith.constant 0 : index
    %403 = vector.load %arg11[%c0_138, %c0_139] : memref<16x256xf32, #tpu.memory_space<vmem>>, vector<16x256xf32>
    tpu.vector_store %arg11[%c0_138, %c0_139], %402 {strides = array<i32>} : memref<16x256xf32, #tpu.memory_space<vmem>>, vector<16x256xf32>,
    %cst_140 = arith.constant 0.000000e+00 : f32
    %404 = vector.broadcast %cst_140 : f32 to vector<2x64xf32>
    %c0_i32_141 = arith.constant 0 : i32
    %c2_i32_142 = arith.constant 2 : i32
    %405 = arith.muli %c0_i32_141, %c2_i32_142 : i32
    %406 = arith.index_cast %405 : i32 to index
    %c0_143 = arith.constant 0 : index
    %407 = vector.load %arg11[%406, %c0_143] : memref<16x256xf32, #tpu.memory_space<vmem>>, vector<2x256xf32>
    %c7_i32_144 = arith.constant 7 : i32
    %408 = arith.subi %c7_i32_144, %c0_i32_141 : i32
    %c2_i32_145 = arith.constant 2 : i32
    %409 = arith.muli %408, %c2_i32_145 : i32
    %410 = arith.index_cast %409 : i32 to index
    %c0_146 = arith.constant 0 : index
    %411 = vector.load %arg11[%410, %c0_146] : memref<16x256xf32, #tpu.memory_space<vmem>>, vector<2x256xf32>
    %cst_147 = arith.constant dense<0.000000e+00> : vector<2x256xf32>
    %412 = tpu.matmul %404, %397, %cst_147 {dimension_numbers = #tpu.dot_dimension_numbers<[1], [0], [0], [1], [0, 0, 1, 1], [], []>} : vector<2x64xf32>, vector<64x256xf32>, vector<2x256xf32> -> vector<2x256xf32>
    %413 = vector.shape_cast %18 : vector<1x256xi1> to vector<1x256xi1>
    %414 = vector.broadcast %413 : vector<1x256xi1> to vector<2x256xi1>
    %415 = arith.select %414, %411, %407 : vector<2x256xi1>, vector<2x256xf32>
    %416 = arith.addf %415, %412 : vector<2x256xf32>
    %417 = vector.extract_strided_slice %416 {offsets = [0, 0], sizes = [2, 128], strides = [1, 1]} : vector<2x256xf32> to vector<2x128xf32>
    %418 = arith.negf %417 : vector<2x128xf32>
    %419 = math.exp %418 : vector<2x128xf32>
    %cst_148 = arith.constant 1.000000e+00 : f32
    %420 = vector.broadcast %cst_148 : f32 to vector<2x128xf32>
    %421 = arith.addf %420, %419 : vector<2x128xf32>
    %422 = arith.divf %420, %421 : vector<2x128xf32>
    %423 = vector.extract_strided_slice %416 {offsets = [0, 128], sizes = [2, 64], strides = [1, 1]} : vector<2x256xf32> to vector<2x64xf32>
    %424 = math.tanh %423 : vector<2x64xf32>
    %425 = vector.extract_strided_slice %416 {offsets = [0, 192], sizes = [2, 64], strides = [1, 1]} : vector<2x256xf32> to vector<2x64xf32>
    %426 = arith.negf %425 : vector<2x64xf32>
    %427 = math.exp %426 : vector<2x64xf32>
    %cst_149 = arith.constant 1.000000e+00 : f32
    %428 = vector.broadcast %cst_149 : f32 to vector<2x64xf32>
    %429 = arith.addf %428, %427 : vector<2x64xf32>
    %430 = arith.divf %428, %429 : vector<2x64xf32>
    %431 = vector.extract_strided_slice %422 {offsets = [0, 0], sizes = [2, 64], strides = [1, 1]} : vector<2x128xf32> to vector<2x64xf32>
    %432 = vector.extract_strided_slice %422 {offsets = [0, 64], sizes = [2, 64], strides = [1, 1]} : vector<2x128xf32> to vector<2x64xf32>
    %433 = arith.mulf %432, %404 : vector<2x64xf32>
    %434 = arith.mulf %431, %424 : vector<2x64xf32>
    %435 = arith.addf %433, %434 : vector<2x64xf32>
    %436 = math.tanh %435 : vector<2x64xf32>
    %437 = arith.mulf %430, %436 : vector<2x64xf32>
    %438 = vector.extract_strided_slice %437 {offsets = [0, 0], sizes = [2, 32], strides = [1, 1]} : vector<2x64xf32> to vector<2x32xf32>
    %c2_i32_150 = arith.constant 2 : i32
    %439 = arith.muli %c0_i32_141, %c2_i32_150 : i32
    %440 = arith.index_cast %439 : i32 to index
    %c0_151 = arith.constant 0 : index
    %441 = vector.load %arg8[%440, %c0_151] : memref<16x64xf32, #tpu.memory_space<vmem>>, vector<2x32xf32>
    tpu.vector_store %arg8[%440, %c0_151], %438 {strides = array<i32>} : memref<16x64xf32, #tpu.memory_space<vmem>>, vector<2x32xf32>,
    %442 = vector.extract_strided_slice %437 {offsets = [0, 32], sizes = [2, 32], strides = [1, 1]} : vector<2x64xf32> to vector<2x32xf32>
    %c7_i32_152 = arith.constant 7 : i32
    %443 = arith.subi %c7_i32_152, %c0_i32_141 : i32
    %c2_i32_153 = arith.constant 2 : i32
    %444 = arith.muli %443, %c2_i32_153 : i32
    %445 = arith.index_cast %444 : i32 to index
    %c32_154 = arith.constant 32 : index
    %446 = vector.load %arg8[%445, %c32_154] : memref<16x64xf32, #tpu.memory_space<vmem>>, vector<2x32xf32>
    tpu.vector_store %arg8[%445, %c32_154], %442 {strides = array<i32>} : memref<16x64xf32, #tpu.memory_space<vmem>>, vector<2x32xf32>,
    %c1_i32_155 = arith.constant 1 : i32
    %c2_i32_156 = arith.constant 2 : i32
    %447 = arith.muli %c1_i32_155, %c2_i32_156 : i32
    %448 = arith.index_cast %447 : i32 to index
    %c0_157 = arith.constant 0 : index
    %449 = vector.load %arg11[%448, %c0_157] : memref<16x256xf32, #tpu.memory_space<vmem>>, vector<2x256xf32>
    %c7_i32_158 = arith.constant 7 : i32
    %450 = arith.subi %c7_i32_158, %c1_i32_155 : i32
    %c2_i32_159 = arith.constant 2 : i32
    %451 = arith.muli %450, %c2_i32_159 : i32
    %452 = arith.index_cast %451 : i32 to index
    %c0_160 = arith.constant 0 : index
    %453 = vector.load %arg11[%452, %c0_160] : memref<16x256xf32, #tpu.memory_space<vmem>>, vector<2x256xf32>
    %cst_161 = arith.constant dense<0.000000e+00> : vector<2x256xf32>
    %454 = tpu.matmul %437, %397, %cst_161 {dimension_numbers = #tpu.dot_dimension_numbers<[1], [0], [0], [1], [0, 0, 1, 1], [], []>} : vector<2x64xf32>, vector<64x256xf32>, vector<2x256xf32> -> vector<2x256xf32>
    %455 = vector.shape_cast %18 : vector<1x256xi1> to vector<1x256xi1>
    %456 = vector.broadcast %455 : vector<1x256xi1> to vector<2x256xi1>
    %457 = arith.select %456, %453, %449 : vector<2x256xi1>, vector<2x256xf32>
    %458 = arith.addf %457, %454 : vector<2x256xf32>
    %459 = vector.extract_strided_slice %458 {offsets = [0, 0], sizes = [2, 128], strides = [1, 1]} : vector<2x256xf32> to vector<2x128xf32>
    %460 = arith.negf %459 : vector<2x128xf32>
    %461 = math.exp %460 : vector<2x128xf32>
    %cst_162 = arith.constant 1.000000e+00 : f32
    %462 = vector.broadcast %cst_162 : f32 to vector<2x128xf32>
    %463 = arith.addf %462, %461 : vector<2x128xf32>
    %464 = arith.divf %462, %463 : vector<2x128xf32>
    %465 = vector.extract_strided_slice %458 {offsets = [0, 128], sizes = [2, 64], strides = [1, 1]} : vector<2x256xf32> to vector<2x64xf32>
    %466 = math.tanh %465 : vector<2x64xf32>
    %467 = vector.extract_strided_slice %458 {offsets = [0, 192], sizes = [2, 64], strides = [1, 1]} : vector<2x256xf32> to vector<2x64xf32>
    %468 = arith.negf %467 : vector<2x64xf32>
    %469 = math.exp %468 : vector<2x64xf32>
    %cst_163 = arith.constant 1.000000e+00 : f32
    %470 = vector.broadcast %cst_163 : f32 to vector<2x64xf32>
    %471 = arith.addf %470, %469 : vector<2x64xf32>
    %472 = arith.divf %470, %471 : vector<2x64xf32>
    %473 = vector.extract_strided_slice %464 {offsets = [0, 0], sizes = [2, 64], strides = [1, 1]} : vector<2x128xf32> to vector<2x64xf32>
    %474 = vector.extract_strided_slice %464 {offsets = [0, 64], sizes = [2, 64], strides = [1, 1]} : vector<2x128xf32> to vector<2x64xf32>
    %475 = arith.mulf %474, %435 : vector<2x64xf32>
    %476 = arith.mulf %473, %466 : vector<2x64xf32>
    %477 = arith.addf %475, %476 : vector<2x64xf32>
    %478 = math.tanh %477 : vector<2x64xf32>
    %479 = arith.mulf %472, %478 : vector<2x64xf32>
    %480 = vector.extract_strided_slice %479 {offsets = [0, 0], sizes = [2, 32], strides = [1, 1]} : vector<2x64xf32> to vector<2x32xf32>
    %c2_i32_164 = arith.constant 2 : i32
    %481 = arith.muli %c1_i32_155, %c2_i32_164 : i32
    %482 = arith.index_cast %481 : i32 to index
    %c0_165 = arith.constant 0 : index
    %483 = vector.load %arg8[%482, %c0_165] : memref<16x64xf32, #tpu.memory_space<vmem>>, vector<2x32xf32>
    tpu.vector_store %arg8[%482, %c0_165], %480 {strides = array<i32>} : memref<16x64xf32, #tpu.memory_space<vmem>>, vector<2x32xf32>,
    %484 = vector.extract_strided_slice %479 {offsets = [0, 32], sizes = [2, 32], strides = [1, 1]} : vector<2x64xf32> to vector<2x32xf32>
    %c7_i32_166 = arith.constant 7 : i32
    %485 = arith.subi %c7_i32_166, %c1_i32_155 : i32
    %c2_i32_167 = arith.constant 2 : i32
    %486 = arith.muli %485, %c2_i32_167 : i32
    %487 = arith.index_cast %486 : i32 to index
    %c32_168 = arith.constant 32 : index
    %488 = vector.load %arg8[%487, %c32_168] : memref<16x64xf32, #tpu.memory_space<vmem>>, vector<2x32xf32>
    tpu.vector_store %arg8[%487, %c32_168], %484 {strides = array<i32>} : memref<16x64xf32, #tpu.memory_space<vmem>>, vector<2x32xf32>,
    %c2_i32_169 = arith.constant 2 : i32
    %c2_i32_170 = arith.constant 2 : i32
    %489 = arith.muli %c2_i32_169, %c2_i32_170 : i32
    %490 = arith.index_cast %489 : i32 to index
    %c0_171 = arith.constant 0 : index
    %491 = vector.load %arg11[%490, %c0_171] : memref<16x256xf32, #tpu.memory_space<vmem>>, vector<2x256xf32>
    %c7_i32_172 = arith.constant 7 : i32
    %492 = arith.subi %c7_i32_172, %c2_i32_169 : i32
    %c2_i32_173 = arith.constant 2 : i32
    %493 = arith.muli %492, %c2_i32_173 : i32
    %494 = arith.index_cast %493 : i32 to index
    %c0_174 = arith.constant 0 : index
    %495 = vector.load %arg11[%494, %c0_174] : memref<16x256xf32, #tpu.memory_space<vmem>>, vector<2x256xf32>
    %cst_175 = arith.constant dense<0.000000e+00> : vector<2x256xf32>
    %496 = tpu.matmul %479, %397, %cst_175 {dimension_numbers = #tpu.dot_dimension_numbers<[1], [0], [0], [1], [0, 0, 1, 1], [], []>} : vector<2x64xf32>, vector<64x256xf32>, vector<2x256xf32> -> vector<2x256xf32>
    %497 = vector.shape_cast %18 : vector<1x256xi1> to vector<1x256xi1>
    %498 = vector.broadcast %497 : vector<1x256xi1> to vector<2x256xi1>
    %499 = arith.select %498, %495, %491 : vector<2x256xi1>, vector<2x256xf32>
    %500 = arith.addf %499, %496 : vector<2x256xf32>
    %501 = vector.extract_strided_slice %500 {offsets = [0, 0], sizes = [2, 128], strides = [1, 1]} : vector<2x256xf32> to vector<2x128xf32>
    %502 = arith.negf %501 : vector<2x128xf32>
    %503 = math.exp %502 : vector<2x128xf32>
    %cst_176 = arith.constant 1.000000e+00 : f32
    %504 = vector.broadcast %cst_176 : f32 to vector<2x128xf32>
    %505 = arith.addf %504, %503 : vector<2x128xf32>
    %506 = arith.divf %504, %505 : vector<2x128xf32>
    %507 = vector.extract_strided_slice %500 {offsets = [0, 128], sizes = [2, 64], strides = [1, 1]} : vector<2x256xf32> to vector<2x64xf32>
    %508 = math.tanh %507 : vector<2x64xf32>
    %509 = vector.extract_strided_slice %500 {offsets = [0, 192], sizes = [2, 64], strides = [1, 1]} : vector<2x256xf32> to vector<2x64xf32>
    %510 = arith.negf %509 : vector<2x64xf32>
    %511 = math.exp %510 : vector<2x64xf32>
    %cst_177 = arith.constant 1.000000e+00 : f32
    %512 = vector.broadcast %cst_177 : f32 to vector<2x64xf32>
    %513 = arith.addf %512, %511 : vector<2x64xf32>
    %514 = arith.divf %512, %513 : vector<2x64xf32>
    %515 = vector.extract_strided_slice %506 {offsets = [0, 0], sizes = [2, 64], strides = [1, 1]} : vector<2x128xf32> to vector<2x64xf32>
    %516 = vector.extract_strided_slice %506 {offsets = [0, 64], sizes = [2, 64], strides = [1, 1]} : vector<2x128xf32> to vector<2x64xf32>
    %517 = arith.mulf %516, %477 : vector<2x64xf32>
    %518 = arith.mulf %515, %508 : vector<2x64xf32>
    %519 = arith.addf %517, %518 : vector<2x64xf32>
    %520 = math.tanh %519 : vector<2x64xf32>
    %521 = arith.mulf %514, %520 : vector<2x64xf32>
    %522 = vector.extract_strided_slice %521 {offsets = [0, 0], sizes = [2, 32], strides = [1, 1]} : vector<2x64xf32> to vector<2x32xf32>
    %c2_i32_178 = arith.constant 2 : i32
    %523 = arith.muli %c2_i32_169, %c2_i32_178 : i32
    %524 = arith.index_cast %523 : i32 to index
    %c0_179 = arith.constant 0 : index
    %525 = vector.load %arg8[%524, %c0_179] : memref<16x64xf32, #tpu.memory_space<vmem>>, vector<2x32xf32>
    tpu.vector_store %arg8[%524, %c0_179], %522 {strides = array<i32>} : memref<16x64xf32, #tpu.memory_space<vmem>>, vector<2x32xf32>,
    %526 = vector.extract_strided_slice %521 {offsets = [0, 32], sizes = [2, 32], strides = [1, 1]} : vector<2x64xf32> to vector<2x32xf32>
    %c7_i32_180 = arith.constant 7 : i32
    %527 = arith.subi %c7_i32_180, %c2_i32_169 : i32
    %c2_i32_181 = arith.constant 2 : i32
    %528 = arith.muli %527, %c2_i32_181 : i32
    %529 = arith.index_cast %528 : i32 to index
    %c32_182 = arith.constant 32 : index
    %530 = vector.load %arg8[%529, %c32_182] : memref<16x64xf32, #tpu.memory_space<vmem>>, vector<2x32xf32>
    tpu.vector_store %arg8[%529, %c32_182], %526 {strides = array<i32>} : memref<16x64xf32, #tpu.memory_space<vmem>>, vector<2x32xf32>,
    %c3_i32_183 = arith.constant 3 : i32
    %c2_i32_184 = arith.constant 2 : i32
    %531 = arith.muli %c3_i32_183, %c2_i32_184 : i32
    %532 = arith.index_cast %531 : i32 to index
    %c0_185 = arith.constant 0 : index
    %533 = vector.load %arg11[%532, %c0_185] : memref<16x256xf32, #tpu.memory_space<vmem>>, vector<2x256xf32>
    %c7_i32_186 = arith.constant 7 : i32
    %534 = arith.subi %c7_i32_186, %c3_i32_183 : i32
    %c2_i32_187 = arith.constant 2 : i32
    %535 = arith.muli %534, %c2_i32_187 : i32
    %536 = arith.index_cast %535 : i32 to index
    %c0_188 = arith.constant 0 : index
    %537 = vector.load %arg11[%536, %c0_188] : memref<16x256xf32, #tpu.memory_space<vmem>>, vector<2x256xf32>
    %cst_189 = arith.constant dense<0.000000e+00> : vector<2x256xf32>
    %538 = tpu.matmul %521, %397, %cst_189 {dimension_numbers = #tpu.dot_dimension_numbers<[1], [0], [0], [1], [0, 0, 1, 1], [], []>} : vector<2x64xf32>, vector<64x256xf32>, vector<2x256xf32> -> vector<2x256xf32>
    %539 = vector.shape_cast %18 : vector<1x256xi1> to vector<1x256xi1>
    %540 = vector.broadcast %539 : vector<1x256xi1> to vector<2x256xi1>
    %541 = arith.select %540, %537, %533 : vector<2x256xi1>, vector<2x256xf32>
    %542 = arith.addf %541, %538 : vector<2x256xf32>
    %543 = vector.extract_strided_slice %542 {offsets = [0, 0], sizes = [2, 128], strides = [1, 1]} : vector<2x256xf32> to vector<2x128xf32>
    %544 = arith.negf %543 : vector<2x128xf32>
    %545 = math.exp %544 : vector<2x128xf32>
    %cst_190 = arith.constant 1.000000e+00 : f32
    %546 = vector.broadcast %cst_190 : f32 to vector<2x128xf32>
    %547 = arith.addf %546, %545 : vector<2x128xf32>
    %548 = arith.divf %546, %547 : vector<2x128xf32>
    %549 = vector.extract_strided_slice %542 {offsets = [0, 128], sizes = [2, 64], strides = [1, 1]} : vector<2x256xf32> to vector<2x64xf32>
    %550 = math.tanh %549 : vector<2x64xf32>
    %551 = vector.extract_strided_slice %542 {offsets = [0, 192], sizes = [2, 64], strides = [1, 1]} : vector<2x256xf32> to vector<2x64xf32>
    %552 = arith.negf %551 : vector<2x64xf32>
    %553 = math.exp %552 : vector<2x64xf32>
    %cst_191 = arith.constant 1.000000e+00 : f32
    %554 = vector.broadcast %cst_191 : f32 to vector<2x64xf32>
    %555 = arith.addf %554, %553 : vector<2x64xf32>
    %556 = arith.divf %554, %555 : vector<2x64xf32>
    %557 = vector.extract_strided_slice %548 {offsets = [0, 0], sizes = [2, 64], strides = [1, 1]} : vector<2x128xf32> to vector<2x64xf32>
    %558 = vector.extract_strided_slice %548 {offsets = [0, 64], sizes = [2, 64], strides = [1, 1]} : vector<2x128xf32> to vector<2x64xf32>
    %559 = arith.mulf %558, %519 : vector<2x64xf32>
    %560 = arith.mulf %557, %550 : vector<2x64xf32>
    %561 = arith.addf %559, %560 : vector<2x64xf32>
    %562 = math.tanh %561 : vector<2x64xf32>
    %563 = arith.mulf %556, %562 : vector<2x64xf32>
    %564 = vector.extract_strided_slice %563 {offsets = [0, 0], sizes = [2, 32], strides = [1, 1]} : vector<2x64xf32> to vector<2x32xf32>
    %c2_i32_192 = arith.constant 2 : i32
    %565 = arith.muli %c3_i32_183, %c2_i32_192 : i32
    %566 = arith.index_cast %565 : i32 to index
    %c0_193 = arith.constant 0 : index
    %567 = vector.load %arg8[%566, %c0_193] : memref<16x64xf32, #tpu.memory_space<vmem>>, vector<2x32xf32>
    tpu.vector_store %arg8[%566, %c0_193], %564 {strides = array<i32>} : memref<16x64xf32, #tpu.memory_space<vmem>>, vector<2x32xf32>,
    %568 = vector.extract_strided_slice %563 {offsets = [0, 32], sizes = [2, 32], strides = [1, 1]} : vector<2x64xf32> to vector<2x32xf32>
    %c7_i32_194 = arith.constant 7 : i32
    %569 = arith.subi %c7_i32_194, %c3_i32_183 : i32
    %c2_i32_195 = arith.constant 2 : i32
    %570 = arith.muli %569, %c2_i32_195 : i32
    %571 = arith.index_cast %570 : i32 to index
    %c32_196 = arith.constant 32 : index
    %572 = vector.load %arg8[%571, %c32_196] : memref<16x64xf32, #tpu.memory_space<vmem>>, vector<2x32xf32>
    tpu.vector_store %arg8[%571, %c32_196], %568 {strides = array<i32>} : memref<16x64xf32, #tpu.memory_space<vmem>>, vector<2x32xf32>,
    %c4_i32_197 = arith.constant 4 : i32
    %c2_i32_198 = arith.constant 2 : i32
    %573 = arith.muli %c4_i32_197, %c2_i32_198 : i32
    %574 = arith.index_cast %573 : i32 to index
    %c0_199 = arith.constant 0 : index
    %575 = vector.load %arg11[%574, %c0_199] : memref<16x256xf32, #tpu.memory_space<vmem>>, vector<2x256xf32>
    %c7_i32_200 = arith.constant 7 : i32
    %576 = arith.subi %c7_i32_200, %c4_i32_197 : i32
    %c2_i32_201 = arith.constant 2 : i32
    %577 = arith.muli %576, %c2_i32_201 : i32
    %578 = arith.index_cast %577 : i32 to index
    %c0_202 = arith.constant 0 : index
    %579 = vector.load %arg11[%578, %c0_202] : memref<16x256xf32, #tpu.memory_space<vmem>>, vector<2x256xf32>
    %cst_203 = arith.constant dense<0.000000e+00> : vector<2x256xf32>
    %580 = tpu.matmul %563, %397, %cst_203 {dimension_numbers = #tpu.dot_dimension_numbers<[1], [0], [0], [1], [0, 0, 1, 1], [], []>} : vector<2x64xf32>, vector<64x256xf32>, vector<2x256xf32> -> vector<2x256xf32>
    %581 = vector.shape_cast %18 : vector<1x256xi1> to vector<1x256xi1>
    %582 = vector.broadcast %581 : vector<1x256xi1> to vector<2x256xi1>
    %583 = arith.select %582, %579, %575 : vector<2x256xi1>, vector<2x256xf32>
    %584 = arith.addf %583, %580 : vector<2x256xf32>
    %585 = vector.extract_strided_slice %584 {offsets = [0, 0], sizes = [2, 128], strides = [1, 1]} : vector<2x256xf32> to vector<2x128xf32>
    %586 = arith.negf %585 : vector<2x128xf32>
    %587 = math.exp %586 : vector<2x128xf32>
    %cst_204 = arith.constant 1.000000e+00 : f32
    %588 = vector.broadcast %cst_204 : f32 to vector<2x128xf32>
    %589 = arith.addf %588, %587 : vector<2x128xf32>
    %590 = arith.divf %588, %589 : vector<2x128xf32>
    %591 = vector.extract_strided_slice %584 {offsets = [0, 128], sizes = [2, 64], strides = [1, 1]} : vector<2x256xf32> to vector<2x64xf32>
    %592 = math.tanh %591 : vector<2x64xf32>
    %593 = vector.extract_strided_slice %584 {offsets = [0, 192], sizes = [2, 64], strides = [1, 1]} : vector<2x256xf32> to vector<2x64xf32>
    %594 = arith.negf %593 : vector<2x64xf32>
    %595 = math.exp %594 : vector<2x64xf32>
    %cst_205 = arith.constant 1.000000e+00 : f32
    %596 = vector.broadcast %cst_205 : f32 to vector<2x64xf32>
    %597 = arith.addf %596, %595 : vector<2x64xf32>
    %598 = arith.divf %596, %597 : vector<2x64xf32>
    %599 = vector.extract_strided_slice %590 {offsets = [0, 0], sizes = [2, 64], strides = [1, 1]} : vector<2x128xf32> to vector<2x64xf32>
    %600 = vector.extract_strided_slice %590 {offsets = [0, 64], sizes = [2, 64], strides = [1, 1]} : vector<2x128xf32> to vector<2x64xf32>
    %601 = arith.mulf %600, %561 : vector<2x64xf32>
    %602 = arith.mulf %599, %592 : vector<2x64xf32>
    %603 = arith.addf %601, %602 : vector<2x64xf32>
    %604 = math.tanh %603 : vector<2x64xf32>
    %605 = arith.mulf %598, %604 : vector<2x64xf32>
    %606 = vector.extract_strided_slice %605 {offsets = [0, 0], sizes = [2, 32], strides = [1, 1]} : vector<2x64xf32> to vector<2x32xf32>
    %c2_i32_206 = arith.constant 2 : i32
    %607 = arith.muli %c4_i32_197, %c2_i32_206 : i32
    %608 = arith.index_cast %607 : i32 to index
    %c0_207 = arith.constant 0 : index
    %609 = vector.load %arg8[%608, %c0_207] : memref<16x64xf32, #tpu.memory_space<vmem>>, vector<2x32xf32>
    tpu.vector_store %arg8[%608, %c0_207], %606 {strides = array<i32>} : memref<16x64xf32, #tpu.memory_space<vmem>>, vector<2x32xf32>,
    %610 = vector.extract_strided_slice %605 {offsets = [0, 32], sizes = [2, 32], strides = [1, 1]} : vector<2x64xf32> to vector<2x32xf32>
    %c7_i32_208 = arith.constant 7 : i32
    %611 = arith.subi %c7_i32_208, %c4_i32_197 : i32
    %c2_i32_209 = arith.constant 2 : i32
    %612 = arith.muli %611, %c2_i32_209 : i32
    %613 = arith.index_cast %612 : i32 to index
    %c32_210 = arith.constant 32 : index
    %614 = vector.load %arg8[%613, %c32_210] : memref<16x64xf32, #tpu.memory_space<vmem>>, vector<2x32xf32>
    tpu.vector_store %arg8[%613, %c32_210], %610 {strides = array<i32>} : memref<16x64xf32, #tpu.memory_space<vmem>>, vector<2x32xf32>,
    %c5_i32_211 = arith.constant 5 : i32
    %c2_i32_212 = arith.constant 2 : i32
    %615 = arith.muli %c5_i32_211, %c2_i32_212 : i32
    %616 = arith.index_cast %615 : i32 to index
    %c0_213 = arith.constant 0 : index
    %617 = vector.load %arg11[%616, %c0_213] : memref<16x256xf32, #tpu.memory_space<vmem>>, vector<2x256xf32>
    %c7_i32_214 = arith.constant 7 : i32
    %618 = arith.subi %c7_i32_214, %c5_i32_211 : i32
    %c2_i32_215 = arith.constant 2 : i32
    %619 = arith.muli %618, %c2_i32_215 : i32
    %620 = arith.index_cast %619 : i32 to index
    %c0_216 = arith.constant 0 : index
    %621 = vector.load %arg11[%620, %c0_216] : memref<16x256xf32, #tpu.memory_space<vmem>>, vector<2x256xf32>
    %cst_217 = arith.constant dense<0.000000e+00> : vector<2x256xf32>
    %622 = tpu.matmul %605, %397, %cst_217 {dimension_numbers = #tpu.dot_dimension_numbers<[1], [0], [0], [1], [0, 0, 1, 1], [], []>} : vector<2x64xf32>, vector<64x256xf32>, vector<2x256xf32> -> vector<2x256xf32>
    %623 = vector.shape_cast %18 : vector<1x256xi1> to vector<1x256xi1>
    %624 = vector.broadcast %623 : vector<1x256xi1> to vector<2x256xi1>
    %625 = arith.select %624, %621, %617 : vector<2x256xi1>, vector<2x256xf32>
    %626 = arith.addf %625, %622 : vector<2x256xf32>
    %627 = vector.extract_strided_slice %626 {offsets = [0, 0], sizes = [2, 128], strides = [1, 1]} : vector<2x256xf32> to vector<2x128xf32>
    %628 = arith.negf %627 : vector<2x128xf32>
    %629 = math.exp %628 : vector<2x128xf32>
    %cst_218 = arith.constant 1.000000e+00 : f32
    %630 = vector.broadcast %cst_218 : f32 to vector<2x128xf32>
    %631 = arith.addf %630, %629 : vector<2x128xf32>
    %632 = arith.divf %630, %631 : vector<2x128xf32>
    %633 = vector.extract_strided_slice %626 {offsets = [0, 128], sizes = [2, 64], strides = [1, 1]} : vector<2x256xf32> to vector<2x64xf32>
    %634 = math.tanh %633 : vector<2x64xf32>
    %635 = vector.extract_strided_slice %626 {offsets = [0, 192], sizes = [2, 64], strides = [1, 1]} : vector<2x256xf32> to vector<2x64xf32>
    %636 = arith.negf %635 : vector<2x64xf32>
    %637 = math.exp %636 : vector<2x64xf32>
    %cst_219 = arith.constant 1.000000e+00 : f32
    %638 = vector.broadcast %cst_219 : f32 to vector<2x64xf32>
    %639 = arith.addf %638, %637 : vector<2x64xf32>
    %640 = arith.divf %638, %639 : vector<2x64xf32>
    %641 = vector.extract_strided_slice %632 {offsets = [0, 0], sizes = [2, 64], strides = [1, 1]} : vector<2x128xf32> to vector<2x64xf32>
    %642 = vector.extract_strided_slice %632 {offsets = [0, 64], sizes = [2, 64], strides = [1, 1]} : vector<2x128xf32> to vector<2x64xf32>
    %643 = arith.mulf %642, %603 : vector<2x64xf32>
    %644 = arith.mulf %641, %634 : vector<2x64xf32>
    %645 = arith.addf %643, %644 : vector<2x64xf32>
    %646 = math.tanh %645 : vector<2x64xf32>
    %647 = arith.mulf %640, %646 : vector<2x64xf32>
    %648 = vector.extract_strided_slice %647 {offsets = [0, 0], sizes = [2, 32], strides = [1, 1]} : vector<2x64xf32> to vector<2x32xf32>
    %c2_i32_220 = arith.constant 2 : i32
    %649 = arith.muli %c5_i32_211, %c2_i32_220 : i32
    %650 = arith.index_cast %649 : i32 to index
    %c0_221 = arith.constant 0 : index
    %651 = vector.load %arg8[%650, %c0_221] : memref<16x64xf32, #tpu.memory_space<vmem>>, vector<2x32xf32>
    tpu.vector_store %arg8[%650, %c0_221], %648 {strides = array<i32>} : memref<16x64xf32, #tpu.memory_space<vmem>>, vector<2x32xf32>,
    %652 = vector.extract_strided_slice %647 {offsets = [0, 32], sizes = [2, 32], strides = [1, 1]} : vector<2x64xf32> to vector<2x32xf32>
    %c7_i32_222 = arith.constant 7 : i32
    %653 = arith.subi %c7_i32_222, %c5_i32_211 : i32
    %c2_i32_223 = arith.constant 2 : i32
    %654 = arith.muli %653, %c2_i32_223 : i32
    %655 = arith.index_cast %654 : i32 to index
    %c32_224 = arith.constant 32 : index
    %656 = vector.load %arg8[%655, %c32_224] : memref<16x64xf32, #tpu.memory_space<vmem>>, vector<2x32xf32>
    tpu.vector_store %arg8[%655, %c32_224], %652 {strides = array<i32>} : memref<16x64xf32, #tpu.memory_space<vmem>>, vector<2x32xf32>,
    %c6_i32_225 = arith.constant 6 : i32
    %c2_i32_226 = arith.constant 2 : i32
    %657 = arith.muli %c6_i32_225, %c2_i32_226 : i32
    %658 = arith.index_cast %657 : i32 to index
    %c0_227 = arith.constant 0 : index
    %659 = vector.load %arg11[%658, %c0_227] : memref<16x256xf32, #tpu.memory_space<vmem>>, vector<2x256xf32>
    %c7_i32_228 = arith.constant 7 : i32
    %660 = arith.subi %c7_i32_228, %c6_i32_225 : i32
    %c2_i32_229 = arith.constant 2 : i32
    %661 = arith.muli %660, %c2_i32_229 : i32
    %662 = arith.index_cast %661 : i32 to index
    %c0_230 = arith.constant 0 : index
    %663 = vector.load %arg11[%662, %c0_230] : memref<16x256xf32, #tpu.memory_space<vmem>>, vector<2x256xf32>
    %cst_231 = arith.constant dense<0.000000e+00> : vector<2x256xf32>
    %664 = tpu.matmul %647, %397, %cst_231 {dimension_numbers = #tpu.dot_dimension_numbers<[1], [0], [0], [1], [0, 0, 1, 1], [], []>} : vector<2x64xf32>, vector<64x256xf32>, vector<2x256xf32> -> vector<2x256xf32>
    %665 = vector.shape_cast %18 : vector<1x256xi1> to vector<1x256xi1>
    %666 = vector.broadcast %665 : vector<1x256xi1> to vector<2x256xi1>
    %667 = arith.select %666, %663, %659 : vector<2x256xi1>, vector<2x256xf32>
    %668 = arith.addf %667, %664 : vector<2x256xf32>
    %669 = vector.extract_strided_slice %668 {offsets = [0, 0], sizes = [2, 128], strides = [1, 1]} : vector<2x256xf32> to vector<2x128xf32>
    %670 = arith.negf %669 : vector<2x128xf32>
    %671 = math.exp %670 : vector<2x128xf32>
    %cst_232 = arith.constant 1.000000e+00 : f32
    %672 = vector.broadcast %cst_232 : f32 to vector<2x128xf32>
    %673 = arith.addf %672, %671 : vector<2x128xf32>
    %674 = arith.divf %672, %673 : vector<2x128xf32>
    %675 = vector.extract_strided_slice %668 {offsets = [0, 128], sizes = [2, 64], strides = [1, 1]} : vector<2x256xf32> to vector<2x64xf32>
    %676 = math.tanh %675 : vector<2x64xf32>
    %677 = vector.extract_strided_slice %668 {offsets = [0, 192], sizes = [2, 64], strides = [1, 1]} : vector<2x256xf32> to vector<2x64xf32>
    %678 = arith.negf %677 : vector<2x64xf32>
    %679 = math.exp %678 : vector<2x64xf32>
    %cst_233 = arith.constant 1.000000e+00 : f32
    %680 = vector.broadcast %cst_233 : f32 to vector<2x64xf32>
    %681 = arith.addf %680, %679 : vector<2x64xf32>
    %682 = arith.divf %680, %681 : vector<2x64xf32>
    %683 = vector.extract_strided_slice %674 {offsets = [0, 0], sizes = [2, 64], strides = [1, 1]} : vector<2x128xf32> to vector<2x64xf32>
    %684 = vector.extract_strided_slice %674 {offsets = [0, 64], sizes = [2, 64], strides = [1, 1]} : vector<2x128xf32> to vector<2x64xf32>
    %685 = arith.mulf %684, %645 : vector<2x64xf32>
    %686 = arith.mulf %683, %676 : vector<2x64xf32>
    %687 = arith.addf %685, %686 : vector<2x64xf32>
    %688 = math.tanh %687 : vector<2x64xf32>
    %689 = arith.mulf %682, %688 : vector<2x64xf32>
    %690 = vector.extract_strided_slice %689 {offsets = [0, 0], sizes = [2, 32], strides = [1, 1]} : vector<2x64xf32> to vector<2x32xf32>
    %c2_i32_234 = arith.constant 2 : i32
    %691 = arith.muli %c6_i32_225, %c2_i32_234 : i32
    %692 = arith.index_cast %691 : i32 to index
    %c0_235 = arith.constant 0 : index
    %693 = vector.load %arg8[%692, %c0_235] : memref<16x64xf32, #tpu.memory_space<vmem>>, vector<2x32xf32>
    tpu.vector_store %arg8[%692, %c0_235], %690 {strides = array<i32>} : memref<16x64xf32, #tpu.memory_space<vmem>>, vector<2x32xf32>,
    %694 = vector.extract_strided_slice %689 {offsets = [0, 32], sizes = [2, 32], strides = [1, 1]} : vector<2x64xf32> to vector<2x32xf32>
    %c7_i32_236 = arith.constant 7 : i32
    %695 = arith.subi %c7_i32_236, %c6_i32_225 : i32
    %c2_i32_237 = arith.constant 2 : i32
    %696 = arith.muli %695, %c2_i32_237 : i32
    %697 = arith.index_cast %696 : i32 to index
    %c32_238 = arith.constant 32 : index
    %698 = vector.load %arg8[%697, %c32_238] : memref<16x64xf32, #tpu.memory_space<vmem>>, vector<2x32xf32>
    tpu.vector_store %arg8[%697, %c32_238], %694 {strides = array<i32>} : memref<16x64xf32, #tpu.memory_space<vmem>>, vector<2x32xf32>,
    %c7_i32_239 = arith.constant 7 : i32
    %c2_i32_240 = arith.constant 2 : i32
    %699 = arith.muli %c7_i32_239, %c2_i32_240 : i32
    %700 = arith.index_cast %699 : i32 to index
    %c0_241 = arith.constant 0 : index
    %701 = vector.load %arg11[%700, %c0_241] : memref<16x256xf32, #tpu.memory_space<vmem>>, vector<2x256xf32>
    %c7_i32_242 = arith.constant 7 : i32
    %702 = arith.subi %c7_i32_242, %c7_i32_239 : i32
    %c2_i32_243 = arith.constant 2 : i32
    %703 = arith.muli %702, %c2_i32_243 : i32
    %704 = arith.index_cast %703 : i32 to index
    %c0_244 = arith.constant 0 : index
    %705 = vector.load %arg11[%704, %c0_244] : memref<16x256xf32, #tpu.memory_space<vmem>>, vector<2x256xf32>
    %cst_245 = arith.constant dense<0.000000e+00> : vector<2x256xf32>
    %706 = tpu.matmul %689, %397, %cst_245 {dimension_numbers = #tpu.dot_dimension_numbers<[1], [0], [0], [1], [0, 0, 1, 1], [], []>} : vector<2x64xf32>, vector<64x256xf32>, vector<2x256xf32> -> vector<2x256xf32>
    %707 = vector.shape_cast %18 : vector<1x256xi1> to vector<1x256xi1>
    %708 = vector.broadcast %707 : vector<1x256xi1> to vector<2x256xi1>
    %709 = arith.select %708, %705, %701 : vector<2x256xi1>, vector<2x256xf32>
    %710 = arith.addf %709, %706 : vector<2x256xf32>
    %711 = vector.extract_strided_slice %710 {offsets = [0, 0], sizes = [2, 128], strides = [1, 1]} : vector<2x256xf32> to vector<2x128xf32>
    %712 = arith.negf %711 : vector<2x128xf32>
    %713 = math.exp %712 : vector<2x128xf32>
    %cst_246 = arith.constant 1.000000e+00 : f32
    %714 = vector.broadcast %cst_246 : f32 to vector<2x128xf32>
    %715 = arith.addf %714, %713 : vector<2x128xf32>
    %716 = arith.divf %714, %715 : vector<2x128xf32>
    %717 = vector.extract_strided_slice %710 {offsets = [0, 128], sizes = [2, 64], strides = [1, 1]} : vector<2x256xf32> to vector<2x64xf32>
    %718 = math.tanh %717 : vector<2x64xf32>
    %719 = vector.extract_strided_slice %710 {offsets = [0, 192], sizes = [2, 64], strides = [1, 1]} : vector<2x256xf32> to vector<2x64xf32>
    %720 = arith.negf %719 : vector<2x64xf32>
    %721 = math.exp %720 : vector<2x64xf32>
    %cst_247 = arith.constant 1.000000e+00 : f32
    %722 = vector.broadcast %cst_247 : f32 to vector<2x64xf32>
    %723 = arith.addf %722, %721 : vector<2x64xf32>
    %724 = arith.divf %722, %723 : vector<2x64xf32>
    %725 = vector.extract_strided_slice %716 {offsets = [0, 0], sizes = [2, 64], strides = [1, 1]} : vector<2x128xf32> to vector<2x64xf32>
    %726 = vector.extract_strided_slice %716 {offsets = [0, 64], sizes = [2, 64], strides = [1, 1]} : vector<2x128xf32> to vector<2x64xf32>
    %727 = arith.mulf %726, %687 : vector<2x64xf32>
    %728 = arith.mulf %725, %718 : vector<2x64xf32>
    %729 = arith.addf %727, %728 : vector<2x64xf32>
    %730 = math.tanh %729 : vector<2x64xf32>
    %731 = arith.mulf %724, %730 : vector<2x64xf32>
    %732 = vector.extract_strided_slice %731 {offsets = [0, 0], sizes = [2, 32], strides = [1, 1]} : vector<2x64xf32> to vector<2x32xf32>
    %c2_i32_248 = arith.constant 2 : i32
    %733 = arith.muli %c7_i32_239, %c2_i32_248 : i32
    %734 = arith.index_cast %733 : i32 to index
    %c0_249 = arith.constant 0 : index
    %735 = vector.load %arg8[%734, %c0_249] : memref<16x64xf32, #tpu.memory_space<vmem>>, vector<2x32xf32>
    tpu.vector_store %arg8[%734, %c0_249], %732 {strides = array<i32>} : memref<16x64xf32, #tpu.memory_space<vmem>>, vector<2x32xf32>,
    %736 = vector.extract_strided_slice %731 {offsets = [0, 32], sizes = [2, 32], strides = [1, 1]} : vector<2x64xf32> to vector<2x32xf32>
    %c7_i32_250 = arith.constant 7 : i32
    %737 = arith.subi %c7_i32_250, %c7_i32_239 : i32
    %c2_i32_251 = arith.constant 2 : i32
    %738 = arith.muli %737, %c2_i32_251 : i32
    %739 = arith.index_cast %738 : i32 to index
    %c32_252 = arith.constant 32 : index
    %740 = vector.load %arg8[%739, %c32_252] : memref<16x64xf32, #tpu.memory_space<vmem>>, vector<2x32xf32>
    tpu.vector_store %arg8[%739, %c32_252], %736 {strides = array<i32>} : memref<16x64xf32, #tpu.memory_space<vmem>>, vector<2x32xf32>,
    %c8_i32_253 = arith.constant 8 : i32
    %741 = vector.extract_strided_slice %731 {offsets = [0, 0], sizes = [2, 32], strides = [1, 1]} : vector<2x64xf32> to vector<2x32xf32>
    %c2 = arith.constant 2 : index
    %c0_254 = arith.constant 0 : index
    %c0_255 = arith.constant 0 : index
    %742 = vector.load %arg9[%c2, %c0_254, %c0_255] : memref<4x2x32xf32, #tpu.memory_space<vmem>>, vector<1x2x32xf32>
    %743 = vector.shape_cast %742 : vector<1x2x32xf32> to vector<2x32xf32>
    %744 = vector.shape_cast %741 : vector<2x32xf32> to vector<1x2x32xf32>
    tpu.vector_store %arg9[%c2, %c0_254, %c0_255], %744 {strides = array<i32>} : memref<4x2x32xf32, #tpu.memory_space<vmem>>, vector<1x2x32xf32>,
    %745 = vector.extract_strided_slice %731 {offsets = [0, 32], sizes = [2, 32], strides = [1, 1]} : vector<2x64xf32> to vector<2x32xf32>
    %c3 = arith.constant 3 : index
    %c0_256 = arith.constant 0 : index
    %c0_257 = arith.constant 0 : index
    %746 = vector.load %arg9[%c3, %c0_256, %c0_257] : memref<4x2x32xf32, #tpu.memory_space<vmem>>, vector<1x2x32xf32>
    %747 = vector.shape_cast %746 : vector<1x2x32xf32> to vector<2x32xf32>
    %748 = vector.shape_cast %745 : vector<2x32xf32> to vector<1x2x32xf32>
    tpu.vector_store %arg9[%c3, %c0_256, %c0_257], %748 {strides = array<i32>} : memref<4x2x32xf32, #tpu.memory_space<vmem>>, vector<1x2x32xf32>,
    %749 = vector.extract_strided_slice %729 {offsets = [0, 0], sizes = [2, 32], strides = [1, 1]} : vector<2x64xf32> to vector<2x32xf32>
    %c2_258 = arith.constant 2 : index
    %c0_259 = arith.constant 0 : index
    %c0_260 = arith.constant 0 : index
    %750 = vector.load %arg10[%c2_258, %c0_259, %c0_260] : memref<4x2x32xf32, #tpu.memory_space<vmem>>, vector<1x2x32xf32>
    %751 = vector.shape_cast %750 : vector<1x2x32xf32> to vector<2x32xf32>
    %752 = vector.shape_cast %749 : vector<2x32xf32> to vector<1x2x32xf32>
    tpu.vector_store %arg10[%c2_258, %c0_259, %c0_260], %752 {strides = array<i32>} : memref<4x2x32xf32, #tpu.memory_space<vmem>>, vector<1x2x32xf32>,
    %753 = vector.extract_strided_slice %729 {offsets = [0, 32], sizes = [2, 32], strides = [1, 1]} : vector<2x64xf32> to vector<2x32xf32>
    %c3_261 = arith.constant 3 : index
    %c0_262 = arith.constant 0 : index
    %c0_263 = arith.constant 0 : index
    %754 = vector.load %arg10[%c3_261, %c0_262, %c0_263] : memref<4x2x32xf32, #tpu.memory_space<vmem>>, vector<1x2x32xf32>
    %755 = vector.shape_cast %754 : vector<1x2x32xf32> to vector<2x32xf32>
    %756 = vector.shape_cast %753 : vector<2x32xf32> to vector<1x2x32xf32>
    tpu.vector_store %arg10[%c3_261, %c0_262, %c0_263], %756 {strides = array<i32>} : memref<4x2x32xf32, #tpu.memory_space<vmem>>, vector<1x2x32xf32>,
    return
  }
  func.func @transform_0(%arg0: i32) -> (i32, i32) {
    %c0_i32 = arith.constant 0 : i32
    %c0_i32_0 = arith.constant 0 : i32
    %c0_i32_1 = arith.constant 0 : i32
    return %c0_i32, %c0_i32_0 : i32, i32
  }
  func.func @transform_1(%arg0: i32) -> (i32, i32) {
    %c0_i32 = arith.constant 0 : i32
    %c0_i32_0 = arith.constant 0 : i32
    %c0_i32_1 = arith.constant 0 : i32
    return %c0_i32, %c0_i32_0 : i32, i32
  }
  func.func @transform_2(%arg0: i32) -> (i32, i32) {
    %c0_i32 = arith.constant 0 : i32
    %c0_i32_0 = arith.constant 0 : i32
    %c0_i32_1 = arith.constant 0 : i32
    return %c0_i32, %c0_i32_0 : i32, i32
  }
  func.func @transform_3(%arg0: i32) -> (i32, i32) {
    %c0_i32 = arith.constant 0 : i32
    %c0_i32_0 = arith.constant 0 : i32
    %c0_i32_1 = arith.constant 0 : i32
    return %c0_i32, %c0_i32_0 : i32, i32
  }
  func.func @transform_4(%arg0: i32) -> (i32, i32) {
    %c0_i32 = arith.constant 0 : i32
    %c0_i32_0 = arith.constant 0 : i32
    %c0_i32_1 = arith.constant 0 : i32
    return %c0_i32, %c0_i32_0 : i32, i32
  }
  func.func @transform_5(%arg0: i32) -> (i32, i32) {
    %c0_i32 = arith.constant 0 : i32
    %c0_i32_0 = arith.constant 0 : i32
    %c0_i32_1 = arith.constant 0 : i32
    return %c0_i32, %c0_i32_0 : i32, i32
  }
  func.func @transform_6(%arg0: i32) -> (i32, i32) {
    %c0_i32 = arith.constant 0 : i32
    %c0_i32_0 = arith.constant 0 : i32
    %c0_i32_1 = arith.constant 0 : i32
    return %c0_i32, %c0_i32_0 : i32, i32
  }
  func.func @transform_7(%arg0: i32) -> (i32, i32) {
    %c0_i32 = arith.constant 0 : i32
    %c0_i32_0 = arith.constant 0 : i32
    %c0_i32_1 = arith.constant 0 : i32
    return %c0_i32, %c0_i32_0 : i32, i32
  }
  func.func @transform_8(%arg0: i32) -> (i32, i32, i32) {
    %c0_i32 = arith.constant 0 : i32
    %c0_i32_0 = arith.constant 0 : i32
    %c0_i32_1 = arith.constant 0 : i32
    %c0_i32_2 = arith.constant 0 : i32
    return %c0_i32, %c0_i32_0, %c0_i32_1 : i32, i32, i32
  }
  func.func @transform_9(%arg0: i32) -> (i32, i32, i32) {
    %c0_i32 = arith.constant 0 : i32
    %c0_i32_0 = arith.constant 0 : i32
    %c0_i32_1 = arith.constant 0 : i32
    %c0_i32_2 = arith.constant 0 : i32
    return %c0_i32, %c0_i32_0, %c0_i32_1 : i32, i32, i32
  }
}

</mosaic_0001>

<llo_original>
// kernel: enc_lstm_forward.1
$region0: #{enc_lstm_forward.1}
  #allocation0 [shape = 'u32[]', space=smem, size = 0x4, offset = 0x4, fixed_abs, tag = 'smem constant byte address 0x4 - core index']
  #allocation1 [shape = 'u32[72,128]{1,0:T(1,128)}', space=vmem, size = 0x9000, scoped, tag = 'internal scratch']
  #allocation2 [shape = 'f32[16,256]{1,0:T(8,128)}', space=vmem, size = 0x4000, scoped, tag = 'scratch operand']
  #allocation3 [shape = 'bf16[16,64]{1,0:T(8,128)(2,1)}', space=vmem, size = 0x1000, scoped, tag = 'scratch operand']
  %s0 = inlined_call_operand.vmem [shape: bf16[16,16], index: 0, kind: input, shape index: {}]
  %s1 = inlined_call_operand.vmem [shape: bf16[16,256], index: 1, kind: input, shape index: {}]
  %s2 = inlined_call_operand.vmem [shape: f32[64,256], index: 2, kind: input, shape index: {}]
  %s3 = inlined_call_operand.vmem [shape: f32[1,256], index: 3, kind: input, shape index: {}]
  %s4 = inlined_call_operand.vmem [shape: bf16[64,256], index: 4, kind: input, shape index: {}]
  %s5 = inlined_call_operand.vmem [shape: f32[64,256], index: 5, kind: input, shape index: {}]
  %s6 = inlined_call_operand.vmem [shape: f32[1,256], index: 6, kind: input, shape index: {}]
  %s7 = inlined_call_operand.vmem [shape: f32[16,64], index: 7, kind: output, shape index: {0}]
  %s8 = inlined_call_operand.hbm [shape: f32[4,2,32], index: 8, kind: output, shape index: {1}]
  %s9 = inlined_call_operand.hbm [shape: f32[4,2,32], index: 9, kind: output, shape index: {2}]
  %10 = xla_tuple %s7, %s8, %s9
  %s11 = sld [smem:[#allocation0]]
  $region54: #{enc_lstm_forward.1} parent=0
    _
  %s13 = ssub.s32 1, %s11
  %s14 = scalar_select 0, %s13, %s11
  $region1: #{enc_lstm_forward.1} parent=0
    #allocation4 [shape = 'u8[4096]{0}', space=vmem, size = 0x1000, scoped, tag = 'output window, operand 1, single buffered']
    #allocation5 [shape = 's32[1]{0}', space=sflag, size = 0x4, scoped, tag = 'scoped memory for enc_lstm_forward.1']
    #allocation6 [shape = 'u8[4096]{0}', space=vmem, size = 0x1000, scoped, tag = 'output window, operand 2, single buffered']
    #allocation7 [shape = 's32[1]{0}', space=sflag, size = 0x4, scoped, tag = 'scoped memory for enc_lstm_forward.1']
    %15 = vsyncpa [#allocation5], 0
    %16 = vsyncpa [#allocation7], 0
    // Predicated region
    $region2: #{enc_lstm_forward.1} parent=1 // pred_check
      _
    $region3: #{enc_lstm_forward.1} parent=1 // pred_check_branch
      %18 = sbr.rel (0) target = $region5
    $region4: #{enc_lstm_forward.1} parent=1 // pred_region
      _
    $region5: #{enc_lstm_forward.1} parent=1 // pred_fallthru
      _
    // Predicated region
    $region6: #{enc_lstm_forward.1} parent=1 // pred_check
      _
    $region7: #{enc_lstm_forward.1} parent=1 // pred_check_branch
      %20 = sbr.rel (0) target = $region9
    $region8: #{enc_lstm_forward.1} parent=1 // pred_region
      _
    $region9: #{enc_lstm_forward.1} parent=1 // pred_fallthru
      _
    // Predicated region
    $region10: #{enc_lstm_forward.1} parent=1 // pred_check
      _
    $region11: #{enc_lstm_forward.1} parent=1 // pred_check_branch
      %22 = sbr.rel (0) target = $region13
    $region12: #{enc_lstm_forward.1} parent=1 // pred_region
      _
    $region13: #{enc_lstm_forward.1} parent=1 // pred_fallthru
      _
    // Predicated region
    $region14: #{enc_lstm_forward.1} parent=1 // pred_check
      _
    $region15: #{enc_lstm_forward.1} parent=1 // pred_check_branch
      %24 = sbr.rel (0) target = $region17
    $region16: #{enc_lstm_forward.1} parent=1 // pred_region
      _
    $region17: #{enc_lstm_forward.1} parent=1 // pred_fallthru
      _
    // Predicated region
    $region18: #{enc_lstm_forward.1} parent=1 // pred_check
      _
    $region19: #{enc_lstm_forward.1} parent=1 // pred_check_branch
      %26 = sbr.rel (0) target = $region21
    $region20: #{enc_lstm_forward.1} parent=1 // pred_region
      _
    $region21: #{enc_lstm_forward.1} parent=1 // pred_fallthru
      _
    // Predicated region
    $region22: #{enc_lstm_forward.1} parent=1 // pred_check
      _
    $region23: #{enc_lstm_forward.1} parent=1 // pred_check_branch
      %28 = sbr.rel (0) target = $region25
    $region24: #{enc_lstm_forward.1} parent=1 // pred_region
      _
    $region25: #{enc_lstm_forward.1} parent=1 // pred_fallthru
      _
    // Predicated region
    $region26: #{enc_lstm_forward.1} parent=1 // pred_check
      _
    $region27: #{enc_lstm_forward.1} parent=1 // pred_check_branch
      %30 = sbr.rel (0) target = $region29
    $region28: #{enc_lstm_forward.1} parent=1 // pred_region
      _
    $region29: #{enc_lstm_forward.1} parent=1 // pred_fallthru
      _
    %v32 = vlaneseq
    %v33 = vand.u32 %v32, 127
    %v34 = vadd.s32 %v33, 128
    %vm35 = vcmp.lt.s32.totalorder %v33, 0
    %v36 = vsub.s32 0, %v33
    %v37 = vsel %vm35, %v36, %v33
    %v38 = vshrl.u32 %v37, 6
    %v39 = vand.u32 %v37, 63
    %v40 = vsub.s32 0, %v39
    %v41 = vsel %vm35, %v40, %v39
    %vm42 = vcmp.lt.s32.totalorder %v34, 0
    %v43 = vsub.s32 0, %v34
    %v44 = vsel %vm42, %v43, %v34
    %v45 = vshrl.u32 %v44, 6
    %v46 = vand.u32 %v44, 63
    %v47 = vsub.s32 0, %v46
    %v48 = vsel %vm42, %v47, %v46
    %vm49 = vcmp.ne.s32.totalorder %v41, 0
    %vm50 = vcmp.ne.s32.totalorder %v48, 0
    %vm51 = vcmp.lt.s32.totalorder %v41, 0
    %vm52 = vcmp.lt.s32.totalorder %v48, 0
    %vm53 = vmand %vm51, %vm49
    %vm54 = vmand %vm52, %vm50
    %v55 = vadd.s32 %v41, 64
    %v56 = vadd.s32 %v48, 64
    %v57 = vsel %vm53, %v55, %v41
    %v58 = vsel %vm54, %v56, %v48
    %vm59 = vcmp.ge.s32.totalorder %v57, 32
    %vm60 = vcmp.ge.s32.totalorder %v58, 32
    %v61 = vld [vmem:[%s1] sm:$0xff]
    %v62 = vld [vmem:[%s1 + $0x8] sm:$0xff]
    %v63 = vld [vmem:[%s2] sm:$0xff]
    %v64 = vld [vmem:[%s2 + $0x8] sm:$0xff]
    %v65 = vld [vmem:[%s2 + $0x10] sm:$0xff]
    %v66 = vld [vmem:[%s2 + $0x18] sm:$0xff]
    %v67 = vld [vmem:[%s2 + $0x20] sm:$0xff]
    %v68 = vld [vmem:[%s2 + $0x28] sm:$0xff]
    %v69 = vld [vmem:[%s2 + $0x30] sm:$0xff]
    %v70 = vld [vmem:[%s2 + $0x38] sm:$0xff]
    %v71 = vld [vmem:[%s2 + $0x40] sm:$0xff]
    %v72 = vld [vmem:[%s2 + $0x48] sm:$0xff]
    %v73 = vld [vmem:[%s2 + $0x50] sm:$0xff]
    %v74 = vld [vmem:[%s2 + $0x58] sm:$0xff]
    %v75 = vld [vmem:[%s2 + $0x60] sm:$0xff]
    %v76 = vld [vmem:[%s2 + $0x68] sm:$0xff]
    %v77 = vld [vmem:[%s2 + $0x70] sm:$0xff]
    %v78 = vld [vmem:[%s2 + $0x78] sm:$0xff]
    %v79 = vld [vmem:[%s3] sm:$0x3]
    %v80 = vld [vmem:[%s0] sm:$0xf]
    %v81 = vld [vmem:[%s0 + $0x4] sm:$0xf]
    %v83 = vperm.slane %v79, 0
    %v84 = vperm.slane %v79, 1
    %v89 = vunpack.c.l.b16 %v80
    %v90 = vunpack.c.l.b16 %v81
    %v91 = vpack.c.b16 %v90, %v89
    %v94 = vunpack.c.l.b16 %v61
    %v95 = vunpack.c.h.b16 %v61
    %v96 = vunpack.c.l.b16 %v62
    %v97 = vunpack.c.h.b16 %v62
    %v98 = vpack.c.b16 %v96, %v94
    %v99 = vpack.c.b16 %v97, %v95
    %vm102 = vcmask 130048
    %v104 = vsel %vm102, %v91, 0
    %106 = vmatpush.bf16.msra.mxu0 0
    %107 = vmatpush.bf16.msra.mxu0 0
    %108 = vmatpush.bf16.msra.mxu0 0
    %109 = vmatpush.bf16.msra.mxu0 0
    %110 = vmatpush.bf16.msra.mxu0 0
    %111 = vmatpush.bf16.msra.mxu0 0
    %112 = vmatpush.bf16.msra.mxu0 0
    %113 = vmatpush.bf16.msra.mxu0 %v98
    %114 = vmatmul.bf16.gmra.mxu0 %v104
    %v115 = vpop.f32.mrf.mxu0
    %v116 = vadd.f32 %v83, %v115
    %v117 = vpop.f32.mrf.mxu0
    %v118 = vadd.f32 %v83, %v117
    %119 = vdwg.mxu0
    %120 = vmatpush.bf16.msra.mxu0 0
    %121 = vmatpush.bf16.msra.mxu0 0
    %122 = vmatpush.bf16.msra.mxu0 0
    %123 = vmatpush.bf16.msra.mxu0 0
    %124 = vmatpush.bf16.msra.mxu0 0
    %125 = vmatpush.bf16.msra.mxu0 0
    %126 = vmatpush.bf16.msra.mxu0 0
    %127 = vmatpush.bf16.msra.mxu0 %v99
    %128 = vmatmul.bf16.gmra.mxu0 %v104
    %v129 = vpop.f32.mrf.mxu0
    %v130 = vadd.f32 %v84, %v129
    %v131 = vpop.f32.mrf.mxu0
    %v132 = vadd.f32 %v84, %v131
    %133 = vdwg.mxu0
    %134 = vst [vmem:[#allocation2] sm:$0xff] %v116
    %135 = vst [vmem:[#allocation2 + $0x8] sm:$0xff] %v130
    %136 = vst [vmem:[#allocation2 + $0x10] sm:$0xff] %v118
    %137 = vst [vmem:[#allocation2 + $0x18] sm:$0xff] %v132
    %v138 = vld [vmem:[#allocation2] sm:$0x3]
    %v139 = vld [vmem:[#allocation2 + $0x8] sm:$0x3]
    %v140 = vld [vmem:[#allocation2 + $0x10] sm:$0xc0]
    %v141 = vld [vmem:[#allocation2 + $0x18] sm:$0xc0]
    %vm142 = vcmask 523264
    %v144 = vsel %vm142, 0.0, 0
    %146 = vmatpush.msra.mxu0 0.0
    %147 = vmatpush.msra.mxu0 0.0
    %148 = vmatpush.msra.mxu0 0.0
    %149 = vmatpush.msra.mxu0 0.0
    %150 = vmatpush.msra.mxu0 0.0
    %151 = vmatpush.msra.mxu0 0.0
    %152 = vmatpush.msra.mxu0 0.0
    %153 = vmatpush.msra.mxu0 0.0
    %154 = vmatpush.msra.mxu0 %v77
    %155 = vmatpush.msra.mxu0 %v75
    %156 = vmatpush.msra.mxu0 %v73
    %157 = vmatpush.msra.mxu0 %v71
    %158 = vmatpush.msra.mxu0 %v69
    %159 = vmatpush.msra.mxu0 %v67
    %160 = vmatpush.msra.mxu0 %v65
    %161 = vmatpush.msra.mxu0 %v63
    %162 = vmatmul.f32.gmra.mxu0 %v144
    %v163 = vpop.f32.mrf.mxu0
    %v164 = vadd.f32 0.0, %v163
    %165 = vdwg.mxu0
    %166 = vmatpush.msra.mxu0 0.0
    %167 = vmatpush.msra.mxu0 0.0
    %168 = vmatpush.msra.mxu0 0.0
    %169 = vmatpush.msra.mxu0 0.0
    %170 = vmatpush.msra.mxu0 0.0
    %171 = vmatpush.msra.mxu0 0.0
    %172 = vmatpush.msra.mxu0 0.0
    %173 = vmatpush.msra.mxu0 0.0
    %174 = vmatpush.msra.mxu0 %v78
    %175 = vmatpush.msra.mxu0 %v76
    %176 = vmatpush.msra.mxu0 %v74
    %177 = vmatpush.msra.mxu0 %v72
    %178 = vmatpush.msra.mxu0 %v70
    %179 = vmatpush.msra.mxu0 %v68
    %180 = vmatpush.msra.mxu0 %v66
    %181 = vmatpush.msra.mxu0 %v64
    %182 = vmatmul.f32.gmra.mxu0 %v144
    %v183 = vpop.f32.mrf.mxu0
    %v184 = vadd.f32 0.0, %v183
    %185 = vdwg.mxu0
    %v186 = vsel %vm59, 1, 0
    %v187 = vsel %vm60, 1, 0
    %vm188 = vcmp.eq.s32.totalorder %v186, 1
    %vm189 = vcmp.eq.s32.totalorder %v187, 1
    %v192 = vrot.slane %v138, 2
    %v193 = vrot.slane %v139, 2
    %v196 = vsel %vm188, %v140, %v192
    %v197 = vsel %vm189, %v141, %v193
    %v200 = vrot.slane %v164, 2
    %v201 = vrot.slane %v184, 2
    %v204 = vadd.f32 %v196, %v200
    %v205 = vadd.f32 %v197, %v201
    %v206 = vxor.u32 %v204, 2147483648
    %v207 = vmul.f32 %v206, 1.442695
    %v208 = vpow.pop %v207
    %v209 = vadd.f32 %v208, 1.0
    %v210 = vrcp.pop %v209
    %v211 = vmul.f32 %v209, %v210
    %v212 = vsub.f32 1.0, %v211
    %v213 = vmul.f32 %v210, %v212
    %v214 = vadd.f32 %v210, %v213
    %vm215 = vweird.f32 %v209
    %vm216 = vweird.f32 %v210
    %vm217 = vmor %vm215, %vm216
    %v218 = vsel %vm217, %v210, %v214
    %v219 = vand.u32 2147483647, %v209
    %vm220 = vcmp.eq.f32.partialorder %v219, 8.507059e+37
    %v221 = vand.u32 %v209, 2147483648
    %v222 = vor.u32 1.1754944e-38, %v221
    %v223 = vsel %vm220, %v222, %v218
    %v224 = vmul.f32 1.0, %v223
    %v225 = vtanh.pop %v205
    %v226 = vxor.u32 %v205, 2147483648
    %v227 = vmul.f32 %v226, 1.442695
    %v228 = vpow.pop %v227
    %v229 = vadd.f32 %v228, 1.0
    %v230 = vrcp.pop %v229
    %v231 = vmul.f32 %v229, %v230
    %v232 = vsub.f32 1.0, %v231
    %v233 = vmul.f32 %v230, %v232
    %v234 = vadd.f32 %v230, %v233
    %vm235 = vweird.f32 %v229
    %vm236 = vweird.f32 %v230
    %vm237 = vmor %vm235, %vm236
    %v238 = vsel %vm237, %v230, %v234
    %v239 = vand.u32 2147483647, %v229
    %vm240 = vcmp.eq.f32.partialorder %v239, 8.507059e+37
    %v241 = vand.u32 %v229, 2147483648
    %v242 = vor.u32 1.1754944e-38, %v241
    %v243 = vsel %vm240, %v242, %v238
    %v244 = vmul.f32 1.0, %v243
    %v245 = vmul.f32 %v224, 0.0
    %v246 = vmul.f32 %v224, %v225
    %248 = vrot.lane.b32.xlu0 %v246, 64
    %v249 = vpop.permute.xlu0 %248
    %v251 = vadd.f32 %v245, %v249
    %v252 = vtanh.pop %v251
    %v253 = vmul.f32 %v244, %v252
    %v254 = vpack.c.bf16 %v253, %v253
    %v256 = vrot.slane %v254, 7
    %v257 = vrot.slane %v256, 4
    %258 = vrot.lane.b32.xlu0 %v257, 64
    %v259 = vpop.permute.xlu0 %258
    %vm261 = vcmask 253952
    %262 = vst.msk [vmem:[#allocation3] sm:$0x1] %vm261, %v259
    %263 = vrot.lane.b32.xlu0 %v254, 64
    %v264 = vpop.permute.xlu0 %263
    %vm266 = vcmask 519427
    %267 = vst.msk [vmem:[#allocation3 + $0x4] sm:$0x8] %vm266, %v264
    %v268 = vld [vmem:[#allocation2] sm:$0xc]
    %v269 = vld [vmem:[#allocation2 + $0x8] sm:$0xc]
    %v270 = vld [vmem:[#allocation2 + $0x10] sm:$0x30]
    %v271 = vld [vmem:[#allocation2 + $0x18] sm:$0x30]
    %v273 = vrot.slane %v253, 6
    %274 = vrot.lane.b32.xlu0 %v273, 64
    %v275 = vpop.permute.xlu0 %274
    %v276 = vsel %vm142, %v275, 0
    %278 = vmatpush.msra.mxu0 0.0
    %279 = vmatpush.msra.mxu0 0.0
    %280 = vmatpush.msra.mxu0 0.0
    %281 = vmatpush.msra.mxu0 0.0
    %282 = vmatpush.msra.mxu0 0.0
    %283 = vmatpush.msra.mxu0 0.0
    %284 = vmatpush.msra.mxu0 0.0
    %285 = vmatpush.msra.mxu0 0.0
    %286 = vmatpush.msra.mxu0 %v77
    %287 = vmatpush.msra.mxu0 %v75
    %288 = vmatpush.msra.mxu0 %v73
    %289 = vmatpush.msra.mxu0 %v71
    %290 = vmatpush.msra.mxu0 %v69
    %291 = vmatpush.msra.mxu0 %v67
    %292 = vmatpush.msra.mxu0 %v65
    %293 = vmatpush.msra.mxu0 %v63
    %294 = vmatmul.f32.gmra.mxu0 %v276
    %v295 = vpop.f32.mrf.mxu0
    %v296 = vadd.f32 0.0, %v295
    %297 = vdwg.mxu0
    %298 = vmatpush.msra.mxu0 0.0
    %299 = vmatpush.msra.mxu0 0.0
    %300 = vmatpush.msra.mxu0 0.0
    %301 = vmatpush.msra.mxu0 0.0
    %302 = vmatpush.msra.mxu0 0.0
    %303 = vmatpush.msra.mxu0 0.0
    %304 = vmatpush.msra.mxu0 0.0
    %305 = vmatpush.msra.mxu0 0.0
    %306 = vmatpush.msra.mxu0 %v78
    %307 = vmatpush.msra.mxu0 %v76
    %308 = vmatpush.msra.mxu0 %v74
    %309 = vmatpush.msra.mxu0 %v72
    %310 = vmatpush.msra.mxu0 %v70
    %311 = vmatpush.msra.mxu0 %v68
    %312 = vmatpush.msra.mxu0 %v66
    %313 = vmatpush.msra.mxu0 %v64
    %314 = vmatmul.f32.gmra.mxu0 %v276
    %v315 = vpop.f32.mrf.mxu0
    %v316 = vadd.f32 0.0, %v315
    %317 = vdwg.mxu0
    %v320 = vrot.slane %v268, 6
    %v321 = vrot.slane %v269, 6
    %v324 = vsel %vm188, %v270, %v320
    %v325 = vsel %vm189, %v271, %v321
    %v328 = vrot.slane %v296, 4
    %v329 = vrot.slane %v316, 4
    %v332 = vadd.f32 %v324, %v328
    %v333 = vadd.f32 %v325, %v329
    %v334 = vxor.u32 %v332, 2147483648
    %v335 = vmul.f32 %v334, 1.442695
    %v336 = vpow.pop %v335
    %v337 = vadd.f32 %v336, 1.0
    %v338 = vrcp.pop %v337
    %v339 = vmul.f32 %v337, %v338
    %v340 = vsub.f32 1.0, %v339
    %v341 = vmul.f32 %v338, %v340
    %v342 = vadd.f32 %v338, %v341
    %vm343 = vweird.f32 %v337
    %vm344 = vweird.f32 %v338
    %vm345 = vmor %vm343, %vm344
    %v346 = vsel %vm345, %v338, %v342
    %v347 = vand.u32 2147483647, %v337
    %vm348 = vcmp.eq.f32.partialorder %v347, 8.507059e+37
    %v349 = vand.u32 %v337, 2147483648
    %v350 = vor.u32 1.1754944e-38, %v349
    %v351 = vsel %vm348, %v350, %v346
    %v352 = vmul.f32 1.0, %v351
    %v353 = vtanh.pop %v333
    %v354 = vxor.u32 %v333, 2147483648
    %v355 = vmul.f32 %v354, 1.442695
    %v356 = vpow.pop %v355
    %v357 = vadd.f32 %v356, 1.0
    %v358 = vrcp.pop %v357
    %v359 = vmul.f32 %v357, %v358
    %v360 = vsub.f32 1.0, %v359
    %v361 = vmul.f32 %v358, %v360
    %v362 = vadd.f32 %v358, %v361
    %vm363 = vweird.f32 %v357
    %vm364 = vweird.f32 %v358
    %vm365 = vmor %vm363, %vm364
    %v366 = vsel %vm365, %v358, %v362
    %v367 = vand.u32 2147483647, %v357
    %vm368 = vcmp.eq.f32.partialorder %v367, 8.507059e+37
    %v369 = vand.u32 %v357, 2147483648
    %v370 = vor.u32 1.1754944e-38, %v369
    %v371 = vsel %vm368, %v370, %v366
    %v372 = vmul.f32 1.0, %v371
    %v374 = vrot.slane %v251, 2
    %v376 = vmul.f32 %v352, %v374
    %v377 = vmul.f32 %v352, %v353
    %379 = vrot.lane.b32.xlu0 %v377, 64
    %v380 = vpop.permute.xlu0 %379
    %v382 = vadd.f32 %v376, %v380
    %v383 = vtanh.pop %v382
    %v384 = vmul.f32 %v372, %v383
    %v385 = vpack.c.bf16 %v384, %v384
    %v387 = vrot.slane %v385, 5
    %v388 = vrot.slane %v387, 4
    %389 = vrot.lane.b32.xlu0 %v388, 64
    %v390 = vpop.permute.xlu0 %389
    %vm392 = vcmask 254977
    %393 = vst.msk [vmem:[#allocation3] sm:$0x2] %vm392, %v390
    %394 = vrot.lane.b32.xlu0 %v385, 64
    %v395 = vpop.permute.xlu0 %394
    %vm397 = vcmask 518402
    %398 = vst.msk [vmem:[#allocation3 + $0x4] sm:$0x4] %vm397, %v395
    %v399 = vld [vmem:[#allocation2] sm:$0x30]
    %v400 = vld [vmem:[#allocation2 + $0x8] sm:$0x30]
    %v401 = vld [vmem:[#allocation2 + $0x10] sm:$0xc]
    %v402 = vld [vmem:[#allocation2 + $0x18] sm:$0xc]
    %v404 = vrot.slane %v384, 4
    %405 = vrot.lane.b32.xlu0 %v404, 64
    %v406 = vpop.permute.xlu0 %405
    %v407 = vsel %vm142, %v406, 0
    %409 = vmatpush.msra.mxu0 0.0
    %410 = vmatpush.msra.mxu0 0.0
    %411 = vmatpush.msra.mxu0 0.0
    %412 = vmatpush.msra.mxu0 0.0
    %413 = vmatpush.msra.mxu0 0.0
    %414 = vmatpush.msra.mxu0 0.0
    %415 = vmatpush.msra.mxu0 0.0
    %416 = vmatpush.msra.mxu0 0.0
    %417 = vmatpush.msra.mxu0 %v77
    %418 = vmatpush.msra.mxu0 %v75
    %419 = vmatpush.msra.mxu0 %v73
    %420 = vmatpush.msra.mxu0 %v71
    %421 = vmatpush.msra.mxu0 %v69
    %422 = vmatpush.msra.mxu0 %v67
    %423 = vmatpush.msra.mxu0 %v65
    %424 = vmatpush.msra.mxu0 %v63
    %425 = vmatmul.f32.gmra.mxu0 %v407
    %v426 = vpop.f32.mrf.mxu0
    %v427 = vadd.f32 0.0, %v426
    %428 = vdwg.mxu0
    %429 = vmatpush.msra.mxu0 0.0
    %430 = vmatpush.msra.mxu0 0.0
    %431 = vmatpush.msra.mxu0 0.0
    %432 = vmatpush.msra.mxu0 0.0
    %433 = vmatpush.msra.mxu0 0.0
    %434 = vmatpush.msra.mxu0 0.0
    %435 = vmatpush.msra.mxu0 0.0
    %436 = vmatpush.msra.mxu0 0.0
    %437 = vmatpush.msra.mxu0 %v78
    %438 = vmatpush.msra.mxu0 %v76
    %439 = vmatpush.msra.mxu0 %v74
    %440 = vmatpush.msra.mxu0 %v72
    %441 = vmatpush.msra.mxu0 %v70
    %442 = vmatpush.msra.mxu0 %v68
    %443 = vmatpush.msra.mxu0 %v66
    %444 = vmatpush.msra.mxu0 %v64
    %445 = vmatmul.f32.gmra.mxu0 %v407
    %v446 = vpop.f32.mrf.mxu0
    %v447 = vadd.f32 0.0, %v446
    %448 = vdwg.mxu0
    %v451 = vrot.slane %v399, 2
    %v452 = vrot.slane %v400, 2
    %v455 = vsel %vm188, %v401, %v451
    %v456 = vsel %vm189, %v402, %v452
    %v459 = vrot.slane %v427, 6
    %v460 = vrot.slane %v447, 6
    %v463 = vadd.f32 %v455, %v459
    %v464 = vadd.f32 %v456, %v460
    %v465 = vxor.u32 %v463, 2147483648
    %v466 = vmul.f32 %v465, 1.442695
    %v467 = vpow.pop %v466
    %v468 = vadd.f32 %v467, 1.0
    %v469 = vrcp.pop %v468
    %v470 = vmul.f32 %v468, %v469
    %v471 = vsub.f32 1.0, %v470
    %v472 = vmul.f32 %v469, %v471
    %v473 = vadd.f32 %v469, %v472
    %vm474 = vweird.f32 %v468
    %vm475 = vweird.f32 %v469
    %vm476 = vmor %vm474, %vm475
    %v477 = vsel %vm476, %v469, %v473
    %v478 = vand.u32 2147483647, %v468
    %vm479 = vcmp.eq.f32.partialorder %v478, 8.507059e+37
    %v480 = vand.u32 %v468, 2147483648
    %v481 = vor.u32 1.1754944e-38, %v480
    %v482 = vsel %vm479, %v481, %v477
    %v483 = vmul.f32 1.0, %v482
    %v484 = vtanh.pop %v464
    %v485 = vxor.u32 %v464, 2147483648
    %v486 = vmul.f32 %v485, 1.442695
    %v487 = vpow.pop %v486
    %v488 = vadd.f32 %v487, 1.0
    %v489 = vrcp.pop %v488
    %v490 = vmul.f32 %v488, %v489
    %v491 = vsub.f32 1.0, %v490
    %v492 = vmul.f32 %v489, %v491
    %v493 = vadd.f32 %v489, %v492
    %vm494 = vweird.f32 %v488
    %vm495 = vweird.f32 %v489
    %vm496 = vmor %vm494, %vm495
    %v497 = vsel %vm496, %v489, %v493
    %v498 = vand.u32 2147483647, %v488
    %vm499 = vcmp.eq.f32.partialorder %v498, 8.507059e+37
    %v500 = vand.u32 %v488, 2147483648
    %v501 = vor.u32 1.1754944e-38, %v500
    %v502 = vsel %vm499, %v501, %v497
    %v503 = vmul.f32 1.0, %v502
    %v505 = vrot.slane %v382, 2
    %v507 = vmul.f32 %v483, %v505
    %v508 = vmul.f32 %v483, %v484
    %510 = vrot.lane.b32.xlu0 %v508, 64
    %v511 = vpop.permute.xlu0 %510
    %v513 = vadd.f32 %v507, %v511
    %v514 = vtanh.pop %v513
    %v515 = vmul.f32 %v503, %v514
    %v516 = vpack.c.bf16 %v515, %v515
    %v518 = vrot.slane %v516, 7
    %519 = vrot.lane.b32.xlu0 %v518, 64
    %v520 = vpop.permute.xlu0 %519
    %vm522 = vcmask 256002
    %523 = vst.msk [vmem:[#allocation3] sm:$0x4] %vm522, %v520
    %524 = vrot.lane.b32.xlu0 %v516, 64
    %v525 = vpop.permute.xlu0 %524
    %vm527 = vcmask 517377
    %528 = vst.msk [vmem:[#allocation3 + $0x4] sm:$0x2] %vm527, %v525
    %v529 = vld [vmem:[#allocation2] sm:$0xc0]
    %v530 = vld [vmem:[#allocation2 + $0x8] sm:$0xc0]
    %v531 = vld [vmem:[#allocation2 + $0x10] sm:$0x3]
    %v532 = vld [vmem:[#allocation2 + $0x18] sm:$0x3]
    %v534 = vrot.slane %v515, 2
    %535 = vrot.lane.b32.xlu0 %v534, 64
    %v536 = vpop.permute.xlu0 %535
    %v537 = vsel %vm142, %v536, 0
    %539 = vmatpush.msra.mxu0 0.0
    %540 = vmatpush.msra.mxu0 0.0
    %541 = vmatpush.msra.mxu0 0.0
    %542 = vmatpush.msra.mxu0 0.0
    %543 = vmatpush.msra.mxu0 0.0
    %544 = vmatpush.msra.mxu0 0.0
    %545 = vmatpush.msra.mxu0 0.0
    %546 = vmatpush.msra.mxu0 0.0
    %547 = vmatpush.msra.mxu0 %v77
    %548 = vmatpush.msra.mxu0 %v75
    %549 = vmatpush.msra.mxu0 %v73
    %550 = vmatpush.msra.mxu0 %v71
    %551 = vmatpush.msra.mxu0 %v69
    %552 = vmatpush.msra.mxu0 %v67
    %553 = vmatpush.msra.mxu0 %v65
    %554 = vmatpush.msra.mxu0 %v63
    %555 = vmatmul.f32.gmra.mxu0 %v537
    %v556 = vpop.f32.mrf.mxu0
    %v557 = vadd.f32 0.0, %v556
    %558 = vdwg.mxu0
    %559 = vmatpush.msra.mxu0 0.0
    %560 = vmatpush.msra.mxu0 0.0
    %561 = vmatpush.msra.mxu0 0.0
    %562 = vmatpush.msra.mxu0 0.0
    %563 = vmatpush.msra.mxu0 0.0
    %564 = vmatpush.msra.mxu0 0.0
    %565 = vmatpush.msra.mxu0 0.0
    %566 = vmatpush.msra.mxu0 0.0
    %567 = vmatpush.msra.mxu0 %v78
    %568 = vmatpush.msra.mxu0 %v76
    %569 = vmatpush.msra.mxu0 %v74
    %570 = vmatpush.msra.mxu0 %v72
    %571 = vmatpush.msra.mxu0 %v70
    %572 = vmatpush.msra.mxu0 %v68
    %573 = vmatpush.msra.mxu0 %v66
    %574 = vmatpush.msra.mxu0 %v64
    %575 = vmatmul.f32.gmra.mxu0 %v537
    %v576 = vpop.f32.mrf.mxu0
    %v577 = vadd.f32 0.0, %v576
    %578 = vdwg.mxu0
    %v581 = vrot.slane %v529, 6
    %v582 = vrot.slane %v530, 6
    %v585 = vsel %vm188, %v531, %v581
    %v586 = vsel %vm189, %v532, %v582
    %v587 = vadd.f32 %v585, %v557
    %v588 = vadd.f32 %v586, %v577
    %v589 = vxor.u32 %v587, 2147483648
    %v590 = vmul.f32 %v589, 1.442695
    %v591 = vpow.pop %v590
    %v592 = vadd.f32 %v591, 1.0
    %v593 = vrcp.pop %v592
    %v594 = vmul.f32 %v592, %v593
    %v595 = vsub.f32 1.0, %v594
    %v596 = vmul.f32 %v593, %v595
    %v597 = vadd.f32 %v593, %v596
    %vm598 = vweird.f32 %v592
    %vm599 = vweird.f32 %v593
    %vm600 = vmor %vm598, %vm599
    %v601 = vsel %vm600, %v593, %v597
    %v602 = vand.u32 2147483647, %v592
    %vm603 = vcmp.eq.f32.partialorder %v602, 8.507059e+37
    %v604 = vand.u32 %v592, 2147483648
    %v605 = vor.u32 1.1754944e-38, %v604
    %v606 = vsel %vm603, %v605, %v601
    %v607 = vmul.f32 1.0, %v606
    %v608 = vtanh.pop %v588
    %v609 = vxor.u32 %v588, 2147483648
    %v610 = vmul.f32 %v609, 1.442695
    %v611 = vpow.pop %v610
    %v612 = vadd.f32 %v611, 1.0
    %v613 = vrcp.pop %v612
    %v614 = vmul.f32 %v612, %v613
    %v615 = vsub.f32 1.0, %v614
    %v616 = vmul.f32 %v613, %v615
    %v617 = vadd.f32 %v613, %v616
    %vm618 = vweird.f32 %v612
    %vm619 = vweird.f32 %v613
    %vm620 = vmor %vm618, %vm619
    %v621 = vsel %vm620, %v613, %v617
    %v622 = vand.u32 2147483647, %v612
    %vm623 = vcmp.eq.f32.partialorder %v622, 8.507059e+37
    %v624 = vand.u32 %v612, 2147483648
    %v625 = vor.u32 1.1754944e-38, %v624
    %v626 = vsel %vm623, %v625, %v621
    %v627 = vmul.f32 1.0, %v626
    %v629 = vrot.slane %v513, 2
    %v631 = vmul.f32 %v607, %v629
    %v632 = vmul.f32 %v607, %v608
    %634 = vrot.lane.b32.xlu0 %v632, 64
    %v635 = vpop.permute.xlu0 %634
    %v637 = vadd.f32 %v631, %v635
    %v638 = vtanh.pop %v637
    %v639 = vmul.f32 %v627, %v638
    %v640 = vpack.c.bf16 %v639, %v639
    %v642 = vrot.slane %v640, 5
    %643 = vrot.lane.b32.xlu0 %v642, 64
    %v644 = vpop.permute.xlu0 %643
    %vm646 = vcmask 257027
    %647 = vst.msk [vmem:[#allocation3] sm:$0x8] %vm646, %v644
    %648 = vrot.lane.b32.xlu0 %v640, 64
    %v649 = vpop.permute.xlu0 %648
    %vm651 = vcmask 516352
    %652 = vst.msk [vmem:[#allocation3 + $0x4] sm:$0x1] %vm651, %v649
    %v653 = vld [vmem:[#allocation2 + $0x10] sm:$0x3]
    %v654 = vld [vmem:[#allocation2 + $0x18] sm:$0x3]
    %v655 = vld [vmem:[#allocation2] sm:$0xc0]
    %v656 = vld [vmem:[#allocation2 + $0x8] sm:$0xc0]
    %658 = vrot.lane.b32.xlu0 %v639, 64
    %v659 = vpop.permute.xlu0 %658
    %v660 = vsel %vm142, %v659, 0
    %662 = vmatpush.msra.mxu0 0.0
    %663 = vmatpush.msra.mxu0 0.0
    %664 = vmatpush.msra.mxu0 0.0
    %665 = vmatpush.msra.mxu0 0.0
    %666 = vmatpush.msra.mxu0 0.0
    %667 = vmatpush.msra.mxu0 0.0
    %668 = vmatpush.msra.mxu0 0.0
    %669 = vmatpush.msra.mxu0 0.0
    %670 = vmatpush.msra.mxu0 %v77
    %671 = vmatpush.msra.mxu0 %v75
    %672 = vmatpush.msra.mxu0 %v73
    %673 = vmatpush.msra.mxu0 %v71
    %674 = vmatpush.msra.mxu0 %v69
    %675 = vmatpush.msra.mxu0 %v67
    %676 = vmatpush.msra.mxu0 %v65
    %677 = vmatpush.msra.mxu0 %v63
    %678 = vmatmul.f32.gmra.mxu0 %v660
    %v679 = vpop.f32.mrf.mxu0
    %v680 = vadd.f32 0.0, %v679
    %681 = vdwg.mxu0
    %682 = vmatpush.msra.mxu0 0.0
    %683 = vmatpush.msra.mxu0 0.0
    %684 = vmatpush.msra.mxu0 0.0
    %685 = vmatpush.msra.mxu0 0.0
    %686 = vmatpush.msra.mxu0 0.0
    %687 = vmatpush.msra.mxu0 0.0
    %688 = vmatpush.msra.mxu0 0.0
    %689 = vmatpush.msra.mxu0 0.0
    %690 = vmatpush.msra.mxu0 %v78
    %691 = vmatpush.msra.mxu0 %v76
    %692 = vmatpush.msra.mxu0 %v74
    %693 = vmatpush.msra.mxu0 %v72
    %694 = vmatpush.msra.mxu0 %v70
    %695 = vmatpush.msra.mxu0 %v68
    %696 = vmatpush.msra.mxu0 %v66
    %697 = vmatpush.msra.mxu0 %v64
    %698 = vmatmul.f32.gmra.mxu0 %v660
    %v699 = vpop.f32.mrf.mxu0
    %v700 = vadd.f32 0.0, %v699
    %701 = vdwg.mxu0
    %v704 = vrot.slane %v653, 2
    %v705 = vrot.slane %v654, 2
    %v708 = vsel %vm188, %v655, %v704
    %v709 = vsel %vm189, %v656, %v705
    %v712 = vrot.slane %v680, 2
    %v713 = vrot.slane %v700, 2
    %v716 = vadd.f32 %v708, %v712
    %v717 = vadd.f32 %v709, %v713
    %v718 = vxor.u32 %v716, 2147483648
    %v719 = vmul.f32 %v718, 1.442695
    %v720 = vpow.pop %v719
    %v721 = vadd.f32 %v720, 1.0
    %v722 = vrcp.pop %v721
    %v723 = vmul.f32 %v721, %v722
    %v724 = vsub.f32 1.0, %v723
    %v725 = vmul.f32 %v722, %v724
    %v726 = vadd.f32 %v722, %v725
    %vm727 = vweird.f32 %v721
    %vm728 = vweird.f32 %v722
    %vm729 = vmor %vm727, %vm728
    %v730 = vsel %vm729, %v722, %v726
    %v731 = vand.u32 2147483647, %v721
    %vm732 = vcmp.eq.f32.partialorder %v731, 8.507059e+37
    %v733 = vand.u32 %v721, 2147483648
    %v734 = vor.u32 1.1754944e-38, %v733
    %v735 = vsel %vm732, %v734, %v730
    %v736 = vmul.f32 1.0, %v735
    %v737 = vtanh.pop %v717
    %v738 = vxor.u32 %v717, 2147483648
    %v739 = vmul.f32 %v738, 1.442695
    %v740 = vpow.pop %v739
    %v741 = vadd.f32 %v740, 1.0
    %v742 = vrcp.pop %v741
    %v743 = vmul.f32 %v741, %v742
    %v744 = vsub.f32 1.0, %v743
    %v745 = vmul.f32 %v742, %v744
    %v746 = vadd.f32 %v742, %v745
    %vm747 = vweird.f32 %v741
    %vm748 = vweird.f32 %v742
    %vm749 = vmor %vm747, %vm748
    %v750 = vsel %vm749, %v742, %v746
    %v751 = vand.u32 2147483647, %v741
    %vm752 = vcmp.eq.f32.partialorder %v751, 8.507059e+37
    %v753 = vand.u32 %v741, 2147483648
    %v754 = vor.u32 1.1754944e-38, %v753
    %v755 = vsel %vm752, %v754, %v750
    %v756 = vmul.f32 1.0, %v755
    %v758 = vrot.slane %v637, 2
    %v760 = vmul.f32 %v736, %v758
    %v761 = vmul.f32 %v736, %v737
    %763 = vrot.lane.b32.xlu0 %v761, 64
    %v764 = vpop.permute.xlu0 %763
    %v766 = vadd.f32 %v760, %v764
    %v767 = vtanh.pop %v766
    %v768 = vmul.f32 %v756, %v767
    %v769 = vpack.c.bf16 %v768, %v768
    %v771 = vrot.slane %v769, 7
    %v772 = vrot.slane %v771, 4
    %773 = vrot.lane.b32.xlu0 %v772, 64
    %v774 = vpop.permute.xlu0 %773
    %776 = vst.msk [vmem:[#allocation3 + $0x4] sm:$0x1] %vm261, %v774
    %777 = vrot.lane.b32.xlu0 %v769, 64
    %v778 = vpop.permute.xlu0 %777
    %780 = vst.msk [vmem:[#allocation3] sm:$0x8] %vm266, %v778
    %v781 = vld [vmem:[#allocation2 + $0x10] sm:$0xc]
    %v782 = vld [vmem:[#allocation2 + $0x18] sm:$0xc]
    %v783 = vld [vmem:[#allocation2] sm:$0x30]
    %v784 = vld [vmem:[#allocation2 + $0x8] sm:$0x30]
    %v786 = vrot.slane %v768, 6
    %787 = vrot.lane.b32.xlu0 %v786, 64
    %v788 = vpop.permute.xlu0 %787
    %v789 = vsel %vm142, %v788, 0
    %791 = vmatpush.msra.mxu0 0.0
    %792 = vmatpush.msra.mxu0 0.0
    %793 = vmatpush.msra.mxu0 0.0
    %794 = vmatpush.msra.mxu0 0.0
    %795 = vmatpush.msra.mxu0 0.0
    %796 = vmatpush.msra.mxu0 0.0
    %797 = vmatpush.msra.mxu0 0.0
    %798 = vmatpush.msra.mxu0 0.0
    %799 = vmatpush.msra.mxu0 %v77
    %800 = vmatpush.msra.mxu0 %v75
    %801 = vmatpush.msra.mxu0 %v73
    %802 = vmatpush.msra.mxu0 %v71
    %803 = vmatpush.msra.mxu0 %v69
    %804 = vmatpush.msra.mxu0 %v67
    %805 = vmatpush.msra.mxu0 %v65
    %806 = vmatpush.msra.mxu0 %v63
    %807 = vmatmul.f32.gmra.mxu0 %v789
    %v808 = vpop.f32.mrf.mxu0
    %v809 = vadd.f32 0.0, %v808
    %810 = vdwg.mxu0
    %811 = vmatpush.msra.mxu0 0.0
    %812 = vmatpush.msra.mxu0 0.0
    %813 = vmatpush.msra.mxu0 0.0
    %814 = vmatpush.msra.mxu0 0.0
    %815 = vmatpush.msra.mxu0 0.0
    %816 = vmatpush.msra.mxu0 0.0
    %817 = vmatpush.msra.mxu0 0.0
    %818 = vmatpush.msra.mxu0 0.0
    %819 = vmatpush.msra.mxu0 %v78
    %820 = vmatpush.msra.mxu0 %v76
    %821 = vmatpush.msra.mxu0 %v74
    %822 = vmatpush.msra.mxu0 %v72
    %823 = vmatpush.msra.mxu0 %v70
    %824 = vmatpush.msra.mxu0 %v68
    %825 = vmatpush.msra.mxu0 %v66
    %826 = vmatpush.msra.mxu0 %v64
    %827 = vmatmul.f32.gmra.mxu0 %v789
    %v828 = vpop.f32.mrf.mxu0
    %v829 = vadd.f32 0.0, %v828
    %830 = vdwg.mxu0
    %v833 = vrot.slane %v781, 6
    %v834 = vrot.slane %v782, 6
    %v837 = vsel %vm188, %v783, %v833
    %v838 = vsel %vm189, %v784, %v834
    %v841 = vrot.slane %v809, 4
    %v842 = vrot.slane %v829, 4
    %v845 = vadd.f32 %v837, %v841
    %v846 = vadd.f32 %v838, %v842
    %v847 = vxor.u32 %v845, 2147483648
    %v848 = vmul.f32 %v847, 1.442695
    %v849 = vpow.pop %v848
    %v850 = vadd.f32 %v849, 1.0
    %v851 = vrcp.pop %v850
    %v852 = vmul.f32 %v850, %v851
    %v853 = vsub.f32 1.0, %v852
    %v854 = vmul.f32 %v851, %v853
    %v855 = vadd.f32 %v851, %v854
    %vm856 = vweird.f32 %v850
    %vm857 = vweird.f32 %v851
    %vm858 = vmor %vm856, %vm857
    %v859 = vsel %vm858, %v851, %v855
    %v860 = vand.u32 2147483647, %v850
    %vm861 = vcmp.eq.f32.partialorder %v860, 8.507059e+37
    %v862 = vand.u32 %v850, 2147483648
    %v863 = vor.u32 1.1754944e-38, %v862
    %v864 = vsel %vm861, %v863, %v859
    %v865 = vmul.f32 1.0, %v864
    %v866 = vtanh.pop %v846
    %v867 = vxor.u32 %v846, 2147483648
    %v868 = vmul.f32 %v867, 1.442695
    %v869 = vpow.pop %v868
    %v870 = vadd.f32 %v869, 1.0
    %v871 = vrcp.pop %v870
    %v872 = vmul.f32 %v870, %v871
    %v873 = vsub.f32 1.0, %v872
    %v874 = vmul.f32 %v871, %v873
    %v875 = vadd.f32 %v871, %v874
    %vm876 = vweird.f32 %v870
    %vm877 = vweird.f32 %v871
    %vm878 = vmor %vm876, %vm877
    %v879 = vsel %vm878, %v871, %v875
    %v880 = vand.u32 2147483647, %v870
    %vm881 = vcmp.eq.f32.partialorder %v880, 8.507059e+37
    %v882 = vand.u32 %v870, 2147483648
    %v883 = vor.u32 1.1754944e-38, %v882
    %v884 = vsel %vm881, %v883, %v879
    %v885 = vmul.f32 1.0, %v884
    %v887 = vrot.slane %v766, 2
    %v889 = vmul.f32 %v865, %v887
    %v890 = vmul.f32 %v865, %v866
    %892 = vrot.lane.b32.xlu0 %v890, 64
    %v893 = vpop.permute.xlu0 %892
    %v895 = vadd.f32 %v889, %v893
    %v896 = vtanh.pop %v895
    %v897 = vmul.f32 %v885, %v896
    %v898 = vpack.c.bf16 %v897, %v897
    %v900 = vrot.slane %v898, 5
    %v901 = vrot.slane %v900, 4
    %902 = vrot.lane.b32.xlu0 %v901, 64
    %v903 = vpop.permute.xlu0 %902
    %905 = vst.msk [vmem:[#allocation3 + $0x4] sm:$0x2] %vm392, %v903
    %906 = vrot.lane.b32.xlu0 %v898, 64
    %v907 = vpop.permute.xlu0 %906
    %909 = vst.msk [vmem:[#allocation3] sm:$0x4] %vm397, %v907
    %v910 = vld [vmem:[#allocation2 + $0x10] sm:$0x30]
    %v911 = vld [vmem:[#allocation2 + $0x18] sm:$0x30]
    %v912 = vld [vmem:[#allocation2] sm:$0xc]
    %v913 = vld [vmem:[#allocation2 + $0x8] sm:$0xc]
    %v915 = vrot.slane %v897, 4
    %916 = vrot.lane.b32.xlu0 %v915, 64
    %v917 = vpop.permute.xlu0 %916
    %v918 = vsel %vm142, %v917, 0
    %920 = vmatpush.msra.mxu0 0.0
    %921 = vmatpush.msra.mxu0 0.0
    %922 = vmatpush.msra.mxu0 0.0
    %923 = vmatpush.msra.mxu0 0.0
    %924 = vmatpush.msra.mxu0 0.0
    %925 = vmatpush.msra.mxu0 0.0
    %926 = vmatpush.msra.mxu0 0.0
    %927 = vmatpush.msra.mxu0 0.0
    %928 = vmatpush.msra.mxu0 %v77
    %929 = vmatpush.msra.mxu0 %v75
    %930 = vmatpush.msra.mxu0 %v73
    %931 = vmatpush.msra.mxu0 %v71
    %932 = vmatpush.msra.mxu0 %v69
    %933 = vmatpush.msra.mxu0 %v67
    %934 = vmatpush.msra.mxu0 %v65
    %935 = vmatpush.msra.mxu0 %v63
    %936 = vmatmul.f32.gmra.mxu0 %v918
    %v937 = vpop.f32.mrf.mxu0
    %v938 = vadd.f32 0.0, %v937
    %939 = vdwg.mxu0
    %940 = vmatpush.msra.mxu0 0.0
    %941 = vmatpush.msra.mxu0 0.0
    %942 = vmatpush.msra.mxu0 0.0
    %943 = vmatpush.msra.mxu0 0.0
    %944 = vmatpush.msra.mxu0 0.0
    %945 = vmatpush.msra.mxu0 0.0
    %946 = vmatpush.msra.mxu0 0.0
    %947 = vmatpush.msra.mxu0 0.0
    %948 = vmatpush.msra.mxu0 %v78
    %949 = vmatpush.msra.mxu0 %v76
    %950 = vmatpush.msra.mxu0 %v74
    %951 = vmatpush.msra.mxu0 %v72
    %952 = vmatpush.msra.mxu0 %v70
    %953 = vmatpush.msra.mxu0 %v68
    %954 = vmatpush.msra.mxu0 %v66
    %955 = vmatpush.msra.mxu0 %v64
    %956 = vmatmul.f32.gmra.mxu0 %v918
    %v957 = vpop.f32.mrf.mxu0
    %v958 = vadd.f32 0.0, %v957
    %959 = vdwg.mxu0
    %v962 = vrot.slane %v910, 2
    %v963 = vrot.slane %v911, 2
    %v966 = vsel %vm188, %v912, %v962
    %v967 = vsel %vm189, %v913, %v963
    %v970 = vrot.slane %v938, 6
    %v971 = vrot.slane %v958, 6
    %v974 = vadd.f32 %v966, %v970
    %v975 = vadd.f32 %v967, %v971
    %v976 = vxor.u32 %v974, 2147483648
    %v977 = vmul.f32 %v976, 1.442695
    %v978 = vpow.pop %v977
    %v979 = vadd.f32 %v978, 1.0
    %v980 = vrcp.pop %v979
    %v981 = vmul.f32 %v979, %v980
    %v982 = vsub.f32 1.0, %v981
    %v983 = vmul.f32 %v980, %v982
    %v984 = vadd.f32 %v980, %v983
    %vm985 = vweird.f32 %v979
    %vm986 = vweird.f32 %v980
    %vm987 = vmor %vm985, %vm986
    %v988 = vsel %vm987, %v980, %v984
    %v989 = vand.u32 2147483647, %v979
    %vm990 = vcmp.eq.f32.partialorder %v989, 8.507059e+37
    %v991 = vand.u32 %v979, 2147483648
    %v992 = vor.u32 1.1754944e-38, %v991
    %v993 = vsel %vm990, %v992, %v988
    %v994 = vmul.f32 1.0, %v993
    %v995 = vtanh.pop %v975
    %v996 = vxor.u32 %v975, 2147483648
    %v997 = vmul.f32 %v996, 1.442695
    %v998 = vpow.pop %v997
    %v999 = vadd.f32 %v998, 1.0
    %v1000 = vrcp.pop %v999
    %v1001 = vmul.f32 %v999, %v1000
    %v1002 = vsub.f32 1.0, %v1001
    %v1003 = vmul.f32 %v1000, %v1002
    %v1004 = vadd.f32 %v1000, %v1003
    %vm1005 = vweird.f32 %v999
    %vm1006 = vweird.f32 %v1000
    %vm1007 = vmor %vm1005, %vm1006
    %v1008 = vsel %vm1007, %v1000, %v1004
    %v1009 = vand.u32 2147483647, %v999
    %vm1010 = vcmp.eq.f32.partialorder %v1009, 8.507059e+37
    %v1011 = vand.u32 %v999, 2147483648
    %v1012 = vor.u32 1.1754944e-38, %v1011
    %v1013 = vsel %vm1010, %v1012, %v1008
    %v1014 = vmul.f32 1.0, %v1013
    %v1016 = vrot.slane %v895, 2
    %v1018 = vmul.f32 %v994, %v1016
    %v1019 = vmul.f32 %v994, %v995
    %1021 = vrot.lane.b32.xlu0 %v1019, 64
    %v1022 = vpop.permute.xlu0 %1021
    %v1024 = vadd.f32 %v1018, %v1022
    %v1025 = vtanh.pop %v1024
    %v1026 = vmul.f32 %v1014, %v1025
    %v1027 = vpack.c.bf16 %v1026, %v1026
    %v1029 = vrot.slane %v1027, 7
    %1030 = vrot.lane.b32.xlu0 %v1029, 64
    %v1031 = vpop.permute.xlu0 %1030
    %1033 = vst.msk [vmem:[#allocation3 + $0x4] sm:$0x4] %vm522, %v1031
    %1034 = vrot.lane.b32.xlu0 %v1027, 64
    %v1035 = vpop.permute.xlu0 %1034
    %1037 = vst.msk [vmem:[#allocation3] sm:$0x2] %vm527, %v1035
    %v1038 = vld [vmem:[#allocation2 + $0x10] sm:$0xc0]
    %v1039 = vld [vmem:[#allocation2 + $0x18] sm:$0xc0]
    %v1040 = vld [vmem:[#allocation2] sm:$0x3]
    %v1041 = vld [vmem:[#allocation2 + $0x8] sm:$0x3]
    %v1043 = vrot.slane %v1026, 2
    %1044 = vrot.lane.b32.xlu0 %v1043, 64
    %v1045 = vpop.permute.xlu0 %1044
    %v1046 = vsel %vm142, %v1045, 0
    %1048 = vmatpush.msra.mxu0 0.0
    %1049 = vmatpush.msra.mxu0 0.0
    %1050 = vmatpush.msra.mxu0 0.0
    %1051 = vmatpush.msra.mxu0 0.0
    %1052 = vmatpush.msra.mxu0 0.0
    %1053 = vmatpush.msra.mxu0 0.0
    %1054 = vmatpush.msra.mxu0 0.0
    %1055 = vmatpush.msra.mxu0 0.0
    %1056 = vmatpush.msra.mxu0 %v77
    %1057 = vmatpush.msra.mxu0 %v75
    %1058 = vmatpush.msra.mxu0 %v73
    %1059 = vmatpush.msra.mxu0 %v71
    %1060 = vmatpush.msra.mxu0 %v69
    %1061 = vmatpush.msra.mxu0 %v67
    %1062 = vmatpush.msra.mxu0 %v65
    %1063 = vmatpush.msra.mxu0 %v63
    %1064 = vmatmul.f32.gmra.mxu0 %v1046
    %v1065 = vpop.f32.mrf.mxu0
    %v1066 = vadd.f32 0.0, %v1065
    %1067 = vdwg.mxu0
    %1068 = vmatpush.msra.mxu0 0.0
    %1069 = vmatpush.msra.mxu0 0.0
    %1070 = vmatpush.msra.mxu0 0.0
    %1071 = vmatpush.msra.mxu0 0.0
    %1072 = vmatpush.msra.mxu0 0.0
    %1073 = vmatpush.msra.mxu0 0.0
    %1074 = vmatpush.msra.mxu0 0.0
    %1075 = vmatpush.msra.mxu0 0.0
    %1076 = vmatpush.msra.mxu0 %v78
    %1077 = vmatpush.msra.mxu0 %v76
    %1078 = vmatpush.msra.mxu0 %v74
    %1079 = vmatpush.msra.mxu0 %v72
    %1080 = vmatpush.msra.mxu0 %v70
    %1081 = vmatpush.msra.mxu0 %v68
    %1082 = vmatpush.msra.mxu0 %v66
    %1083 = vmatpush.msra.mxu0 %v64
    %1084 = vmatmul.f32.gmra.mxu0 %v1046
    %v1085 = vpop.f32.mrf.mxu0
    %v1086 = vadd.f32 0.0, %v1085
    %1087 = vdwg.mxu0
    %v1090 = vrot.slane %v1038, 6
    %v1091 = vrot.slane %v1039, 6
    %v1094 = vsel %vm188, %v1040, %v1090
    %v1095 = vsel %vm189, %v1041, %v1091
    %v1096 = vadd.f32 %v1094, %v1066
    %v1097 = vadd.f32 %v1095, %v1086
    %v1098 = vxor.u32 %v1096, 2147483648
    %v1099 = vmul.f32 %v1098, 1.442695
    %v1100 = vpow.pop %v1099
    %v1101 = vadd.f32 %v1100, 1.0
    %v1102 = vrcp.pop %v1101
    %v1103 = vmul.f32 %v1101, %v1102
    %v1104 = vsub.f32 1.0, %v1103
    %v1105 = vmul.f32 %v1102, %v1104
    %v1106 = vadd.f32 %v1102, %v1105
    %vm1107 = vweird.f32 %v1101
    %vm1108 = vweird.f32 %v1102
    %vm1109 = vmor %vm1107, %vm1108
    %v1110 = vsel %vm1109, %v1102, %v1106
    %v1111 = vand.u32 2147483647, %v1101
    %vm1112 = vcmp.eq.f32.partialorder %v1111, 8.507059e+37
    %v1113 = vand.u32 %v1101, 2147483648
    %v1114 = vor.u32 1.1754944e-38, %v1113
    %v1115 = vsel %vm1112, %v1114, %v1110
    %v1116 = vmul.f32 1.0, %v1115
    %v1117 = vtanh.pop %v1097
    %v1118 = vxor.u32 %v1097, 2147483648
    %v1119 = vmul.f32 %v1118, 1.442695
    %v1120 = vpow.pop %v1119
    %v1121 = vadd.f32 %v1120, 1.0
    %v1122 = vrcp.pop %v1121
    %v1123 = vmul.f32 %v1121, %v1122
    %v1124 = vsub.f32 1.0, %v1123
    %v1125 = vmul.f32 %v1122, %v1124
    %v1126 = vadd.f32 %v1122, %v1125
    %vm1127 = vweird.f32 %v1121
    %vm1128 = vweird.f32 %v1122
    %vm1129 = vmor %vm1127, %vm1128
    %v1130 = vsel %vm1129, %v1122, %v1126
    %v1131 = vand.u32 2147483647, %v1121
    %vm1132 = vcmp.eq.f32.partialorder %v1131, 8.507059e+37
    %v1133 = vand.u32 %v1121, 2147483648
    %v1134 = vor.u32 1.1754944e-38, %v1133
    %v1135 = vsel %vm1132, %v1134, %v1130
    %v1136 = vmul.f32 1.0, %v1135
    %v1138 = vrot.slane %v1024, 2
    %v1140 = vmul.f32 %v1116, %v1138
    %v1141 = vmul.f32 %v1116, %v1117
    %1143 = vrot.lane.b32.xlu0 %v1141, 64
    %v1144 = vpop.permute.xlu0 %1143
    %v1146 = vadd.f32 %v1140, %v1144
    %v1147 = vtanh.pop %v1146
    %v1148 = vmul.f32 %v1136, %v1147
    %v1149 = vpack.c.bf16 %v1148, %v1148
    %v1151 = vrot.slane %v1149, 5
    %1152 = vrot.lane.b32.xlu0 %v1151, 64
    %v1153 = vpop.permute.xlu0 %1152
    %1155 = vst.msk [vmem:[#allocation3 + $0x4] sm:$0x8] %vm646, %v1153
    %1156 = vrot.lane.b32.xlu0 %v1149, 64
    %v1157 = vpop.permute.xlu0 %1156
    %1159 = vst.msk [vmem:[#allocation3] sm:$0x1] %vm651, %v1157
    %1161 = vrot.lane.b32.xlu0 %v1148, 64
    %v1162 = vpop.permute.xlu0 %1161
    %vm1164 = vcmask 254976
    %1165 = vst.msk [vmem:[#allocation4] sm:$0x3] %vm1164, %v1162
    %1166 = vrot.lane.b32.xlu0 %v1148, 32
    %v1167 = vpop.permute.xlu0 %1166
    %s1169 = scalar_lea.vmem [#allocation4], 2
    %1170 = vst.msk [vmem:[%s1169] sm:$0x3] %vm1164, %v1167
    %1172 = vrot.lane.b32.xlu0 %v1146, 64
    %v1173 = vpop.permute.xlu0 %1172
    %1175 = vst.msk [vmem:[#allocation6] sm:$0x3] %vm1164, %v1173
    %1176 = vrot.lane.b32.xlu0 %v1146, 32
    %v1177 = vpop.permute.xlu0 %1176
    %s1179 = scalar_lea.vmem [#allocation6], 2
    %1180 = vst.msk [vmem:[%s1179] sm:$0x3] %vm1164, %v1177
    %v1181 = vld [vmem:[%s4] sm:$0xff]
    %v1182 = vld [vmem:[%s4 + $0x8] sm:$0xff]
    %v1183 = vld [vmem:[%s4 + $0x10] sm:$0xff]
    %v1184 = vld [vmem:[%s4 + $0x18] sm:$0xff]
    %v1185 = vld [vmem:[%s4 + $0x20] sm:$0xff]
    %v1186 = vld [vmem:[%s4 + $0x28] sm:$0xff]
    %v1187 = vld [vmem:[%s4 + $0x30] sm:$0xff]
    %v1188 = vld [vmem:[%s4 + $0x38] sm:$0xff]
    %v1189 = vld [vmem:[%s5] sm:$0xff]
    %v1190 = vld [vmem:[%s5 + $0x8] sm:$0xff]
    %v1191 = vld [vmem:[%s5 + $0x10] sm:$0xff]
    %v1192 = vld [vmem:[%s5 + $0x18] sm:$0xff]
    %v1193 = vld [vmem:[%s5 + $0x20] sm:$0xff]
    %v1194 = vld [vmem:[%s5 + $0x28] sm:$0xff]
    %v1195 = vld [vmem:[%s5 + $0x30] sm:$0xff]
    %v1196 = vld [vmem:[%s5 + $0x38] sm:$0xff]
    %v1197 = vld [vmem:[%s5 + $0x40] sm:$0xff]
    %v1198 = vld [vmem:[%s5 + $0x48] sm:$0xff]
    %v1199 = vld [vmem:[%s5 + $0x50] sm:$0xff]
    %v1200 = vld [vmem:[%s5 + $0x58] sm:$0xff]
    %v1201 = vld [vmem:[%s5 + $0x60] sm:$0xff]
    %v1202 = vld [vmem:[%s5 + $0x68] sm:$0xff]
    %v1203 = vld [vmem:[%s5 + $0x70] sm:$0xff]
    %v1204 = vld [vmem:[%s5 + $0x78] sm:$0xff]
    %v1205 = vld [vmem:[%s6] sm:$0x3]
    %v1206 = vld [vmem:[#allocation3] sm:$0xf]
    %v1207 = vld [vmem:[#allocation3 + $0x4] sm:$0xf]
    %v1209 = vperm.slane %v1205, 0
    %v1210 = vperm.slane %v1205, 1
    %v1215 = vunpack.c.l.b16 %v1206
    %v1216 = vunpack.c.l.b16 %v1207
    %v1217 = vpack.c.b16 %v1216, %v1215
    %v1226 = vunpack.c.l.b16 %v1181
    %v1227 = vunpack.c.h.b16 %v1181
    %v1228 = vunpack.c.l.b16 %v1182
    %v1229 = vunpack.c.h.b16 %v1182
    %v1230 = vunpack.c.l.b16 %v1183
    %v1231 = vunpack.c.h.b16 %v1183
    %v1232 = vunpack.c.l.b16 %v1184
    %v1233 = vunpack.c.h.b16 %v1184
    %v1234 = vunpack.c.l.b16 %v1185
    %v1235 = vunpack.c.h.b16 %v1185
    %v1236 = vunpack.c.l.b16 %v1186
    %v1237 = vunpack.c.h.b16 %v1186
    %v1238 = vunpack.c.l.b16 %v1187
    %v1239 = vunpack.c.h.b16 %v1187
    %v1240 = vunpack.c.l.b16 %v1188
    %v1241 = vunpack.c.h.b16 %v1188
    %v1242 = vpack.c.b16 %v1228, %v1226
    %v1243 = vpack.c.b16 %v1229, %v1227
    %v1244 = vpack.c.b16 %v1232, %v1230
    %v1245 = vpack.c.b16 %v1233, %v1231
    %v1246 = vpack.c.b16 %v1236, %v1234
    %v1247 = vpack.c.b16 %v1237, %v1235
    %v1248 = vpack.c.b16 %v1240, %v1238
    %v1249 = vpack.c.b16 %v1241, %v1239
    %v1259 = vsel %vm142, %v1217, 0
    %1261 = vmatpush.bf16.msra.mxu0 0
    %1262 = vmatpush.bf16.msra.mxu0 0
    %1263 = vmatpush.bf16.msra.mxu0 0
    %1264 = vmatpush.bf16.msra.mxu0 0
    %1265 = vmatpush.bf16.msra.mxu0 %v1248
    %1266 = vmatpush.bf16.msra.mxu0 %v1246
    %1267 = vmatpush.bf16.msra.mxu0 %v1244
    %1268 = vmatpush.bf16.msra.mxu0 %v1242
    %1269 = vmatmul.bf16.gmra.mxu0 %v1259
    %v1270 = vpop.f32.mrf.mxu0
    %v1271 = vadd.f32 %v1209, %v1270
    %v1272 = vpop.f32.mrf.mxu0
    %v1273 = vadd.f32 %v1209, %v1272
    %1274 = vdwg.mxu0
    %1275 = vmatpush.bf16.msra.mxu0 0
    %1276 = vmatpush.bf16.msra.mxu0 0
    %1277 = vmatpush.bf16.msra.mxu0 0
    %1278 = vmatpush.bf16.msra.mxu0 0
    %1279 = vmatpush.bf16.msra.mxu0 %v1249
    %1280 = vmatpush.bf16.msra.mxu0 %v1247
    %1281 = vmatpush.bf16.msra.mxu0 %v1245
    %1282 = vmatpush.bf16.msra.mxu0 %v1243
    %1283 = vmatmul.bf16.gmra.mxu0 %v1259
    %v1284 = vpop.f32.mrf.mxu0
    %v1285 = vadd.f32 %v1210, %v1284
    %v1286 = vpop.f32.mrf.mxu0
    %v1287 = vadd.f32 %v1210, %v1286
    %1288 = vdwg.mxu0
    %1289 = vst [vmem:[#allocation2] sm:$0xff] %v1271
    %1290 = vst [vmem:[#allocation2 + $0x8] sm:$0xff] %v1285
    %1291 = vst [vmem:[#allocation2 + $0x10] sm:$0xff] %v1273
    %1292 = vst [vmem:[#allocation2 + $0x18] sm:$0xff] %v1287
    %v1293 = vld [vmem:[#allocation2] sm:$0x3]
    %v1294 = vld [vmem:[#allocation2 + $0x8] sm:$0x3]
    %v1295 = vld [vmem:[#allocation2 + $0x10] sm:$0xc0]
    %v1296 = vld [vmem:[#allocation2 + $0x18] sm:$0xc0]
    %1297 = vmatpush.msra.mxu0 0.0
    %1298 = vmatpush.msra.mxu0 0.0
    %1299 = vmatpush.msra.mxu0 0.0
    %1300 = vmatpush.msra.mxu0 0.0
    %1301 = vmatpush.msra.mxu0 0.0
    %1302 = vmatpush.msra.mxu0 0.0
    %1303 = vmatpush.msra.mxu0 0.0
    %1304 = vmatpush.msra.mxu0 0.0
    %1305 = vmatpush.msra.mxu0 %v1203
    %1306 = vmatpush.msra.mxu0 %v1201
    %1307 = vmatpush.msra.mxu0 %v1199
    %1308 = vmatpush.msra.mxu0 %v1197
    %1309 = vmatpush.msra.mxu0 %v1195
    %1310 = vmatpush.msra.mxu0 %v1193
    %1311 = vmatpush.msra.mxu0 %v1191
    %1312 = vmatpush.msra.mxu0 %v1189
    %1313 = vmatmul.f32.gmra.mxu0 %v144
    %v1314 = vpop.f32.mrf.mxu0
    %v1315 = vadd.f32 0.0, %v1314
    %1316 = vdwg.mxu0
    %1317 = vmatpush.msra.mxu0 0.0
    %1318 = vmatpush.msra.mxu0 0.0
    %1319 = vmatpush.msra.mxu0 0.0
    %1320 = vmatpush.msra.mxu0 0.0
    %1321 = vmatpush.msra.mxu0 0.0
    %1322 = vmatpush.msra.mxu0 0.0
    %1323 = vmatpush.msra.mxu0 0.0
    %1324 = vmatpush.msra.mxu0 0.0
    %1325 = vmatpush.msra.mxu0 %v1204
    %1326 = vmatpush.msra.mxu0 %v1202
    %1327 = vmatpush.msra.mxu0 %v1200
    %1328 = vmatpush.msra.mxu0 %v1198
    %1329 = vmatpush.msra.mxu0 %v1196
    %1330 = vmatpush.msra.mxu0 %v1194
    %1331 = vmatpush.msra.mxu0 %v1192
    %1332 = vmatpush.msra.mxu0 %v1190
    %1333 = vmatmul.f32.gmra.mxu0 %v144
    %v1334 = vpop.f32.mrf.mxu0
    %v1335 = vadd.f32 0.0, %v1334
    %1336 = vdwg.mxu0
    %v1339 = vrot.slane %v1293, 2
    %v1340 = vrot.slane %v1294, 2
    %v1343 = vsel %vm188, %v1295, %v1339
    %v1344 = vsel %vm189, %v1296, %v1340
    %v1347 = vrot.slane %v1315, 2
    %v1348 = vrot.slane %v1335, 2
    %v1351 = vadd.f32 %v1343, %v1347
    %v1352 = vadd.f32 %v1344, %v1348
    %v1353 = vxor.u32 %v1351, 2147483648
    %v1354 = vmul.f32 %v1353, 1.442695
    %v1355 = vpow.pop %v1354
    %v1356 = vadd.f32 %v1355, 1.0
    %v1357 = vrcp.pop %v1356
    %v1358 = vmul.f32 %v1356, %v1357
    %v1359 = vsub.f32 1.0, %v1358
    %v1360 = vmul.f32 %v1357, %v1359
    %v1361 = vadd.f32 %v1357, %v1360
    %vm1362 = vweird.f32 %v1356
    %vm1363 = vweird.f32 %v1357
    %vm1364 = vmor %vm1362, %vm1363
    %v1365 = vsel %vm1364, %v1357, %v1361
    %v1366 = vand.u32 2147483647, %v1356
    %vm1367 = vcmp.eq.f32.partialorder %v1366, 8.507059e+37
    %v1368 = vand.u32 %v1356, 2147483648
    %v1369 = vor.u32 1.1754944e-38, %v1368
    %v1370 = vsel %vm1367, %v1369, %v1365
    %v1371 = vmul.f32 1.0, %v1370
    %v1372 = vtanh.pop %v1352
    %v1373 = vxor.u32 %v1352, 2147483648
    %v1374 = vmul.f32 %v1373, 1.442695
    %v1375 = vpow.pop %v1374
    %v1376 = vadd.f32 %v1375, 1.0
    %v1377 = vrcp.pop %v1376
    %v1378 = vmul.f32 %v1376, %v1377
    %v1379 = vsub.f32 1.0, %v1378
    %v1380 = vmul.f32 %v1377, %v1379
    %v1381 = vadd.f32 %v1377, %v1380
    %vm1382 = vweird.f32 %v1376
    %vm1383 = vweird.f32 %v1377
    %vm1384 = vmor %vm1382, %vm1383
    %v1385 = vsel %vm1384, %v1377, %v1381
    %v1386 = vand.u32 2147483647, %v1376
    %vm1387 = vcmp.eq.f32.partialorder %v1386, 8.507059e+37
    %v1388 = vand.u32 %v1376, 2147483648
    %v1389 = vor.u32 1.1754944e-38, %v1388
    %v1390 = vsel %vm1387, %v1389, %v1385
    %v1391 = vmul.f32 1.0, %v1390
    %v1392 = vmul.f32 %v1371, 0.0
    %v1393 = vmul.f32 %v1371, %v1372
    %1395 = vrot.lane.b32.xlu0 %v1393, 64
    %v1396 = vpop.permute.xlu0 %1395
    %v1398 = vadd.f32 %v1392, %v1396
    %v1399 = vtanh.pop %v1398
    %v1400 = vmul.f32 %v1391, %v1399
    %1402 = vrot.lane.b32.xlu0 %v1400, 64
    %v1403 = vpop.permute.xlu0 %1402
    %vm1405 = vcmask 261126
    %1406 = vst.msk [vmem:[%s7 - $0x6] sm:$0xc0] %vm1405, %v1403
    %vm1407 = vcmask 523526
    %1408 = vst.msk [vmem:[%s7 + $0x8] sm:$0xc0] %vm1407, %v1403
    %v1409 = vld [vmem:[#allocation2] sm:$0xc]
    %v1410 = vld [vmem:[#allocation2 + $0x8] sm:$0xc]
    %v1411 = vld [vmem:[#allocation2 + $0x10] sm:$0x30]
    %v1412 = vld [vmem:[#allocation2 + $0x18] sm:$0x30]
    %v1413 = vrot.slane %v1400, 6
    %1414 = vrot.lane.b32.xlu0 %v1413, 64
    %v1415 = vpop.permute.xlu0 %1414
    %v1416 = vsel %vm142, %v1415, 0
    %1418 = vmatpush.msra.mxu0 0.0
    %1419 = vmatpush.msra.mxu0 0.0
    %1420 = vmatpush.msra.mxu0 0.0
    %1421 = vmatpush.msra.mxu0 0.0
    %1422 = vmatpush.msra.mxu0 0.0
    %1423 = vmatpush.msra.mxu0 0.0
    %1424 = vmatpush.msra.mxu0 0.0
    %1425 = vmatpush.msra.mxu0 0.0
    %1426 = vmatpush.msra.mxu0 %v1203
    %1427 = vmatpush.msra.mxu0 %v1201
    %1428 = vmatpush.msra.mxu0 %v1199
    %1429 = vmatpush.msra.mxu0 %v1197
    %1430 = vmatpush.msra.mxu0 %v1195
    %1431 = vmatpush.msra.mxu0 %v1193
    %1432 = vmatpush.msra.mxu0 %v1191
    %1433 = vmatpush.msra.mxu0 %v1189
    %1434 = vmatmul.f32.gmra.mxu0 %v1416
    %v1435 = vpop.f32.mrf.mxu0
    %v1436 = vadd.f32 0.0, %v1435
    %1437 = vdwg.mxu0
    %1438 = vmatpush.msra.mxu0 0.0
    %1439 = vmatpush.msra.mxu0 0.0
    %1440 = vmatpush.msra.mxu0 0.0
    %1441 = vmatpush.msra.mxu0 0.0
    %1442 = vmatpush.msra.mxu0 0.0
    %1443 = vmatpush.msra.mxu0 0.0
    %1444 = vmatpush.msra.mxu0 0.0
    %1445 = vmatpush.msra.mxu0 0.0
    %1446 = vmatpush.msra.mxu0 %v1204
    %1447 = vmatpush.msra.mxu0 %v1202
    %1448 = vmatpush.msra.mxu0 %v1200
    %1449 = vmatpush.msra.mxu0 %v1198
    %1450 = vmatpush.msra.mxu0 %v1196
    %1451 = vmatpush.msra.mxu0 %v1194
    %1452 = vmatpush.msra.mxu0 %v1192
    %1453 = vmatpush.msra.mxu0 %v1190
    %1454 = vmatmul.f32.gmra.mxu0 %v1416
    %v1455 = vpop.f32.mrf.mxu0
    %v1456 = vadd.f32 0.0, %v1455
    %1457 = vdwg.mxu0
    %v1460 = vrot.slane %v1409, 6
    %v1461 = vrot.slane %v1410, 6
    %v1464 = vsel %vm188, %v1411, %v1460
    %v1465 = vsel %vm189, %v1412, %v1461
    %v1468 = vrot.slane %v1436, 4
    %v1469 = vrot.slane %v1456, 4
    %v1472 = vadd.f32 %v1464, %v1468
    %v1473 = vadd.f32 %v1465, %v1469
    %v1474 = vxor.u32 %v1472, 2147483648
    %v1475 = vmul.f32 %v1474, 1.442695
    %v1476 = vpow.pop %v1475
    %v1477 = vadd.f32 %v1476, 1.0
    %v1478 = vrcp.pop %v1477
    %v1479 = vmul.f32 %v1477, %v1478
    %v1480 = vsub.f32 1.0, %v1479
    %v1481 = vmul.f32 %v1478, %v1480
    %v1482 = vadd.f32 %v1478, %v1481
    %vm1483 = vweird.f32 %v1477
    %vm1484 = vweird.f32 %v1478
    %vm1485 = vmor %vm1483, %vm1484
    %v1486 = vsel %vm1485, %v1478, %v1482
    %v1487 = vand.u32 2147483647, %v1477
    %vm1488 = vcmp.eq.f32.partialorder %v1487, 8.507059e+37
    %v1489 = vand.u32 %v1477, 2147483648
    %v1490 = vor.u32 1.1754944e-38, %v1489
    %v1491 = vsel %vm1488, %v1490, %v1486
    %v1492 = vmul.f32 1.0, %v1491
    %v1493 = vtanh.pop %v1473
    %v1494 = vxor.u32 %v1473, 2147483648
    %v1495 = vmul.f32 %v1494, 1.442695
    %v1496 = vpow.pop %v1495
    %v1497 = vadd.f32 %v1496, 1.0
    %v1498 = vrcp.pop %v1497
    %v1499 = vmul.f32 %v1497, %v1498
    %v1500 = vsub.f32 1.0, %v1499
    %v1501 = vmul.f32 %v1498, %v1500
    %v1502 = vadd.f32 %v1498, %v1501
    %vm1503 = vweird.f32 %v1497
    %vm1504 = vweird.f32 %v1498
    %vm1505 = vmor %vm1503, %vm1504
    %v1506 = vsel %vm1505, %v1498, %v1502
    %v1507 = vand.u32 2147483647, %v1497
    %vm1508 = vcmp.eq.f32.partialorder %v1507, 8.507059e+37
    %v1509 = vand.u32 %v1497, 2147483648
    %v1510 = vor.u32 1.1754944e-38, %v1509
    %v1511 = vsel %vm1508, %v1510, %v1506
    %v1512 = vmul.f32 1.0, %v1511
    %v1514 = vrot.slane %v1398, 2
    %v1516 = vmul.f32 %v1492, %v1514
    %v1517 = vmul.f32 %v1492, %v1493
    %1519 = vrot.lane.b32.xlu0 %v1517, 64
    %v1520 = vpop.permute.xlu0 %1519
    %v1522 = vadd.f32 %v1516, %v1520
    %v1523 = vtanh.pop %v1522
    %v1524 = vmul.f32 %v1512, %v1523
    %1526 = vrot.lane.b32.xlu0 %v1524, 64
    %v1527 = vpop.permute.xlu0 %1526
    %vm1529 = vcmask 259076
    %1530 = vst.msk [vmem:[%s7 - $0x2] sm:$0x30] %vm1529, %v1527
    %vm1531 = vcmask 521476
    %1532 = vst.msk [vmem:[%s7 + $0x8] sm:$0x30] %vm1531, %v1527
    %v1533 = vld [vmem:[#allocation2] sm:$0x30]
    %v1534 = vld [vmem:[#allocation2 + $0x8] sm:$0x30]
    %v1535 = vld [vmem:[#allocation2 + $0x10] sm:$0xc]
    %v1536 = vld [vmem:[#allocation2 + $0x18] sm:$0xc]
    %v1537 = vrot.slane %v1524, 4
    %1538 = vrot.lane.b32.xlu0 %v1537, 64
    %v1539 = vpop.permute.xlu0 %1538
    %v1540 = vsel %vm142, %v1539, 0
    %1542 = vmatpush.msra.mxu0 0.0
    %1543 = vmatpush.msra.mxu0 0.0
    %1544 = vmatpush.msra.mxu0 0.0
    %1545 = vmatpush.msra.mxu0 0.0
    %1546 = vmatpush.msra.mxu0 0.0
    %1547 = vmatpush.msra.mxu0 0.0
    %1548 = vmatpush.msra.mxu0 0.0
    %1549 = vmatpush.msra.mxu0 0.0
    %1550 = vmatpush.msra.mxu0 %v1203
    %1551 = vmatpush.msra.mxu0 %v1201
    %1552 = vmatpush.msra.mxu0 %v1199
    %1553 = vmatpush.msra.mxu0 %v1197
    %1554 = vmatpush.msra.mxu0 %v1195
    %1555 = vmatpush.msra.mxu0 %v1193
    %1556 = vmatpush.msra.mxu0 %v1191
    %1557 = vmatpush.msra.mxu0 %v1189
    %1558 = vmatmul.f32.gmra.mxu0 %v1540
    %v1559 = vpop.f32.mrf.mxu0
    %v1560 = vadd.f32 0.0, %v1559
    %1561 = vdwg.mxu0
    %1562 = vmatpush.msra.mxu0 0.0
    %1563 = vmatpush.msra.mxu0 0.0
    %1564 = vmatpush.msra.mxu0 0.0
    %1565 = vmatpush.msra.mxu0 0.0
    %1566 = vmatpush.msra.mxu0 0.0
    %1567 = vmatpush.msra.mxu0 0.0
    %1568 = vmatpush.msra.mxu0 0.0
    %1569 = vmatpush.msra.mxu0 0.0
    %1570 = vmatpush.msra.mxu0 %v1204
    %1571 = vmatpush.msra.mxu0 %v1202
    %1572 = vmatpush.msra.mxu0 %v1200
    %1573 = vmatpush.msra.mxu0 %v1198
    %1574 = vmatpush.msra.mxu0 %v1196
    %1575 = vmatpush.msra.mxu0 %v1194
    %1576 = vmatpush.msra.mxu0 %v1192
    %1577 = vmatpush.msra.mxu0 %v1190
    %1578 = vmatmul.f32.gmra.mxu0 %v1540
    %v1579 = vpop.f32.mrf.mxu0
    %v1580 = vadd.f32 0.0, %v1579
    %1581 = vdwg.mxu0
    %v1584 = vrot.slane %v1533, 2
    %v1585 = vrot.slane %v1534, 2
    %v1588 = vsel %vm188, %v1535, %v1584
    %v1589 = vsel %vm189, %v1536, %v1585
    %v1592 = vrot.slane %v1560, 6
    %v1593 = vrot.slane %v1580, 6
    %v1596 = vadd.f32 %v1588, %v1592
    %v1597 = vadd.f32 %v1589, %v1593
    %v1598 = vxor.u32 %v1596, 2147483648
    %v1599 = vmul.f32 %v1598, 1.442695
    %v1600 = vpow.pop %v1599
    %v1601 = vadd.f32 %v1600, 1.0
    %v1602 = vrcp.pop %v1601
    %v1603 = vmul.f32 %v1601, %v1602
    %v1604 = vsub.f32 1.0, %v1603
    %v1605 = vmul.f32 %v1602, %v1604
    %v1606 = vadd.f32 %v1602, %v1605
    %vm1607 = vweird.f32 %v1601
    %vm1608 = vweird.f32 %v1602
    %vm1609 = vmor %vm1607, %vm1608
    %v1610 = vsel %vm1609, %v1602, %v1606
    %v1611 = vand.u32 2147483647, %v1601
    %vm1612 = vcmp.eq.f32.partialorder %v1611, 8.507059e+37
    %v1613 = vand.u32 %v1601, 2147483648
    %v1614 = vor.u32 1.1754944e-38, %v1613
    %v1615 = vsel %vm1612, %v1614, %v1610
    %v1616 = vmul.f32 1.0, %v1615
    %v1617 = vtanh.pop %v1597
    %v1618 = vxor.u32 %v1597, 2147483648
    %v1619 = vmul.f32 %v1618, 1.442695
    %v1620 = vpow.pop %v1619
    %v1621 = vadd.f32 %v1620, 1.0
    %v1622 = vrcp.pop %v1621
    %v1623 = vmul.f32 %v1621, %v1622
    %v1624 = vsub.f32 1.0, %v1623
    %v1625 = vmul.f32 %v1622, %v1624
    %v1626 = vadd.f32 %v1622, %v1625
    %vm1627 = vweird.f32 %v1621
    %vm1628 = vweird.f32 %v1622
    %vm1629 = vmor %vm1627, %vm1628
    %v1630 = vsel %vm1629, %v1622, %v1626
    %v1631 = vand.u32 2147483647, %v1621
    %vm1632 = vcmp.eq.f32.partialorder %v1631, 8.507059e+37
    %v1633 = vand.u32 %v1621, 2147483648
    %v1634 = vor.u32 1.1754944e-38, %v1633
    %v1635 = vsel %vm1632, %v1634, %v1630
    %v1636 = vmul.f32 1.0, %v1635
    %v1638 = vrot.slane %v1522, 2
    %v1640 = vmul.f32 %v1616, %v1638
    %v1641 = vmul.f32 %v1616, %v1617
    %1643 = vrot.lane.b32.xlu0 %v1641, 64
    %v1644 = vpop.permute.xlu0 %1643
    %v1646 = vadd.f32 %v1640, %v1644
    %v1647 = vtanh.pop %v1646
    %v1648 = vmul.f32 %v1636, %v1647
    %1650 = vrot.lane.b32.xlu0 %v1648, 64
    %v1651 = vpop.permute.xlu0 %1650
    %vm1653 = vcmask 257026
    %1654 = vst.msk [vmem:[%s7 + $0x2] sm:$0xc] %vm1653, %v1651
    %vm1655 = vcmask 519426
    %1656 = vst.msk [vmem:[%s7 + $0x8] sm:$0xc] %vm1655, %v1651
    %v1657 = vld [vmem:[#allocation2] sm:$0xc0]
    %v1658 = vld [vmem:[#allocation2 + $0x8] sm:$0xc0]
    %v1659 = vld [vmem:[#allocation2 + $0x10] sm:$0x3]
    %v1660 = vld [vmem:[#allocation2 + $0x18] sm:$0x3]
    %v1661 = vrot.slane %v1648, 2
    %1662 = vrot.lane.b32.xlu0 %v1661, 64
    %v1663 = vpop.permute.xlu0 %1662
    %v1664 = vsel %vm142, %v1663, 0
    %1666 = vmatpush.msra.mxu0 0.0
    %1667 = vmatpush.msra.mxu0 0.0
    %1668 = vmatpush.msra.mxu0 0.0
    %1669 = vmatpush.msra.mxu0 0.0
    %1670 = vmatpush.msra.mxu0 0.0
    %1671 = vmatpush.msra.mxu0 0.0
    %1672 = vmatpush.msra.mxu0 0.0
    %1673 = vmatpush.msra.mxu0 0.0
    %1674 = vmatpush.msra.mxu0 %v1203
    %1675 = vmatpush.msra.mxu0 %v1201
    %1676 = vmatpush.msra.mxu0 %v1199
    %1677 = vmatpush.msra.mxu0 %v1197
    %1678 = vmatpush.msra.mxu0 %v1195
    %1679 = vmatpush.msra.mxu0 %v1193
    %1680 = vmatpush.msra.mxu0 %v1191
    %1681 = vmatpush.msra.mxu0 %v1189
    %1682 = vmatmul.f32.gmra.mxu0 %v1664
    %v1683 = vpop.f32.mrf.mxu0
    %v1684 = vadd.f32 0.0, %v1683
    %1685 = vdwg.mxu0
    %1686 = vmatpush.msra.mxu0 0.0
    %1687 = vmatpush.msra.mxu0 0.0
    %1688 = vmatpush.msra.mxu0 0.0
    %1689 = vmatpush.msra.mxu0 0.0
    %1690 = vmatpush.msra.mxu0 0.0
    %1691 = vmatpush.msra.mxu0 0.0
    %1692 = vmatpush.msra.mxu0 0.0
    %1693 = vmatpush.msra.mxu0 0.0
    %1694 = vmatpush.msra.mxu0 %v1204
    %1695 = vmatpush.msra.mxu0 %v1202
    %1696 = vmatpush.msra.mxu0 %v1200
    %1697 = vmatpush.msra.mxu0 %v1198
    %1698 = vmatpush.msra.mxu0 %v1196
    %1699 = vmatpush.msra.mxu0 %v1194
    %1700 = vmatpush.msra.mxu0 %v1192
    %1701 = vmatpush.msra.mxu0 %v1190
    %1702 = vmatmul.f32.gmra.mxu0 %v1664
    %v1703 = vpop.f32.mrf.mxu0
    %v1704 = vadd.f32 0.0, %v1703
    %1705 = vdwg.mxu0
    %v1708 = vrot.slane %v1657, 6
    %v1709 = vrot.slane %v1658, 6
    %v1712 = vsel %vm188, %v1659, %v1708
    %v1713 = vsel %vm189, %v1660, %v1709
    %v1714 = vadd.f32 %v1712, %v1684
    %v1715 = vadd.f32 %v1713, %v1704
    %v1716 = vxor.u32 %v1714, 2147483648
    %v1717 = vmul.f32 %v1716, 1.442695
    %v1718 = vpow.pop %v1717
    %v1719 = vadd.f32 %v1718, 1.0
    %v1720 = vrcp.pop %v1719
    %v1721 = vmul.f32 %v1719, %v1720
    %v1722 = vsub.f32 1.0, %v1721
    %v1723 = vmul.f32 %v1720, %v1722
    %v1724 = vadd.f32 %v1720, %v1723
    %vm1725 = vweird.f32 %v1719
    %vm1726 = vweird.f32 %v1720
    %vm1727 = vmor %vm1725, %vm1726
    %v1728 = vsel %vm1727, %v1720, %v1724
    %v1729 = vand.u32 2147483647, %v1719
    %vm1730 = vcmp.eq.f32.partialorder %v1729, 8.507059e+37
    %v1731 = vand.u32 %v1719, 2147483648
    %v1732 = vor.u32 1.1754944e-38, %v1731
    %v1733 = vsel %vm1730, %v1732, %v1728
    %v1734 = vmul.f32 1.0, %v1733
    %v1735 = vtanh.pop %v1715
    %v1736 = vxor.u32 %v1715, 2147483648
    %v1737 = vmul.f32 %v1736, 1.442695
    %v1738 = vpow.pop %v1737
    %v1739 = vadd.f32 %v1738, 1.0
    %v1740 = vrcp.pop %v1739
    %v1741 = vmul.f32 %v1739, %v1740
    %v1742 = vsub.f32 1.0, %v1741
    %v1743 = vmul.f32 %v1740, %v1742
    %v1744 = vadd.f32 %v1740, %v1743
    %vm1745 = vweird.f32 %v1739
    %vm1746 = vweird.f32 %v1740
    %vm1747 = vmor %vm1745, %vm1746
    %v1748 = vsel %vm1747, %v1740, %v1744
    %v1749 = vand.u32 2147483647, %v1739
    %vm1750 = vcmp.eq.f32.partialorder %v1749, 8.507059e+37
    %v1751 = vand.u32 %v1739, 2147483648
    %v1752 = vor.u32 1.1754944e-38, %v1751
    %v1753 = vsel %vm1750, %v1752, %v1748
    %v1754 = vmul.f32 1.0, %v1753
    %v1756 = vrot.slane %v1646, 2
    %v1758 = vmul.f32 %v1734, %v1756
    %v1759 = vmul.f32 %v1734, %v1735
    %1761 = vrot.lane.b32.xlu0 %v1759, 64
    %v1762 = vpop.permute.xlu0 %1761
    %v1764 = vadd.f32 %v1758, %v1762
    %v1765 = vtanh.pop %v1764
    %v1766 = vmul.f32 %v1754, %v1765
    %1768 = vrot.lane.b32.xlu0 %v1766, 64
    %v1769 = vpop.permute.xlu0 %1768
    %1771 = vst.msk [vmem:[%s7 + $0x6] sm:$0x3] %vm1164, %v1769
    %vm1772 = vcmask 517376
    %1773 = vst.msk [vmem:[%s7 + $0x8] sm:$0x3] %vm1772, %v1769
    %v1774 = vld [vmem:[#allocation2 + $0x10] sm:$0x3]
    %v1775 = vld [vmem:[#allocation2 + $0x18] sm:$0x3]
    %v1776 = vld [vmem:[#allocation2] sm:$0xc0]
    %v1777 = vld [vmem:[#allocation2 + $0x8] sm:$0xc0]
    %v1778 = vsel %vm142, %v1769, 0
    %1780 = vmatpush.msra.mxu0 0.0
    %1781 = vmatpush.msra.mxu0 0.0
    %1782 = vmatpush.msra.mxu0 0.0
    %1783 = vmatpush.msra.mxu0 0.0
    %1784 = vmatpush.msra.mxu0 0.0
    %1785 = vmatpush.msra.mxu0 0.0
    %1786 = vmatpush.msra.mxu0 0.0
    %1787 = vmatpush.msra.mxu0 0.0
    %1788 = vmatpush.msra.mxu0 %v1203
    %1789 = vmatpush.msra.mxu0 %v1201
    %1790 = vmatpush.msra.mxu0 %v1199
    %1791 = vmatpush.msra.mxu0 %v1197
    %1792 = vmatpush.msra.mxu0 %v1195
    %1793 = vmatpush.msra.mxu0 %v1193
    %1794 = vmatpush.msra.mxu0 %v1191
    %1795 = vmatpush.msra.mxu0 %v1189
    %1796 = vmatmul.f32.gmra.mxu0 %v1778
    %v1797 = vpop.f32.mrf.mxu0
    %v1798 = vadd.f32 0.0, %v1797
    %1799 = vdwg.mxu0
    %1800 = vmatpush.msra.mxu0 0.0
    %1801 = vmatpush.msra.mxu0 0.0
    %1802 = vmatpush.msra.mxu0 0.0
    %1803 = vmatpush.msra.mxu0 0.0
    %1804 = vmatpush.msra.mxu0 0.0
    %1805 = vmatpush.msra.mxu0 0.0
    %1806 = vmatpush.msra.mxu0 0.0
    %1807 = vmatpush.msra.mxu0 0.0
    %1808 = vmatpush.msra.mxu0 %v1204
    %1809 = vmatpush.msra.mxu0 %v1202
    %1810 = vmatpush.msra.mxu0 %v1200
    %1811 = vmatpush.msra.mxu0 %v1198
    %1812 = vmatpush.msra.mxu0 %v1196
    %1813 = vmatpush.msra.mxu0 %v1194
    %1814 = vmatpush.msra.mxu0 %v1192
    %1815 = vmatpush.msra.mxu0 %v1190
    %1816 = vmatmul.f32.gmra.mxu0 %v1778
    %v1817 = vpop.f32.mrf.mxu0
    %v1818 = vadd.f32 0.0, %v1817
    %1819 = vdwg.mxu0
    %v1822 = vrot.slane %v1774, 2
    %v1823 = vrot.slane %v1775, 2
    %v1826 = vsel %vm188, %v1776, %v1822
    %v1827 = vsel %vm189, %v1777, %v1823
    %v1830 = vrot.slane %v1798, 2
    %v1831 = vrot.slane %v1818, 2
    %v1834 = vadd.f32 %v1826, %v1830
    %v1835 = vadd.f32 %v1827, %v1831
    %v1836 = vxor.u32 %v1834, 2147483648
    %v1837 = vmul.f32 %v1836, 1.442695
    %v1838 = vpow.pop %v1837
    %v1839 = vadd.f32 %v1838, 1.0
    %v1840 = vrcp.pop %v1839
    %v1841 = vmul.f32 %v1839, %v1840
    %v1842 = vsub.f32 1.0, %v1841
    %v1843 = vmul.f32 %v1840, %v1842
    %v1844 = vadd.f32 %v1840, %v1843
    %vm1845 = vweird.f32 %v1839
    %vm1846 = vweird.f32 %v1840
    %vm1847 = vmor %vm1845, %vm1846
    %v1848 = vsel %vm1847, %v1840, %v1844
    %v1849 = vand.u32 2147483647, %v1839
    %vm1850 = vcmp.eq.f32.partialorder %v1849, 8.507059e+37
    %v1851 = vand.u32 %v1839, 2147483648
    %v1852 = vor.u32 1.1754944e-38, %v1851
    %v1853 = vsel %vm1850, %v1852, %v1848
    %v1854 = vmul.f32 1.0, %v1853
    %v1855 = vtanh.pop %v1835
    %v1856 = vxor.u32 %v1835, 2147483648
    %v1857 = vmul.f32 %v1856, 1.442695
    %v1858 = vpow.pop %v1857
    %v1859 = vadd.f32 %v1858, 1.0
    %v1860 = vrcp.pop %v1859
    %v1861 = vmul.f32 %v1859, %v1860
    %v1862 = vsub.f32 1.0, %v1861
    %v1863 = vmul.f32 %v1860, %v1862
    %v1864 = vadd.f32 %v1860, %v1863
    %vm1865 = vweird.f32 %v1859
    %vm1866 = vweird.f32 %v1860
    %vm1867 = vmor %vm1865, %vm1866
    %v1868 = vsel %vm1867, %v1860, %v1864
    %v1869 = vand.u32 2147483647, %v1859
    %vm1870 = vcmp.eq.f32.partialorder %v1869, 8.507059e+37
    %v1871 = vand.u32 %v1859, 2147483648
    %v1872 = vor.u32 1.1754944e-38, %v1871
    %v1873 = vsel %vm1870, %v1872, %v1868
    %v1874 = vmul.f32 1.0, %v1873
    %v1876 = vrot.slane %v1764, 2
    %v1878 = vmul.f32 %v1854, %v1876
    %v1879 = vmul.f32 %v1854, %v1855
    %1881 = vrot.lane.b32.xlu0 %v1879, 64
    %v1882 = vpop.permute.xlu0 %1881
    %v1884 = vadd.f32 %v1878, %v1882
    %v1885 = vtanh.pop %v1884
    %v1886 = vmul.f32 %v1874, %v1885
    %1888 = vrot.lane.b32.xlu0 %v1886, 64
    %v1889 = vpop.permute.xlu0 %1888
    %1891 = vst.msk [vmem:[%s7 + $0x2] sm:$0xc0] %vm1405, %v1889
    %1892 = vst.msk [vmem:[%s7] sm:$0xc0] %vm1407, %v1889
    %v1893 = vld [vmem:[#allocation2 + $0x10] sm:$0xc]
    %v1894 = vld [vmem:[#allocation2 + $0x18] sm:$0xc]
    %v1895 = vld [vmem:[#allocation2] sm:$0x30]
    %v1896 = vld [vmem:[#allocation2 + $0x8] sm:$0x30]
    %v1897 = vrot.slane %v1886, 6
    %1898 = vrot.lane.b32.xlu0 %v1897, 64
    %v1899 = vpop.permute.xlu0 %1898
    %v1900 = vsel %vm142, %v1899, 0
    %1902 = vmatpush.msra.mxu0 0.0
    %1903 = vmatpush.msra.mxu0 0.0
    %1904 = vmatpush.msra.mxu0 0.0
    %1905 = vmatpush.msra.mxu0 0.0
    %1906 = vmatpush.msra.mxu0 0.0
    %1907 = vmatpush.msra.mxu0 0.0
    %1908 = vmatpush.msra.mxu0 0.0
    %1909 = vmatpush.msra.mxu0 0.0
    %1910 = vmatpush.msra.mxu0 %v1203
    %1911 = vmatpush.msra.mxu0 %v1201
    %1912 = vmatpush.msra.mxu0 %v1199
    %1913 = vmatpush.msra.mxu0 %v1197
    %1914 = vmatpush.msra.mxu0 %v1195
    %1915 = vmatpush.msra.mxu0 %v1193
    %1916 = vmatpush.msra.mxu0 %v1191
    %1917 = vmatpush.msra.mxu0 %v1189
    %1918 = vmatmul.f32.gmra.mxu0 %v1900
    %v1919 = vpop.f32.mrf.mxu0
    %v1920 = vadd.f32 0.0, %v1919
    %1921 = vdwg.mxu0
    %1922 = vmatpush.msra.mxu0 0.0
    %1923 = vmatpush.msra.mxu0 0.0
    %1924 = vmatpush.msra.mxu0 0.0
    %1925 = vmatpush.msra.mxu0 0.0
    %1926 = vmatpush.msra.mxu0 0.0
    %1927 = vmatpush.msra.mxu0 0.0
    %1928 = vmatpush.msra.mxu0 0.0
    %1929 = vmatpush.msra.mxu0 0.0
    %1930 = vmatpush.msra.mxu0 %v1204
    %1931 = vmatpush.msra.mxu0 %v1202
    %1932 = vmatpush.msra.mxu0 %v1200
    %1933 = vmatpush.msra.mxu0 %v1198
    %1934 = vmatpush.msra.mxu0 %v1196
    %1935 = vmatpush.msra.mxu0 %v1194
    %1936 = vmatpush.msra.mxu0 %v1192
    %1937 = vmatpush.msra.mxu0 %v1190
    %1938 = vmatmul.f32.gmra.mxu0 %v1900
    %v1939 = vpop.f32.mrf.mxu0
    %v1940 = vadd.f32 0.0, %v1939
    %1941 = vdwg.mxu0
    %v1944 = vrot.slane %v1893, 6
    %v1945 = vrot.slane %v1894, 6
    %v1948 = vsel %vm188, %v1895, %v1944
    %v1949 = vsel %vm189, %v1896, %v1945
    %v1952 = vrot.slane %v1920, 4
    %v1953 = vrot.slane %v1940, 4
    %v1956 = vadd.f32 %v1948, %v1952
    %v1957 = vadd.f32 %v1949, %v1953
    %v1958 = vxor.u32 %v1956, 2147483648
    %v1959 = vmul.f32 %v1958, 1.442695
    %v1960 = vpow.pop %v1959
    %v1961 = vadd.f32 %v1960, 1.0
    %v1962 = vrcp.pop %v1961
    %v1963 = vmul.f32 %v1961, %v1962
    %v1964 = vsub.f32 1.0, %v1963
    %v1965 = vmul.f32 %v1962, %v1964
    %v1966 = vadd.f32 %v1962, %v1965
    %vm1967 = vweird.f32 %v1961
    %vm1968 = vweird.f32 %v1962
    %vm1969 = vmor %vm1967, %vm1968
    %v1970 = vsel %vm1969, %v1962, %v1966
    %v1971 = vand.u32 2147483647, %v1961
    %vm1972 = vcmp.eq.f32.partialorder %v1971, 8.507059e+37
    %v1973 = vand.u32 %v1961, 2147483648
    %v1974 = vor.u32 1.1754944e-38, %v1973
    %v1975 = vsel %vm1972, %v1974, %v1970
    %v1976 = vmul.f32 1.0, %v1975
    %v1977 = vtanh.pop %v1957
    %v1978 = vxor.u32 %v1957, 2147483648
    %v1979 = vmul.f32 %v1978, 1.442695
    %v1980 = vpow.pop %v1979
    %v1981 = vadd.f32 %v1980, 1.0
    %v1982 = vrcp.pop %v1981
    %v1983 = vmul.f32 %v1981, %v1982
    %v1984 = vsub.f32 1.0, %v1983
    %v1985 = vmul.f32 %v1982, %v1984
    %v1986 = vadd.f32 %v1982, %v1985
    %vm1987 = vweird.f32 %v1981
    %vm1988 = vweird.f32 %v1982
    %vm1989 = vmor %vm1987, %vm1988
    %v1990 = vsel %vm1989, %v1982, %v1986
    %v1991 = vand.u32 2147483647, %v1981
    %vm1992 = vcmp.eq.f32.partialorder %v1991, 8.507059e+37
    %v1993 = vand.u32 %v1981, 2147483648
    %v1994 = vor.u32 1.1754944e-38, %v1993
    %v1995 = vsel %vm1992, %v1994, %v1990
    %v1996 = vmul.f32 1.0, %v1995
    %v1998 = vrot.slane %v1884, 2
    %v2000 = vmul.f32 %v1976, %v1998
    %v2001 = vmul.f32 %v1976, %v1977
    %2003 = vrot.lane.b32.xlu0 %v2001, 64
    %v2004 = vpop.permute.xlu0 %2003
    %v2006 = vadd.f32 %v2000, %v2004
    %v2007 = vtanh.pop %v2006
    %v2008 = vmul.f32 %v1996, %v2007
    %2010 = vrot.lane.b32.xlu0 %v2008, 64
    %v2011 = vpop.permute.xlu0 %2010
    %2013 = vst.msk [vmem:[%s7 + $0x6] sm:$0x30] %vm1529, %v2011
    %2014 = vst.msk [vmem:[%s7] sm:$0x30] %vm1531, %v2011
    %v2015 = vld [vmem:[#allocation2 + $0x10] sm:$0x30]
    %v2016 = vld [vmem:[#allocation2 + $0x18] sm:$0x30]
    %v2017 = vld [vmem:[#allocation2] sm:$0xc]
    %v2018 = vld [vmem:[#allocation2 + $0x8] sm:$0xc]
    %v2019 = vrot.slane %v2008, 4
    %2020 = vrot.lane.b32.xlu0 %v2019, 64
    %v2021 = vpop.permute.xlu0 %2020
    %v2022 = vsel %vm142, %v2021, 0
    %2024 = vmatpush.msra.mxu0 0.0
    %2025 = vmatpush.msra.mxu0 0.0
    %2026 = vmatpush.msra.mxu0 0.0
    %2027 = vmatpush.msra.mxu0 0.0
    %2028 = vmatpush.msra.mxu0 0.0
    %2029 = vmatpush.msra.mxu0 0.0
    %2030 = vmatpush.msra.mxu0 0.0
    %2031 = vmatpush.msra.mxu0 0.0
    %2032 = vmatpush.msra.mxu0 %v1203
    %2033 = vmatpush.msra.mxu0 %v1201
    %2034 = vmatpush.msra.mxu0 %v1199
    %2035 = vmatpush.msra.mxu0 %v1197
    %2036 = vmatpush.msra.mxu0 %v1195
    %2037 = vmatpush.msra.mxu0 %v1193
    %2038 = vmatpush.msra.mxu0 %v1191
    %2039 = vmatpush.msra.mxu0 %v1189
    %2040 = vmatmul.f32.gmra.mxu0 %v2022
    %v2041 = vpop.f32.mrf.mxu0
    %v2042 = vadd.f32 0.0, %v2041
    %2043 = vdwg.mxu0
    %2044 = vmatpush.msra.mxu0 0.0
    %2045 = vmatpush.msra.mxu0 0.0
    %2046 = vmatpush.msra.mxu0 0.0
    %2047 = vmatpush.msra.mxu0 0.0
    %2048 = vmatpush.msra.mxu0 0.0
    %2049 = vmatpush.msra.mxu0 0.0
    %2050 = vmatpush.msra.mxu0 0.0
    %2051 = vmatpush.msra.mxu0 0.0
    %2052 = vmatpush.msra.mxu0 %v1204
    %2053 = vmatpush.msra.mxu0 %v1202
    %2054 = vmatpush.msra.mxu0 %v1200
    %2055 = vmatpush.msra.mxu0 %v1198
    %2056 = vmatpush.msra.mxu0 %v1196
    %2057 = vmatpush.msra.mxu0 %v1194
    %2058 = vmatpush.msra.mxu0 %v1192
    %2059 = vmatpush.msra.mxu0 %v1190
    %2060 = vmatmul.f32.gmra.mxu0 %v2022
    %v2061 = vpop.f32.mrf.mxu0
    %v2062 = vadd.f32 0.0, %v2061
    %2063 = vdwg.mxu0
    %v2066 = vrot.slane %v2015, 2
    %v2067 = vrot.slane %v2016, 2
    %v2070 = vsel %vm188, %v2017, %v2066
    %v2071 = vsel %vm189, %v2018, %v2067
    %v2074 = vrot.slane %v2042, 6
    %v2075 = vrot.slane %v2062, 6
    %v2078 = vadd.f32 %v2070, %v2074
    %v2079 = vadd.f32 %v2071, %v2075
    %v2080 = vxor.u32 %v2078, 2147483648
    %v2081 = vmul.f32 %v2080, 1.442695
    %v2082 = vpow.pop %v2081
    %v2083 = vadd.f32 %v2082, 1.0
    %v2084 = vrcp.pop %v2083
    %v2085 = vmul.f32 %v2083, %v2084
    %v2086 = vsub.f32 1.0, %v2085
    %v2087 = vmul.f32 %v2084, %v2086
    %v2088 = vadd.f32 %v2084, %v2087
    %vm2089 = vweird.f32 %v2083
    %vm2090 = vweird.f32 %v2084
    %vm2091 = vmor %vm2089, %vm2090
    %v2092 = vsel %vm2091, %v2084, %v2088
    %v2093 = vand.u32 2147483647, %v2083
    %vm2094 = vcmp.eq.f32.partialorder %v2093, 8.507059e+37
    %v2095 = vand.u32 %v2083, 2147483648
    %v2096 = vor.u32 1.1754944e-38, %v2095
    %v2097 = vsel %vm2094, %v2096, %v2092
    %v2098 = vmul.f32 1.0, %v2097
    %v2099 = vtanh.pop %v2079
    %v2100 = vxor.u32 %v2079, 2147483648
    %v2101 = vmul.f32 %v2100, 1.442695
    %v2102 = vpow.pop %v2101
    %v2103 = vadd.f32 %v2102, 1.0
    %v2104 = vrcp.pop %v2103
    %v2105 = vmul.f32 %v2103, %v2104
    %v2106 = vsub.f32 1.0, %v2105
    %v2107 = vmul.f32 %v2104, %v2106
    %v2108 = vadd.f32 %v2104, %v2107
    %vm2109 = vweird.f32 %v2103
    %vm2110 = vweird.f32 %v2104
    %vm2111 = vmor %vm2109, %vm2110
    %v2112 = vsel %vm2111, %v2104, %v2108
    %v2113 = vand.u32 2147483647, %v2103
    %vm2114 = vcmp.eq.f32.partialorder %v2113, 8.507059e+37
    %v2115 = vand.u32 %v2103, 2147483648
    %v2116 = vor.u32 1.1754944e-38, %v2115
    %v2117 = vsel %vm2114, %v2116, %v2112
    %v2118 = vmul.f32 1.0, %v2117
    %v2120 = vrot.slane %v2006, 2
    %v2122 = vmul.f32 %v2098, %v2120
    %v2123 = vmul.f32 %v2098, %v2099
    %2125 = vrot.lane.b32.xlu0 %v2123, 64
    %v2126 = vpop.permute.xlu0 %2125
    %v2128 = vadd.f32 %v2122, %v2126
    %v2129 = vtanh.pop %v2128
    %v2130 = vmul.f32 %v2118, %v2129
    %2132 = vrot.lane.b32.xlu0 %v2130, 64
    %v2133 = vpop.permute.xlu0 %2132
    %2135 = vst.msk [vmem:[%s7 + $0xa] sm:$0xc] %vm1653, %v2133
    %2136 = vst.msk [vmem:[%s7] sm:$0xc] %vm1655, %v2133
    %v2137 = vld [vmem:[#allocation2 + $0x10] sm:$0xc0]
    %v2138 = vld [vmem:[#allocation2 + $0x18] sm:$0xc0]
    %v2139 = vld [vmem:[#allocation2] sm:$0x3]
    %v2140 = vld [vmem:[#allocation2 + $0x8] sm:$0x3]
    %v2141 = vrot.slane %v2130, 2
    %2142 = vrot.lane.b32.xlu0 %v2141, 64
    %v2143 = vpop.permute.xlu0 %2142
    %v2144 = vsel %vm142, %v2143, 0
    %2146 = vmatpush.msra.mxu0 0.0
    %2147 = vmatpush.msra.mxu0 0.0
    %2148 = vmatpush.msra.mxu0 0.0
    %2149 = vmatpush.msra.mxu0 0.0
    %2150 = vmatpush.msra.mxu0 0.0
    %2151 = vmatpush.msra.mxu0 0.0
    %2152 = vmatpush.msra.mxu0 0.0
    %2153 = vmatpush.msra.mxu0 0.0
    %2154 = vmatpush.msra.mxu0 %v1203
    %2155 = vmatpush.msra.mxu0 %v1201
    %2156 = vmatpush.msra.mxu0 %v1199
    %2157 = vmatpush.msra.mxu0 %v1197
    %2158 = vmatpush.msra.mxu0 %v1195
    %2159 = vmatpush.msra.mxu0 %v1193
    %2160 = vmatpush.msra.mxu0 %v1191
    %2161 = vmatpush.msra.mxu0 %v1189
    %2162 = vmatmul.f32.gmra.mxu0 %v2144
    %v2163 = vpop.f32.mrf.mxu0
    %v2164 = vadd.f32 0.0, %v2163
    %2165 = vdwg.mxu0
    %2166 = vmatpush.msra.mxu0 0.0
    %2167 = vmatpush.msra.mxu0 0.0
    %2168 = vmatpush.msra.mxu0 0.0
    %2169 = vmatpush.msra.mxu0 0.0
    %2170 = vmatpush.msra.mxu0 0.0
    %2171 = vmatpush.msra.mxu0 0.0
    %2172 = vmatpush.msra.mxu0 0.0
    %2173 = vmatpush.msra.mxu0 0.0
    %2174 = vmatpush.msra.mxu0 %v1204
    %2175 = vmatpush.msra.mxu0 %v1202
    %2176 = vmatpush.msra.mxu0 %v1200
    %2177 = vmatpush.msra.mxu0 %v1198
    %2178 = vmatpush.msra.mxu0 %v1196
    %2179 = vmatpush.msra.mxu0 %v1194
    %2180 = vmatpush.msra.mxu0 %v1192
    %2181 = vmatpush.msra.mxu0 %v1190
    %2182 = vmatmul.f32.gmra.mxu0 %v2144
    %v2183 = vpop.f32.mrf.mxu0
    %v2184 = vadd.f32 0.0, %v2183
    %2185 = vdwg.mxu0
    %v2188 = vrot.slane %v2137, 6
    %v2189 = vrot.slane %v2138, 6
    %v2192 = vsel %vm188, %v2139, %v2188
    %v2193 = vsel %vm189, %v2140, %v2189
    %v2194 = vadd.f32 %v2192, %v2164
    %v2195 = vadd.f32 %v2193, %v2184
    %v2196 = vxor.u32 %v2194, 2147483648
    %v2197 = vmul.f32 %v2196, 1.442695
    %v2198 = vpow.pop %v2197
    %v2199 = vadd.f32 %v2198, 1.0
    %v2200 = vrcp.pop %v2199
    %v2201 = vmul.f32 %v2199, %v2200
    %v2202 = vsub.f32 1.0, %v2201
    %v2203 = vmul.f32 %v2200, %v2202
    %v2204 = vadd.f32 %v2200, %v2203
    %vm2205 = vweird.f32 %v2199
    %vm2206 = vweird.f32 %v2200
    %vm2207 = vmor %vm2205, %vm2206
    %v2208 = vsel %vm2207, %v2200, %v2204
    %v2209 = vand.u32 2147483647, %v2199
    %vm2210 = vcmp.eq.f32.partialorder %v2209, 8.507059e+37
    %v2211 = vand.u32 %v2199, 2147483648
    %v2212 = vor.u32 1.1754944e-38, %v2211
    %v2213 = vsel %vm2210, %v2212, %v2208
    %v2214 = vmul.f32 1.0, %v2213
    %v2215 = vtanh.pop %v2195
    %v2216 = vxor.u32 %v2195, 2147483648
    %v2217 = vmul.f32 %v2216, 1.442695
    %v2218 = vpow.pop %v2217
    %v2219 = vadd.f32 %v2218, 1.0
    %v2220 = vrcp.pop %v2219
    %v2221 = vmul.f32 %v2219, %v2220
    %v2222 = vsub.f32 1.0, %v2221
    %v2223 = vmul.f32 %v2220, %v2222
    %v2224 = vadd.f32 %v2220, %v2223
    %vm2225 = vweird.f32 %v2219
    %vm2226 = vweird.f32 %v2220
    %vm2227 = vmor %vm2225, %vm2226
    %v2228 = vsel %vm2227, %v2220, %v2224
    %v2229 = vand.u32 2147483647, %v2219
    %vm2230 = vcmp.eq.f32.partialorder %v2229, 8.507059e+37
    %v2231 = vand.u32 %v2219, 2147483648
    %v2232 = vor.u32 1.1754944e-38, %v2231
    %v2233 = vsel %vm2230, %v2232, %v2228
    %v2234 = vmul.f32 1.0, %v2233
    %v2236 = vrot.slane %v2128, 2
    %v2238 = vmul.f32 %v2214, %v2236
    %v2239 = vmul.f32 %v2214, %v2215
    %2241 = vrot.lane.b32.xlu0 %v2239, 64
    %v2242 = vpop.permute.xlu0 %2241
    %v2244 = vadd.f32 %v2238, %v2242
    %v2245 = vtanh.pop %v2244
    %v2246 = vmul.f32 %v2234, %v2245
    %2248 = vrot.lane.b32.xlu0 %v2246, 64
    %v2249 = vpop.permute.xlu0 %2248
    %2251 = vst.msk [vmem:[%s7 + $0xe] sm:$0x3] %vm1164, %v2249
    %2252 = vst.msk [vmem:[%s7] sm:$0x3] %vm1772, %v2249
    %s2253 = scalar_lea.vmem [#allocation4], 4
    %2254 = vst.msk [vmem:[%s2253] sm:$0x3] %vm1164, %v2249
    %2255 = vrot.lane.b32.xlu0 %v2246, 32
    %v2256 = vpop.permute.xlu0 %2255
    %s2258 = scalar_lea.vmem [#allocation4], 6
    %2259 = vst.msk [vmem:[%s2258] sm:$0x3] %vm1164, %v2256
    %2261 = vrot.lane.b32.xlu0 %v2244, 64
    %v2262 = vpop.permute.xlu0 %2261
    %s2264 = scalar_lea.vmem [#allocation6], 4
    %2265 = vst.msk [vmem:[%s2264] sm:$0x3] %vm1164, %v2262
    %2266 = vrot.lane.b32.xlu0 %v2244, 32
    %v2267 = vpop.permute.xlu0 %2266
    %s2269 = scalar_lea.vmem [#allocation6], 6
    %2270 = vst.msk [vmem:[%s2269] sm:$0x3] %vm1164, %v2267
    // Predicated region
    $region30: #{enc_lstm_forward.1} parent=1 // pred_check
      _
    $region31: #{enc_lstm_forward.1} parent=1 // pred_check_branch
      %2272 = sbr.rel (0) target = $region33
    $region32: #{enc_lstm_forward.1} parent=1 // pred_region
      _
    $region33: #{enc_lstm_forward.1} parent=1 // pred_fallthru
      _
    // Predicated region
    $region34: #{enc_lstm_forward.1} parent=1 // pred_check
      _
    $region35: #{enc_lstm_forward.1} parent=1 // pred_check_branch
      %2274 = sbr.rel (0) target = $region37
    $region36: #{enc_lstm_forward.1} parent=1 // pred_region
      %2276 = vsyncadd [#allocation5], 0
      %s2277 = sshll.u32 [#allocation4], 4
      %s2278 = int_to_ptr.vmem [resolvable:$true] %s2277
      %s2279 = sshll.u32 %s8, 4
      %s2280 = int_to_ptr.hbm [resolvable:$true] %s2279
      %2285 = dma.vmem_to_hbm [thread:$0]  %s2278, 128, %s2280, [#allocation5], 32, 32, 2
    $region37: #{enc_lstm_forward.1} parent=1 // pred_fallthru
      _
    // Predicated region
    $region38: #{enc_lstm_forward.1} parent=1 // pred_check
      _
    $region39: #{enc_lstm_forward.1} parent=1 // pred_check_branch
      %2287 = sbr.rel (0) target = $region41
    $region40: #{enc_lstm_forward.1} parent=1 // pred_region
      %2289 = vsyncadd [#allocation7], 0
      %s2290 = sshll.u32 [#allocation6], 4
      %s2291 = int_to_ptr.vmem [resolvable:$true] %s2290
      %s2292 = sshll.u32 %s9, 4
      %s2293 = int_to_ptr.hbm [resolvable:$true] %s2292
      %2298 = dma.vmem_to_hbm [thread:$0]  %s2291, 128, %s2293, [#allocation7], 32, 32, 2
    $region41: #{enc_lstm_forward.1} parent=1 // pred_fallthru
      _
    // Predicated region
    $region42: #{enc_lstm_forward.1} parent=1 // pred_check
      _
    $region43: #{enc_lstm_forward.1} parent=1 // pred_check_branch
      %2300 = sbr.rel (0) target = $region45
    $region44: #{enc_lstm_forward.1} parent=1 // pred_region
      _
    $region45: #{enc_lstm_forward.1} parent=1 // pred_fallthru
      _
    // Predicated region
    $region46: #{enc_lstm_forward.1} parent=1 // pred_check
      _
    $region47: #{enc_lstm_forward.1} parent=1 // pred_check_branch
      %2302 = sbr.rel (0) target = $region49
    $region48: #{enc_lstm_forward.1} parent=1 // pred_region
      %2304 = dma.done [#allocation5], 128
    $region49: #{enc_lstm_forward.1} parent=1 // pred_fallthru
      _
    // Predicated region
    $region50: #{enc_lstm_forward.1} parent=1 // pred_check
      _
    $region51: #{enc_lstm_forward.1} parent=1 // pred_check_branch
      %2306 = sbr.rel (0) target = $region53
    $region52: #{enc_lstm_forward.1} parent=1 // pred_region
      %2308 = dma.done [#allocation7], 128
    $region53: #{enc_lstm_forward.1} parent=1 // pred_fallthru
      _
    %2309 = vsyncpa [#allocation5], 1
    %2310 = vsyncpa [#allocation7], 1

</llo_original>
